<compile_context>
chip_gen: v6e
topology: v6e:2x2x1
jax: 0.10.0
libtpu: 0.0.40
codegen_flags: <defaults>
</compile_context>

<pallas_src>
import math

import jax
import jax.numpy as jnp
from jax.experimental import pallas as pl
from jax.experimental.pallas import tpu as pltpu


# ----------------------------- Pallas kernel ------------------------------- #
def typenet_fused_kernel(xp_ref, lens_ref, wi1_ref, b1_ref, wh1_ref,
                         wi2_ref, wh2_ref, b2_ref, wfc_ref, bfc_ref, out_ref):
    """Both TypeNet branches, lane-packed, single program (no grid).

    xp_ref  : (T*B, 2*D)   time-major inputs, branches packed along lanes
    lens_ref: (B, 2*H2)    int32 valid length replicated per packed h2 lane
    wi1_ref : (2*D, 8*H1)  block-diag BN-folded input weights (gate blocks [A|B])
    b1_ref  : (1, 8*H1)
    wh1_ref : (2*H1, 8*H1) block-diag layer-1 recurrent weights
    wi2_ref : (2*H1, 8*H2) / wh2_ref: (2*H2, 8*H2)  layer-2 (kept separate)
    b2_ref  : (1, 8*H2)
    wfc_ref : (2*H2, 2*O), bfc_ref: (1, 2*O)
    out_ref : (B, 2*O)
    """
    B = out_ref.shape[0]
    T = xp_ref.shape[0] // B
    HP1 = wh1_ref.shape[0]            # 2*H1 (both branches packed on lanes)
    HP2 = wh2_ref.shape[0]            # 2*H2

    wh1 = wh1_ref[...]
    wi2 = wi2_ref[...]
    wh2 = wh2_ref[...]
    b2 = b2_ref[...]
    lens = lens_ref[...]

    # Layer-1 input projection for EVERY timestep in one MXU push.
    g1_all = jnp.dot(xp_ref[...], wi1_ref[...],
                     preferred_element_type=jnp.float32) + b1_ref[...]

    def lstm_combine(s, c, HP):
        # s = sigmoid(pre-activations); cell-gate columns were pre-scaled by 2
        # at prep time, so tanh(pre_g) == 2*s_g - 1 (no full-width tanh here).
        i = s[:, 0:HP]
        f = s[:, HP:2 * HP]
        g = 2.0 * s[:, 2 * HP:3 * HP] - 1.0
        o = s[:, 3 * HP:4 * HP]
        c_new = f * c + i * g
        return o * jnp.tanh(c_new), c_new

    h1 = jnp.zeros((B, HP1), jnp.float32)
    c1 = jnp.zeros((B, HP1), jnp.float32)
    h2 = jnp.zeros((B, HP2), jnp.float32)
    c2 = jnp.zeros((B, HP2), jnp.float32)

    for t in range(T):                # static trip count -> fully unrolled
        # Layer 1: only the recurrent matmul sits on the critical chain.
        g1 = g1_all[t * B:(t + 1) * B, :] + jnp.dot(
            h1, wh1, preferred_element_type=jnp.float32)
        h1, c1 = lstm_combine(jax.nn.sigmoid(g1), c1, HP1)

        # Layer 2 (dropout = identity in eval): two independent MXU pushes.
        g2 = (jnp.dot(h1, wi2, preferred_element_type=jnp.float32) +
              jnp.dot(h2, wh2, preferred_element_type=jnp.float32) + b2)
        h2n, c2 = lstm_combine(jax.nn.sigmoid(g2), c2, HP2)

        # pack_padded semantics: only h2 is read at the end, so freezing h2
        # alone is exact (stale h1/c1/c2 past the length are unobservable).
        h2 = jnp.where(lens > t, h2n, h2)

    # Final projection: block-diagonal Linear(H2 -> O) for both branches.
    out_ref[...] = (jnp.dot(h2, wfc_ref[...], preferred_element_type=jnp.float32)
                    + bfc_ref[...])


# ------------------------ one-time parameter packing ------------------------ #
def _fold_bn_and_scale_cell_gate(p):
    """Fold eval BatchNorm into wi1/b1 and pre-scale the cell-gate columns by 2
    (so the kernel can use tanh(x) = 2*sigmoid(2x) - 1)."""
    eps = 1e-5
    scale = p["gamma"] * jax.lax.rsqrt(p["var"] + eps)       # (1, D)
    shift = p["beta"] - p["mean"] * scale                    # (1, D)
    wi1 = p["wi1_t"] * scale.reshape(-1, 1)                  # (D, 4*H1)
    b1 = p["b1"] + shift @ p["wi1_t"]                        # (1, 4*H1)

    def scale_g(w, H):
        return w.at[..., 2 * H:3 * H].multiply(2.0)

    H1 = p["wh1_t"].shape[0]
    H2 = p["wh2_t"].shape[0]
    return dict(
        wi1=scale_g(wi1, H1), wh1=scale_g(p["wh1_t"], H1), b1=scale_g(b1, H1),
        wi2=scale_g(p["wi2_t"], H2), wh2=scale_g(p["wh2_t"], H2),
        b2=scale_g(p["b2"], H2),
        wfc=p["wfc_t"], bfc=p["bfc"],
    )


def _pack_gate_mat(wa, wb, H):
    """(Ra,4H),(Rb,4H) -> (Ra+Rb, 8H) block-diagonal; gate blocks [A|B]."""
    Ra, Rb = wa.shape[0], wb.shape[0]
    out = jnp.zeros((Ra + Rb, 8 * H), jnp.float32)
    for k in range(4):
        out = out.at[:Ra, 2 * k * H:2 * k * H + H].set(wa[:, k * H:(k + 1) * H])
        out = out.at[Ra:, 2 * k * H + H:2 * (k + 1) * H].set(wb[:, k * H:(k + 1) * H])
    return out


def _pack_gate_bias(ba, bb, H):
    """(1,4H),(1,4H) -> (1,8H); gate blocks [A|B]."""
    return jnp.concatenate(
        [jnp.concatenate([ba[:, k * H:(k + 1) * H], bb[:, k * H:(k + 1) * H]], axis=1)
         for k in range(4)], axis=1)


def prepare_custom_typenet(params1, params2):
    """Build the lane-packed, block-diagonal weight set ONCE (not per call)."""
    a = _fold_bn_and_scale_cell_gate(params1)
    b = _fold_bn_and_scale_cell_gate(params2)
    H1 = params1["wh1_t"].shape[0]
    H2 = params1["wh2_t"].shape[0]
    O = params1["wfc_t"].shape[1]
    wfc = jnp.zeros((2 * H2, 2 * O), jnp.float32)
    wfc = wfc.at[:H2, :O].set(a["wfc"]).at[H2:, O:].set(b["wfc"])
    return dict(
        wi1=_pack_gate_mat(a["wi1"], b["wi1"], H1),          # (2D, 8H1)
        b1=_pack_gate_bias(a["b1"], b["b1"], H1),            # (1, 8H1)
        wh1=_pack_gate_mat(a["wh1"], b["wh1"], H1),          # (2H1, 8H1)
        wi2=_pack_gate_mat(a["wi2"], b["wi2"], H2),          # (2H1, 8H2)
        wh2=_pack_gate_mat(a["wh2"], b["wh2"], H2),          # (2H2, 8H2)
        b2=_pack_gate_bias(a["b2"], b["b2"], H2),            # (1, 8H2)
        wfc=wfc,                                             # (2H2, 2O)
        bfc=jnp.concatenate([a["bfc"], b["bfc"]], axis=1),   # (1, 2O)
    )


# ------------------------------- forward ------------------------------------ #
@jax.jit
def custom_typenet_forward(x1, x2, length1, length2, packed):
    """Both TypeNet branches in ONE single-program pallas_call (lane-packed)."""
    B, T, D = x1.shape
    H2 = packed["wh2"].shape[0] // 2
    O2 = packed["wfc"].shape[1]

    # Tiny per-call prep: time-major + lane-pack the two branches' inputs.
    xp = jnp.concatenate([jnp.transpose(x1, (1, 0, 2)),
                          jnp.transpose(x2, (1, 0, 2))],
                         axis=-1).reshape(T * B, 2 * D).astype(jnp.float32)
    lens = jnp.concatenate(
        [jnp.broadcast_to(length1.astype(jnp.int32)[:, None], (B, H2)),
         jnp.broadcast_to(length2.astype(jnp.int32)[:, None], (B, H2))], axis=1)

    vmem = pl.BlockSpec(memory_space=pltpu.MemorySpace.VMEM)
    out = pl.pallas_call(
        typenet_fused_kernel,
        out_shape=jax.ShapeDtypeStruct((B, O2), jnp.float32),
        in_specs=[vmem] * 10,
        out_specs=vmem,
    )(xp, lens, packed["wi1"], packed["b1"], packed["wh1"],
      packed["wi2"], packed["wh2"], packed["b2"], packed["wfc"], packed["bfc"])

    O = O2 // 2
    return out[:, :O], out[:, O:]


# ------------------------ deterministic parameter init ---------------------- #
def init_typenet_params(key, in_dim, h1, h2, out_dim):
    ks = jax.random.split(key, 10)

    def uni(k, shape, bound):
        return jax.random.uniform(k, shape, jnp.float32, -bound, bound)

    s1 = 1.0 / math.sqrt(h1)
    s2 = 1.0 / math.sqrt(h2)
    return {
        # BatchNorm1d(in_dim) defaults (eval mode running stats)
        "gamma": jnp.ones((1, in_dim), jnp.float32),
        "beta": jnp.zeros((1, in_dim), jnp.float32),
        "mean": jnp.zeros((1, in_dim), jnp.float32),
        "var": jnp.ones((1, in_dim), jnp.float32),
        # LSTM layer 1 (weights pre-transposed: x @ W), PyTorch gate order i,f,g,o
        "wi1_t": uni(ks[0], (in_dim, 4 * h1), s1),
        "wh1_t": uni(ks[1], (h1, 4 * h1), s1),
        "b1": uni(ks[2], (1, 4 * h1), s1) + uni(ks[3], (1, 4 * h1), s1),
        # LSTM layer 2
        "wi2_t": uni(ks[4], (h1, 4 * h2), s2),
        "wh2_t": uni(ks[5], (h2, 4 * h2), s2),
        "b2": uni(ks[6], (1, 4 * h2), s2) + uni(ks[7], (1, 4 * h2), s2),
        # Final Linear
        "wfc_t": uni(ks[8], (h2, out_dim), s2),
        "bfc": uni(ks[9], (1, out_dim), s2),
    }


# ----------------------------- pure-JAX reference --------------------------- #
def typenet_reference(x, lengths, p):
    B, T, D = x.shape
    H1 = p["wh1_t"].shape[0]
    H2 = p["wh2_t"].shape[0]
    inv_std = 1.0 / jnp.sqrt(p["var"] + 1e-5)
    xn = (x - p["mean"]) * inv_std * p["gamma"] + p["beta"]

    def cell(x_t, h, c, wi, wh, b, H):
        g = x_t @ wi + h @ wh + b
        i, f, gg, o = (jax.nn.sigmoid(g[:, :H]), jax.nn.sigmoid(g[:, H:2 * H]),
                       jnp.tanh(g[:, 2 * H:3 * H]), jax.nn.sigmoid(g[:, 3 * H:]))
        c = f * c + i * gg
        return o * jnp.tanh(c), c

    h1 = jnp.zeros((B, H1)); c1 = jnp.zeros((B, H1))
    h2 = jnp.zeros((B, H2)); c2 = jnp.zeros((B, H2))
    for t in range(T):
        h1n, c1n = cell(xn[:, t, :], h1, c1, p["wi1_t"], p["wh1_t"], p["b1"], H1)
        h2n, c2n = cell(h1n, h2, c2, p["wi2_t"], p["wh2_t"], p["b2"], H2)
        valid = (t < lengths)[:, None]
        h1 = jnp.where(valid, h1n, h1); c1 = jnp.where(valid, c1n, c1)
        h2 = jnp.where(valid, h2n, h2); c2 = jnp.where(valid, c2n, c2)
    return h2 @ p["wfc_t"] + p["bfc"]


# ---------------------------------- main ------------------------------------ #
if __name__ == "__main__":
    # Small shapes consistent with the module's forward:
    B, T, D = 2, 8, 8            # batch, sequence_length, in_dim
    H1, H2, O = 32, 32, 16       # hidden_dim_1, hidden_dim_2, output_dim
    # dropout = 0.5 -> identity in eval mode.

    key = jax.random.PRNGKey(0)
    kx1, kx2, kp1, kp2 = jax.random.split(key, 4)
    x1 = jax.random.normal(kx1, (B, T, D), jnp.float32)
    x2 = jax.random.normal(kx2, (B, T, D), jnp.float32)
    length1 = jnp.array([T, 5], jnp.int32)
    length2 = jnp.array([6, T], jnp.int32)

    params1 = init_typenet_params(kp1, D, H1, H2, O)
    params2 = init_typenet_params(kp2, D, H1, H2, O)

    packed = prepare_custom_typenet(params1, params2)   # one-time weight packing

    o1, o2 = custom_typenet_forward(x1, x2, length1, length2, packed)
    jax.block_until_ready((o1, o2))

    r1 = typenet_reference(x1, length1, params1)
    r2 = typenet_reference(x2, length2, params2)
    assert jnp.allclose(o1, r1, atol=2e-4, rtol=2e-4), "branch 1 mismatch"
    assert jnp.allclose(o2, r2, atol=2e-4, rtol=2e-4), "branch 2 mismatch"

    print("KERNEL_OK")
</pallas_src>

<mosaic_0001>
module attributes {stable_mosaic.version = 11 : i64} {
  func.func @typenet_fused_kernel(%arg0: memref<16x16xf32, #tpu.memory_space<vmem>>, %arg1: memref<2x64xi32, #tpu.memory_space<vmem>>, %arg2: memref<16x256xf32, #tpu.memory_space<vmem>>, %arg3: memref<1x256xf32, #tpu.memory_space<vmem>>, %arg4: memref<64x256xf32, #tpu.memory_space<vmem>>, %arg5: memref<64x256xf32, #tpu.memory_space<vmem>>, %arg6: memref<64x256xf32, #tpu.memory_space<vmem>>, %arg7: memref<1x256xf32, #tpu.memory_space<vmem>>, %arg8: memref<64x32xf32, #tpu.memory_space<vmem>>, %arg9: memref<1x32xf32, #tpu.memory_space<vmem>>, %arg10: memref<2x32xf32, #tpu.memory_space<vmem>>) attributes {dimension_semantics = [], scalar_prefetch = 0 : i64, scratch_operands = 0 : i64, tpu.core_type = #tpu.core_type<tc>} {
    %c0 = arith.constant 0 : index
    %c0_0 = arith.constant 0 : index
    %0 = vector.load %arg4[%c0, %c0_0] : memref<64x256xf32, #tpu.memory_space<vmem>>, vector<64x256xf32>
    %c0_1 = arith.constant 0 : index
    %c0_2 = arith.constant 0 : index
    %1 = vector.load %arg5[%c0_1, %c0_2] : memref<64x256xf32, #tpu.memory_space<vmem>>, vector<64x256xf32>
    %c0_3 = arith.constant 0 : index
    %c0_4 = arith.constant 0 : index
    %2 = vector.load %arg6[%c0_3, %c0_4] : memref<64x256xf32, #tpu.memory_space<vmem>>, vector<64x256xf32>
    %c0_5 = arith.constant 0 : index
    %c0_6 = arith.constant 0 : index
    %3 = vector.load %arg7[%c0_5, %c0_6] : memref<1x256xf32, #tpu.memory_space<vmem>>, vector<1x256xf32>
    %c0_7 = arith.constant 0 : index
    %c0_8 = arith.constant 0 : index
    %4 = vector.load %arg1[%c0_7, %c0_8] : memref<2x64xi32, #tpu.memory_space<vmem>>, vector<2x64xi32>
    %c0_9 = arith.constant 0 : index
    %c0_10 = arith.constant 0 : index
    %5 = vector.load %arg0[%c0_9, %c0_10] : memref<16x16xf32, #tpu.memory_space<vmem>>, vector<16x16xf32>
    %c0_11 = arith.constant 0 : index
    %c0_12 = arith.constant 0 : index
    %6 = vector.load %arg2[%c0_11, %c0_12] : memref<16x256xf32, #tpu.memory_space<vmem>>, vector<16x256xf32>
    %cst = arith.constant dense<0.000000e+00> : vector<16x256xf32>
    %7 = tpu.matmul %5, %6, %cst {dimension_numbers = #tpu.dot_dimension_numbers<[1], [0], [0], [1], [0, 0, 1, 1], [], []>} : vector<16x16xf32>, vector<16x256xf32>, vector<16x256xf32> -> vector<16x256xf32>
    %c0_13 = arith.constant 0 : index
    %c0_14 = arith.constant 0 : index
    %8 = vector.load %arg3[%c0_13, %c0_14] : memref<1x256xf32, #tpu.memory_space<vmem>>, vector<1x256xf32>
    %9 = vector.broadcast %8 : vector<1x256xf32> to vector<16x256xf32>
    %10 = arith.addf %7, %9 : vector<16x256xf32>
    %cst_15 = arith.constant 0.000000e+00 : f32
    %11 = vector.broadcast %cst_15 : f32 to vector<2x64xf32>
    %cst_16 = arith.constant 0.000000e+00 : f32
    %12 = vector.broadcast %cst_16 : f32 to vector<2x64xf32>
    %cst_17 = arith.constant 0.000000e+00 : f32
    %13 = vector.broadcast %cst_17 : f32 to vector<2x64xf32>
    %cst_18 = arith.constant 0.000000e+00 : f32
    %14 = vector.broadcast %cst_18 : f32 to vector<2x64xf32>
    %15 = vector.extract_strided_slice %10 {offsets = [0, 0], sizes = [2, 256], strides = [1, 1]} : vector<16x256xf32> to vector<2x256xf32>
    %cst_19 = arith.constant dense<0.000000e+00> : vector<2x256xf32>
    %16 = tpu.matmul %11, %0, %cst_19 {dimension_numbers = #tpu.dot_dimension_numbers<[1], [0], [0], [1], [0, 0, 1, 1], [], []>} : vector<2x64xf32>, vector<64x256xf32>, vector<2x256xf32> -> vector<2x256xf32>
    %17 = arith.addf %15, %16 : vector<2x256xf32>
    %18 = arith.negf %17 : vector<2x256xf32>
    %19 = math.exp %18 : vector<2x256xf32>
    %cst_20 = arith.constant 1.000000e+00 : f32
    %20 = vector.broadcast %cst_20 : f32 to vector<2x256xf32>
    %21 = arith.addf %20, %19 : vector<2x256xf32>
    %22 = arith.divf %20, %21 : vector<2x256xf32>
    %23 = vector.extract_strided_slice %22 {offsets = [0, 0], sizes = [2, 64], strides = [1, 1]} : vector<2x256xf32> to vector<2x64xf32>
    %24 = vector.extract_strided_slice %22 {offsets = [0, 64], sizes = [2, 64], strides = [1, 1]} : vector<2x256xf32> to vector<2x64xf32>
    %25 = vector.extract_strided_slice %22 {offsets = [0, 128], sizes = [2, 64], strides = [1, 1]} : vector<2x256xf32> to vector<2x64xf32>
    %cst_21 = arith.constant 2.000000e+00 : f32
    %26 = vector.broadcast %cst_21 : f32 to vector<2x64xf32>
    %27 = arith.mulf %26, %25 : vector<2x64xf32>
    %cst_22 = arith.constant 1.000000e+00 : f32
    %28 = vector.broadcast %cst_22 : f32 to vector<2x64xf32>
    %29 = arith.subf %27, %28 : vector<2x64xf32>
    %30 = vector.extract_strided_slice %22 {offsets = [0, 192], sizes = [2, 64], strides = [1, 1]} : vector<2x256xf32> to vector<2x64xf32>
    %31 = arith.mulf %24, %12 : vector<2x64xf32>
    %32 = arith.mulf %23, %29 : vector<2x64xf32>
    %33 = arith.addf %31, %32 : vector<2x64xf32>
    %34 = math.tanh %33 : vector<2x64xf32>
    %35 = arith.mulf %30, %34 : vector<2x64xf32>
    %cst_23 = arith.constant dense<0.000000e+00> : vector<2x256xf32>
    %36 = tpu.matmul %35, %1, %cst_23 {dimension_numbers = #tpu.dot_dimension_numbers<[1], [0], [0], [1], [0, 0, 1, 1], [], []>} : vector<2x64xf32>, vector<64x256xf32>, vector<2x256xf32> -> vector<2x256xf32>
    %cst_24 = arith.constant dense<0.000000e+00> : vector<2x256xf32>
    %37 = tpu.matmul %13, %2, %cst_24 {dimension_numbers = #tpu.dot_dimension_numbers<[1], [0], [0], [1], [0, 0, 1, 1], [], []>} : vector<2x64xf32>, vector<64x256xf32>, vector<2x256xf32> -> vector<2x256xf32>
    %38 = arith.addf %36, %37 : vector<2x256xf32>
    %39 = vector.broadcast %3 : vector<1x256xf32> to vector<2x256xf32>
    %40 = arith.addf %38, %39 : vector<2x256xf32>
    %41 = arith.negf %40 : vector<2x256xf32>
    %42 = math.exp %41 : vector<2x256xf32>
    %cst_25 = arith.constant 1.000000e+00 : f32
    %43 = vector.broadcast %cst_25 : f32 to vector<2x256xf32>
    %44 = arith.addf %43, %42 : vector<2x256xf32>
    %45 = arith.divf %43, %44 : vector<2x256xf32>
    %46 = vector.extract_strided_slice %45 {offsets = [0, 0], sizes = [2, 64], strides = [1, 1]} : vector<2x256xf32> to vector<2x64xf32>
    %47 = vector.extract_strided_slice %45 {offsets = [0, 64], sizes = [2, 64], strides = [1, 1]} : vector<2x256xf32> to vector<2x64xf32>
    %48 = vector.extract_strided_slice %45 {offsets = [0, 128], sizes = [2, 64], strides = [1, 1]} : vector<2x256xf32> to vector<2x64xf32>
    %cst_26 = arith.constant 2.000000e+00 : f32
    %49 = vector.broadcast %cst_26 : f32 to vector<2x64xf32>
    %50 = arith.mulf %49, %48 : vector<2x64xf32>
    %cst_27 = arith.constant 1.000000e+00 : f32
    %51 = vector.broadcast %cst_27 : f32 to vector<2x64xf32>
    %52 = arith.subf %50, %51 : vector<2x64xf32>
    %53 = vector.extract_strided_slice %45 {offsets = [0, 192], sizes = [2, 64], strides = [1, 1]} : vector<2x256xf32> to vector<2x64xf32>
    %54 = arith.mulf %47, %14 : vector<2x64xf32>
    %55 = arith.mulf %46, %52 : vector<2x64xf32>
    %56 = arith.addf %54, %55 : vector<2x64xf32>
    %57 = math.tanh %56 : vector<2x64xf32>
    %58 = arith.mulf %53, %57 : vector<2x64xf32>
    %c0_i32 = arith.constant 0 : i32
    %59 = vector.broadcast %c0_i32 : i32 to vector<2x64xi32>
    %60 = arith.cmpi sgt, %4, %59 : vector<2x64xi32>
    %61 = arith.select %60, %58, %13 : vector<2x64xi1>, vector<2x64xf32>
    %62 = vector.extract_strided_slice %10 {offsets = [2, 0], sizes = [2, 256], strides = [1, 1]} : vector<16x256xf32> to vector<2x256xf32>
    %cst_28 = arith.constant dense<0.000000e+00> : vector<2x256xf32>
    %63 = tpu.matmul %35, %0, %cst_28 {dimension_numbers = #tpu.dot_dimension_numbers<[1], [0], [0], [1], [0, 0, 1, 1], [], []>} : vector<2x64xf32>, vector<64x256xf32>, vector<2x256xf32> -> vector<2x256xf32>
    %64 = arith.addf %62, %63 : vector<2x256xf32>
    %65 = arith.negf %64 : vector<2x256xf32>
    %66 = math.exp %65 : vector<2x256xf32>
    %cst_29 = arith.constant 1.000000e+00 : f32
    %67 = vector.broadcast %cst_29 : f32 to vector<2x256xf32>
    %68 = arith.addf %67, %66 : vector<2x256xf32>
    %69 = arith.divf %67, %68 : vector<2x256xf32>
    %70 = vector.extract_strided_slice %69 {offsets = [0, 0], sizes = [2, 64], strides = [1, 1]} : vector<2x256xf32> to vector<2x64xf32>
    %71 = vector.extract_strided_slice %69 {offsets = [0, 64], sizes = [2, 64], strides = [1, 1]} : vector<2x256xf32> to vector<2x64xf32>
    %72 = vector.extract_strided_slice %69 {offsets = [0, 128], sizes = [2, 64], strides = [1, 1]} : vector<2x256xf32> to vector<2x64xf32>
    %cst_30 = arith.constant 2.000000e+00 : f32
    %73 = vector.broadcast %cst_30 : f32 to vector<2x64xf32>
    %74 = arith.mulf %73, %72 : vector<2x64xf32>
    %cst_31 = arith.constant 1.000000e+00 : f32
    %75 = vector.broadcast %cst_31 : f32 to vector<2x64xf32>
    %76 = arith.subf %74, %75 : vector<2x64xf32>
    %77 = vector.extract_strided_slice %69 {offsets = [0, 192], sizes = [2, 64], strides = [1, 1]} : vector<2x256xf32> to vector<2x64xf32>
    %78 = arith.mulf %71, %33 : vector<2x64xf32>
    %79 = arith.mulf %70, %76 : vector<2x64xf32>
    %80 = arith.addf %78, %79 : vector<2x64xf32>
    %81 = math.tanh %80 : vector<2x64xf32>
    %82 = arith.mulf %77, %81 : vector<2x64xf32>
    %cst_32 = arith.constant dense<0.000000e+00> : vector<2x256xf32>
    %83 = tpu.matmul %82, %1, %cst_32 {dimension_numbers = #tpu.dot_dimension_numbers<[1], [0], [0], [1], [0, 0, 1, 1], [], []>} : vector<2x64xf32>, vector<64x256xf32>, vector<2x256xf32> -> vector<2x256xf32>
    %cst_33 = arith.constant dense<0.000000e+00> : vector<2x256xf32>
    %84 = tpu.matmul %61, %2, %cst_33 {dimension_numbers = #tpu.dot_dimension_numbers<[1], [0], [0], [1], [0, 0, 1, 1], [], []>} : vector<2x64xf32>, vector<64x256xf32>, vector<2x256xf32> -> vector<2x256xf32>
    %85 = arith.addf %83, %84 : vector<2x256xf32>
    %86 = vector.broadcast %3 : vector<1x256xf32> to vector<2x256xf32>
    %87 = arith.addf %85, %86 : vector<2x256xf32>
    %88 = arith.negf %87 : vector<2x256xf32>
    %89 = math.exp %88 : vector<2x256xf32>
    %cst_34 = arith.constant 1.000000e+00 : f32
    %90 = vector.broadcast %cst_34 : f32 to vector<2x256xf32>
    %91 = arith.addf %90, %89 : vector<2x256xf32>
    %92 = arith.divf %90, %91 : vector<2x256xf32>
    %93 = vector.extract_strided_slice %92 {offsets = [0, 0], sizes = [2, 64], strides = [1, 1]} : vector<2x256xf32> to vector<2x64xf32>
    %94 = vector.extract_strided_slice %92 {offsets = [0, 64], sizes = [2, 64], strides = [1, 1]} : vector<2x256xf32> to vector<2x64xf32>
    %95 = vector.extract_strided_slice %92 {offsets = [0, 128], sizes = [2, 64], strides = [1, 1]} : vector<2x256xf32> to vector<2x64xf32>
    %cst_35 = arith.constant 2.000000e+00 : f32
    %96 = vector.broadcast %cst_35 : f32 to vector<2x64xf32>
    %97 = arith.mulf %96, %95 : vector<2x64xf32>
    %cst_36 = arith.constant 1.000000e+00 : f32
    %98 = vector.broadcast %cst_36 : f32 to vector<2x64xf32>
    %99 = arith.subf %97, %98 : vector<2x64xf32>
    %100 = vector.extract_strided_slice %92 {offsets = [0, 192], sizes = [2, 64], strides = [1, 1]} : vector<2x256xf32> to vector<2x64xf32>
    %101 = arith.mulf %94, %56 : vector<2x64xf32>
    %102 = arith.mulf %93, %99 : vector<2x64xf32>
    %103 = arith.addf %101, %102 : vector<2x64xf32>
    %104 = math.tanh %103 : vector<2x64xf32>
    %105 = arith.mulf %100, %104 : vector<2x64xf32>
    %c1_i32 = arith.constant 1 : i32
    %106 = vector.broadcast %c1_i32 : i32 to vector<2x64xi32>
    %107 = arith.cmpi sgt, %4, %106 : vector<2x64xi32>
    %108 = arith.select %107, %105, %61 : vector<2x64xi1>, vector<2x64xf32>
    %109 = vector.extract_strided_slice %10 {offsets = [4, 0], sizes = [2, 256], strides = [1, 1]} : vector<16x256xf32> to vector<2x256xf32>
    %cst_37 = arith.constant dense<0.000000e+00> : vector<2x256xf32>
    %110 = tpu.matmul %82, %0, %cst_37 {dimension_numbers = #tpu.dot_dimension_numbers<[1], [0], [0], [1], [0, 0, 1, 1], [], []>} : vector<2x64xf32>, vector<64x256xf32>, vector<2x256xf32> -> vector<2x256xf32>
    %111 = arith.addf %109, %110 : vector<2x256xf32>
    %112 = arith.negf %111 : vector<2x256xf32>
    %113 = math.exp %112 : vector<2x256xf32>
    %cst_38 = arith.constant 1.000000e+00 : f32
    %114 = vector.broadcast %cst_38 : f32 to vector<2x256xf32>
    %115 = arith.addf %114, %113 : vector<2x256xf32>
    %116 = arith.divf %114, %115 : vector<2x256xf32>
    %117 = vector.extract_strided_slice %116 {offsets = [0, 0], sizes = [2, 64], strides = [1, 1]} : vector<2x256xf32> to vector<2x64xf32>
    %118 = vector.extract_strided_slice %116 {offsets = [0, 64], sizes = [2, 64], strides = [1, 1]} : vector<2x256xf32> to vector<2x64xf32>
    %119 = vector.extract_strided_slice %116 {offsets = [0, 128], sizes = [2, 64], strides = [1, 1]} : vector<2x256xf32> to vector<2x64xf32>
    %cst_39 = arith.constant 2.000000e+00 : f32
    %120 = vector.broadcast %cst_39 : f32 to vector<2x64xf32>
    %121 = arith.mulf %120, %119 : vector<2x64xf32>
    %cst_40 = arith.constant 1.000000e+00 : f32
    %122 = vector.broadcast %cst_40 : f32 to vector<2x64xf32>
    %123 = arith.subf %121, %122 : vector<2x64xf32>
    %124 = vector.extract_strided_slice %116 {offsets = [0, 192], sizes = [2, 64], strides = [1, 1]} : vector<2x256xf32> to vector<2x64xf32>
    %125 = arith.mulf %118, %80 : vector<2x64xf32>
    %126 = arith.mulf %117, %123 : vector<2x64xf32>
    %127 = arith.addf %125, %126 : vector<2x64xf32>
    %128 = math.tanh %127 : vector<2x64xf32>
    %129 = arith.mulf %124, %128 : vector<2x64xf32>
    %cst_41 = arith.constant dense<0.000000e+00> : vector<2x256xf32>
    %130 = tpu.matmul %129, %1, %cst_41 {dimension_numbers = #tpu.dot_dimension_numbers<[1], [0], [0], [1], [0, 0, 1, 1], [], []>} : vector<2x64xf32>, vector<64x256xf32>, vector<2x256xf32> -> vector<2x256xf32>
    %cst_42 = arith.constant dense<0.000000e+00> : vector<2x256xf32>
    %131 = tpu.matmul %108, %2, %cst_42 {dimension_numbers = #tpu.dot_dimension_numbers<[1], [0], [0], [1], [0, 0, 1, 1], [], []>} : vector<2x64xf32>, vector<64x256xf32>, vector<2x256xf32> -> vector<2x256xf32>
    %132 = arith.addf %130, %131 : vector<2x256xf32>
    %133 = vector.broadcast %3 : vector<1x256xf32> to vector<2x256xf32>
    %134 = arith.addf %132, %133 : vector<2x256xf32>
    %135 = arith.negf %134 : vector<2x256xf32>
    %136 = math.exp %135 : vector<2x256xf32>
    %cst_43 = arith.constant 1.000000e+00 : f32
    %137 = vector.broadcast %cst_43 : f32 to vector<2x256xf32>
    %138 = arith.addf %137, %136 : vector<2x256xf32>
    %139 = arith.divf %137, %138 : vector<2x256xf32>
    %140 = vector.extract_strided_slice %139 {offsets = [0, 0], sizes = [2, 64], strides = [1, 1]} : vector<2x256xf32> to vector<2x64xf32>
    %141 = vector.extract_strided_slice %139 {offsets = [0, 64], sizes = [2, 64], strides = [1, 1]} : vector<2x256xf32> to vector<2x64xf32>
    %142 = vector.extract_strided_slice %139 {offsets = [0, 128], sizes = [2, 64], strides = [1, 1]} : vector<2x256xf32> to vector<2x64xf32>
    %cst_44 = arith.constant 2.000000e+00 : f32
    %143 = vector.broadcast %cst_44 : f32 to vector<2x64xf32>
    %144 = arith.mulf %143, %142 : vector<2x64xf32>
    %cst_45 = arith.constant 1.000000e+00 : f32
    %145 = vector.broadcast %cst_45 : f32 to vector<2x64xf32>
    %146 = arith.subf %144, %145 : vector<2x64xf32>
    %147 = vector.extract_strided_slice %139 {offsets = [0, 192], sizes = [2, 64], strides = [1, 1]} : vector<2x256xf32> to vector<2x64xf32>
    %148 = arith.mulf %141, %103 : vector<2x64xf32>
    %149 = arith.mulf %140, %146 : vector<2x64xf32>
    %150 = arith.addf %148, %149 : vector<2x64xf32>
    %151 = math.tanh %150 : vector<2x64xf32>
    %152 = arith.mulf %147, %151 : vector<2x64xf32>
    %c2_i32 = arith.constant 2 : i32
    %153 = vector.broadcast %c2_i32 : i32 to vector<2x64xi32>
    %154 = arith.cmpi sgt, %4, %153 : vector<2x64xi32>
    %155 = arith.select %154, %152, %108 : vector<2x64xi1>, vector<2x64xf32>
    %156 = vector.extract_strided_slice %10 {offsets = [6, 0], sizes = [2, 256], strides = [1, 1]} : vector<16x256xf32> to vector<2x256xf32>
    %cst_46 = arith.constant dense<0.000000e+00> : vector<2x256xf32>
    %157 = tpu.matmul %129, %0, %cst_46 {dimension_numbers = #tpu.dot_dimension_numbers<[1], [0], [0], [1], [0, 0, 1, 1], [], []>} : vector<2x64xf32>, vector<64x256xf32>, vector<2x256xf32> -> vector<2x256xf32>
    %158 = arith.addf %156, %157 : vector<2x256xf32>
    %159 = arith.negf %158 : vector<2x256xf32>
    %160 = math.exp %159 : vector<2x256xf32>
    %cst_47 = arith.constant 1.000000e+00 : f32
    %161 = vector.broadcast %cst_47 : f32 to vector<2x256xf32>
    %162 = arith.addf %161, %160 : vector<2x256xf32>
    %163 = arith.divf %161, %162 : vector<2x256xf32>
    %164 = vector.extract_strided_slice %163 {offsets = [0, 0], sizes = [2, 64], strides = [1, 1]} : vector<2x256xf32> to vector<2x64xf32>
    %165 = vector.extract_strided_slice %163 {offsets = [0, 64], sizes = [2, 64], strides = [1, 1]} : vector<2x256xf32> to vector<2x64xf32>
    %166 = vector.extract_strided_slice %163 {offsets = [0, 128], sizes = [2, 64], strides = [1, 1]} : vector<2x256xf32> to vector<2x64xf32>
    %cst_48 = arith.constant 2.000000e+00 : f32
    %167 = vector.broadcast %cst_48 : f32 to vector<2x64xf32>
    %168 = arith.mulf %167, %166 : vector<2x64xf32>
    %cst_49 = arith.constant 1.000000e+00 : f32
    %169 = vector.broadcast %cst_49 : f32 to vector<2x64xf32>
    %170 = arith.subf %168, %169 : vector<2x64xf32>
    %171 = vector.extract_strided_slice %163 {offsets = [0, 192], sizes = [2, 64], strides = [1, 1]} : vector<2x256xf32> to vector<2x64xf32>
    %172 = arith.mulf %165, %127 : vector<2x64xf32>
    %173 = arith.mulf %164, %170 : vector<2x64xf32>
    %174 = arith.addf %172, %173 : vector<2x64xf32>
    %175 = math.tanh %174 : vector<2x64xf32>
    %176 = arith.mulf %171, %175 : vector<2x64xf32>
    %cst_50 = arith.constant dense<0.000000e+00> : vector<2x256xf32>
    %177 = tpu.matmul %176, %1, %cst_50 {dimension_numbers = #tpu.dot_dimension_numbers<[1], [0], [0], [1], [0, 0, 1, 1], [], []>} : vector<2x64xf32>, vector<64x256xf32>, vector<2x256xf32> -> vector<2x256xf32>
    %cst_51 = arith.constant dense<0.000000e+00> : vector<2x256xf32>
    %178 = tpu.matmul %155, %2, %cst_51 {dimension_numbers = #tpu.dot_dimension_numbers<[1], [0], [0], [1], [0, 0, 1, 1], [], []>} : vector<2x64xf32>, vector<64x256xf32>, vector<2x256xf32> -> vector<2x256xf32>
    %179 = arith.addf %177, %178 : vector<2x256xf32>
    %180 = vector.broadcast %3 : vector<1x256xf32> to vector<2x256xf32>
    %181 = arith.addf %179, %180 : vector<2x256xf32>
    %182 = arith.negf %181 : vector<2x256xf32>
    %183 = math.exp %182 : vector<2x256xf32>
    %cst_52 = arith.constant 1.000000e+00 : f32
    %184 = vector.broadcast %cst_52 : f32 to vector<2x256xf32>
    %185 = arith.addf %184, %183 : vector<2x256xf32>
    %186 = arith.divf %184, %185 : vector<2x256xf32>
    %187 = vector.extract_strided_slice %186 {offsets = [0, 0], sizes = [2, 64], strides = [1, 1]} : vector<2x256xf32> to vector<2x64xf32>
    %188 = vector.extract_strided_slice %186 {offsets = [0, 64], sizes = [2, 64], strides = [1, 1]} : vector<2x256xf32> to vector<2x64xf32>
    %189 = vector.extract_strided_slice %186 {offsets = [0, 128], sizes = [2, 64], strides = [1, 1]} : vector<2x256xf32> to vector<2x64xf32>
    %cst_53 = arith.constant 2.000000e+00 : f32
    %190 = vector.broadcast %cst_53 : f32 to vector<2x64xf32>
    %191 = arith.mulf %190, %189 : vector<2x64xf32>
    %cst_54 = arith.constant 1.000000e+00 : f32
    %192 = vector.broadcast %cst_54 : f32 to vector<2x64xf32>
    %193 = arith.subf %191, %192 : vector<2x64xf32>
    %194 = vector.extract_strided_slice %186 {offsets = [0, 192], sizes = [2, 64], strides = [1, 1]} : vector<2x256xf32> to vector<2x64xf32>
    %195 = arith.mulf %188, %150 : vector<2x64xf32>
    %196 = arith.mulf %187, %193 : vector<2x64xf32>
    %197 = arith.addf %195, %196 : vector<2x64xf32>
    %198 = math.tanh %197 : vector<2x64xf32>
    %199 = arith.mulf %194, %198 : vector<2x64xf32>
    %c3_i32 = arith.constant 3 : i32
    %200 = vector.broadcast %c3_i32 : i32 to vector<2x64xi32>
    %201 = arith.cmpi sgt, %4, %200 : vector<2x64xi32>
    %202 = arith.select %201, %199, %155 : vector<2x64xi1>, vector<2x64xf32>
    %203 = vector.extract_strided_slice %10 {offsets = [8, 0], sizes = [2, 256], strides = [1, 1]} : vector<16x256xf32> to vector<2x256xf32>
    %cst_55 = arith.constant dense<0.000000e+00> : vector<2x256xf32>
    %204 = tpu.matmul %176, %0, %cst_55 {dimension_numbers = #tpu.dot_dimension_numbers<[1], [0], [0], [1], [0, 0, 1, 1], [], []>} : vector<2x64xf32>, vector<64x256xf32>, vector<2x256xf32> -> vector<2x256xf32>
    %205 = arith.addf %203, %204 : vector<2x256xf32>
    %206 = arith.negf %205 : vector<2x256xf32>
    %207 = math.exp %206 : vector<2x256xf32>
    %cst_56 = arith.constant 1.000000e+00 : f32
    %208 = vector.broadcast %cst_56 : f32 to vector<2x256xf32>
    %209 = arith.addf %208, %207 : vector<2x256xf32>
    %210 = arith.divf %208, %209 : vector<2x256xf32>
    %211 = vector.extract_strided_slice %210 {offsets = [0, 0], sizes = [2, 64], strides = [1, 1]} : vector<2x256xf32> to vector<2x64xf32>
    %212 = vector.extract_strided_slice %210 {offsets = [0, 64], sizes = [2, 64], strides = [1, 1]} : vector<2x256xf32> to vector<2x64xf32>
    %213 = vector.extract_strided_slice %210 {offsets = [0, 128], sizes = [2, 64], strides = [1, 1]} : vector<2x256xf32> to vector<2x64xf32>
    %cst_57 = arith.constant 2.000000e+00 : f32
    %214 = vector.broadcast %cst_57 : f32 to vector<2x64xf32>
    %215 = arith.mulf %214, %213 : vector<2x64xf32>
    %cst_58 = arith.constant 1.000000e+00 : f32
    %216 = vector.broadcast %cst_58 : f32 to vector<2x64xf32>
    %217 = arith.subf %215, %216 : vector<2x64xf32>
    %218 = vector.extract_strided_slice %210 {offsets = [0, 192], sizes = [2, 64], strides = [1, 1]} : vector<2x256xf32> to vector<2x64xf32>
    %219 = arith.mulf %212, %174 : vector<2x64xf32>
    %220 = arith.mulf %211, %217 : vector<2x64xf32>
    %221 = arith.addf %219, %220 : vector<2x64xf32>
    %222 = math.tanh %221 : vector<2x64xf32>
    %223 = arith.mulf %218, %222 : vector<2x64xf32>
    %cst_59 = arith.constant dense<0.000000e+00> : vector<2x256xf32>
    %224 = tpu.matmul %223, %1, %cst_59 {dimension_numbers = #tpu.dot_dimension_numbers<[1], [0], [0], [1], [0, 0, 1, 1], [], []>} : vector<2x64xf32>, vector<64x256xf32>, vector<2x256xf32> -> vector<2x256xf32>
    %cst_60 = arith.constant dense<0.000000e+00> : vector<2x256xf32>
    %225 = tpu.matmul %202, %2, %cst_60 {dimension_numbers = #tpu.dot_dimension_numbers<[1], [0], [0], [1], [0, 0, 1, 1], [], []>} : vector<2x64xf32>, vector<64x256xf32>, vector<2x256xf32> -> vector<2x256xf32>
    %226 = arith.addf %224, %225 : vector<2x256xf32>
    %227 = vector.broadcast %3 : vector<1x256xf32> to vector<2x256xf32>
    %228 = arith.addf %226, %227 : vector<2x256xf32>
    %229 = arith.negf %228 : vector<2x256xf32>
    %230 = math.exp %229 : vector<2x256xf32>
    %cst_61 = arith.constant 1.000000e+00 : f32
    %231 = vector.broadcast %cst_61 : f32 to vector<2x256xf32>
    %232 = arith.addf %231, %230 : vector<2x256xf32>
    %233 = arith.divf %231, %232 : vector<2x256xf32>
    %234 = vector.extract_strided_slice %233 {offsets = [0, 0], sizes = [2, 64], strides = [1, 1]} : vector<2x256xf32> to vector<2x64xf32>
    %235 = vector.extract_strided_slice %233 {offsets = [0, 64], sizes = [2, 64], strides = [1, 1]} : vector<2x256xf32> to vector<2x64xf32>
    %236 = vector.extract_strided_slice %233 {offsets = [0, 128], sizes = [2, 64], strides = [1, 1]} : vector<2x256xf32> to vector<2x64xf32>
    %cst_62 = arith.constant 2.000000e+00 : f32
    %237 = vector.broadcast %cst_62 : f32 to vector<2x64xf32>
    %238 = arith.mulf %237, %236 : vector<2x64xf32>
    %cst_63 = arith.constant 1.000000e+00 : f32
    %239 = vector.broadcast %cst_63 : f32 to vector<2x64xf32>
    %240 = arith.subf %238, %239 : vector<2x64xf32>
    %241 = vector.extract_strided_slice %233 {offsets = [0, 192], sizes = [2, 64], strides = [1, 1]} : vector<2x256xf32> to vector<2x64xf32>
    %242 = arith.mulf %235, %197 : vector<2x64xf32>
    %243 = arith.mulf %234, %240 : vector<2x64xf32>
    %244 = arith.addf %242, %243 : vector<2x64xf32>
    %245 = math.tanh %244 : vector<2x64xf32>
    %246 = arith.mulf %241, %245 : vector<2x64xf32>
    %c4_i32 = arith.constant 4 : i32
    %247 = vector.broadcast %c4_i32 : i32 to vector<2x64xi32>
    %248 = arith.cmpi sgt, %4, %247 : vector<2x64xi32>
    %249 = arith.select %248, %246, %202 : vector<2x64xi1>, vector<2x64xf32>
    %250 = vector.extract_strided_slice %10 {offsets = [10, 0], sizes = [2, 256], strides = [1, 1]} : vector<16x256xf32> to vector<2x256xf32>
    %cst_64 = arith.constant dense<0.000000e+00> : vector<2x256xf32>
    %251 = tpu.matmul %223, %0, %cst_64 {dimension_numbers = #tpu.dot_dimension_numbers<[1], [0], [0], [1], [0, 0, 1, 1], [], []>} : vector<2x64xf32>, vector<64x256xf32>, vector<2x256xf32> -> vector<2x256xf32>
    %252 = arith.addf %250, %251 : vector<2x256xf32>
    %253 = arith.negf %252 : vector<2x256xf32>
    %254 = math.exp %253 : vector<2x256xf32>
    %cst_65 = arith.constant 1.000000e+00 : f32
    %255 = vector.broadcast %cst_65 : f32 to vector<2x256xf32>
    %256 = arith.addf %255, %254 : vector<2x256xf32>
    %257 = arith.divf %255, %256 : vector<2x256xf32>
    %258 = vector.extract_strided_slice %257 {offsets = [0, 0], sizes = [2, 64], strides = [1, 1]} : vector<2x256xf32> to vector<2x64xf32>
    %259 = vector.extract_strided_slice %257 {offsets = [0, 64], sizes = [2, 64], strides = [1, 1]} : vector<2x256xf32> to vector<2x64xf32>
    %260 = vector.extract_strided_slice %257 {offsets = [0, 128], sizes = [2, 64], strides = [1, 1]} : vector<2x256xf32> to vector<2x64xf32>
    %cst_66 = arith.constant 2.000000e+00 : f32
    %261 = vector.broadcast %cst_66 : f32 to vector<2x64xf32>
    %262 = arith.mulf %261, %260 : vector<2x64xf32>
    %cst_67 = arith.constant 1.000000e+00 : f32
    %263 = vector.broadcast %cst_67 : f32 to vector<2x64xf32>
    %264 = arith.subf %262, %263 : vector<2x64xf32>
    %265 = vector.extract_strided_slice %257 {offsets = [0, 192], sizes = [2, 64], strides = [1, 1]} : vector<2x256xf32> to vector<2x64xf32>
    %266 = arith.mulf %259, %221 : vector<2x64xf32>
    %267 = arith.mulf %258, %264 : vector<2x64xf32>
    %268 = arith.addf %266, %267 : vector<2x64xf32>
    %269 = math.tanh %268 : vector<2x64xf32>
    %270 = arith.mulf %265, %269 : vector<2x64xf32>
    %cst_68 = arith.constant dense<0.000000e+00> : vector<2x256xf32>
    %271 = tpu.matmul %270, %1, %cst_68 {dimension_numbers = #tpu.dot_dimension_numbers<[1], [0], [0], [1], [0, 0, 1, 1], [], []>} : vector<2x64xf32>, vector<64x256xf32>, vector<2x256xf32> -> vector<2x256xf32>
    %cst_69 = arith.constant dense<0.000000e+00> : vector<2x256xf32>
    %272 = tpu.matmul %249, %2, %cst_69 {dimension_numbers = #tpu.dot_dimension_numbers<[1], [0], [0], [1], [0, 0, 1, 1], [], []>} : vector<2x64xf32>, vector<64x256xf32>, vector<2x256xf32> -> vector<2x256xf32>
    %273 = arith.addf %271, %272 : vector<2x256xf32>
    %274 = vector.broadcast %3 : vector<1x256xf32> to vector<2x256xf32>
    %275 = arith.addf %273, %274 : vector<2x256xf32>
    %276 = arith.negf %275 : vector<2x256xf32>
    %277 = math.exp %276 : vector<2x256xf32>
    %cst_70 = arith.constant 1.000000e+00 : f32
    %278 = vector.broadcast %cst_70 : f32 to vector<2x256xf32>
    %279 = arith.addf %278, %277 : vector<2x256xf32>
    %280 = arith.divf %278, %279 : vector<2x256xf32>
    %281 = vector.extract_strided_slice %280 {offsets = [0, 0], sizes = [2, 64], strides = [1, 1]} : vector<2x256xf32> to vector<2x64xf32>
    %282 = vector.extract_strided_slice %280 {offsets = [0, 64], sizes = [2, 64], strides = [1, 1]} : vector<2x256xf32> to vector<2x64xf32>
    %283 = vector.extract_strided_slice %280 {offsets = [0, 128], sizes = [2, 64], strides = [1, 1]} : vector<2x256xf32> to vector<2x64xf32>
    %cst_71 = arith.constant 2.000000e+00 : f32
    %284 = vector.broadcast %cst_71 : f32 to vector<2x64xf32>
    %285 = arith.mulf %284, %283 : vector<2x64xf32>
    %cst_72 = arith.constant 1.000000e+00 : f32
    %286 = vector.broadcast %cst_72 : f32 to vector<2x64xf32>
    %287 = arith.subf %285, %286 : vector<2x64xf32>
    %288 = vector.extract_strided_slice %280 {offsets = [0, 192], sizes = [2, 64], strides = [1, 1]} : vector<2x256xf32> to vector<2x64xf32>
    %289 = arith.mulf %282, %244 : vector<2x64xf32>
    %290 = arith.mulf %281, %287 : vector<2x64xf32>
    %291 = arith.addf %289, %290 : vector<2x64xf32>
    %292 = math.tanh %291 : vector<2x64xf32>
    %293 = arith.mulf %288, %292 : vector<2x64xf32>
    %c5_i32 = arith.constant 5 : i32
    %294 = vector.broadcast %c5_i32 : i32 to vector<2x64xi32>
    %295 = arith.cmpi sgt, %4, %294 : vector<2x64xi32>
    %296 = arith.select %295, %293, %249 : vector<2x64xi1>, vector<2x64xf32>
    %297 = vector.extract_strided_slice %10 {offsets = [12, 0], sizes = [2, 256], strides = [1, 1]} : vector<16x256xf32> to vector<2x256xf32>
    %cst_73 = arith.constant dense<0.000000e+00> : vector<2x256xf32>
    %298 = tpu.matmul %270, %0, %cst_73 {dimension_numbers = #tpu.dot_dimension_numbers<[1], [0], [0], [1], [0, 0, 1, 1], [], []>} : vector<2x64xf32>, vector<64x256xf32>, vector<2x256xf32> -> vector<2x256xf32>
    %299 = arith.addf %297, %298 : vector<2x256xf32>
    %300 = arith.negf %299 : vector<2x256xf32>
    %301 = math.exp %300 : vector<2x256xf32>
    %cst_74 = arith.constant 1.000000e+00 : f32
    %302 = vector.broadcast %cst_74 : f32 to vector<2x256xf32>
    %303 = arith.addf %302, %301 : vector<2x256xf32>
    %304 = arith.divf %302, %303 : vector<2x256xf32>
    %305 = vector.extract_strided_slice %304 {offsets = [0, 0], sizes = [2, 64], strides = [1, 1]} : vector<2x256xf32> to vector<2x64xf32>
    %306 = vector.extract_strided_slice %304 {offsets = [0, 64], sizes = [2, 64], strides = [1, 1]} : vector<2x256xf32> to vector<2x64xf32>
    %307 = vector.extract_strided_slice %304 {offsets = [0, 128], sizes = [2, 64], strides = [1, 1]} : vector<2x256xf32> to vector<2x64xf32>
    %cst_75 = arith.constant 2.000000e+00 : f32
    %308 = vector.broadcast %cst_75 : f32 to vector<2x64xf32>
    %309 = arith.mulf %308, %307 : vector<2x64xf32>
    %cst_76 = arith.constant 1.000000e+00 : f32
    %310 = vector.broadcast %cst_76 : f32 to vector<2x64xf32>
    %311 = arith.subf %309, %310 : vector<2x64xf32>
    %312 = vector.extract_strided_slice %304 {offsets = [0, 192], sizes = [2, 64], strides = [1, 1]} : vector<2x256xf32> to vector<2x64xf32>
    %313 = arith.mulf %306, %268 : vector<2x64xf32>
    %314 = arith.mulf %305, %311 : vector<2x64xf32>
    %315 = arith.addf %313, %314 : vector<2x64xf32>
    %316 = math.tanh %315 : vector<2x64xf32>
    %317 = arith.mulf %312, %316 : vector<2x64xf32>
    %cst_77 = arith.constant dense<0.000000e+00> : vector<2x256xf32>
    %318 = tpu.matmul %317, %1, %cst_77 {dimension_numbers = #tpu.dot_dimension_numbers<[1], [0], [0], [1], [0, 0, 1, 1], [], []>} : vector<2x64xf32>, vector<64x256xf32>, vector<2x256xf32> -> vector<2x256xf32>
    %cst_78 = arith.constant dense<0.000000e+00> : vector<2x256xf32>
    %319 = tpu.matmul %296, %2, %cst_78 {dimension_numbers = #tpu.dot_dimension_numbers<[1], [0], [0], [1], [0, 0, 1, 1], [], []>} : vector<2x64xf32>, vector<64x256xf32>, vector<2x256xf32> -> vector<2x256xf32>
    %320 = arith.addf %318, %319 : vector<2x256xf32>
    %321 = vector.broadcast %3 : vector<1x256xf32> to vector<2x256xf32>
    %322 = arith.addf %320, %321 : vector<2x256xf32>
    %323 = arith.negf %322 : vector<2x256xf32>
    %324 = math.exp %323 : vector<2x256xf32>
    %cst_79 = arith.constant 1.000000e+00 : f32
    %325 = vector.broadcast %cst_79 : f32 to vector<2x256xf32>
    %326 = arith.addf %325, %324 : vector<2x256xf32>
    %327 = arith.divf %325, %326 : vector<2x256xf32>
    %328 = vector.extract_strided_slice %327 {offsets = [0, 0], sizes = [2, 64], strides = [1, 1]} : vector<2x256xf32> to vector<2x64xf32>
    %329 = vector.extract_strided_slice %327 {offsets = [0, 64], sizes = [2, 64], strides = [1, 1]} : vector<2x256xf32> to vector<2x64xf32>
    %330 = vector.extract_strided_slice %327 {offsets = [0, 128], sizes = [2, 64], strides = [1, 1]} : vector<2x256xf32> to vector<2x64xf32>
    %cst_80 = arith.constant 2.000000e+00 : f32
    %331 = vector.broadcast %cst_80 : f32 to vector<2x64xf32>
    %332 = arith.mulf %331, %330 : vector<2x64xf32>
    %cst_81 = arith.constant 1.000000e+00 : f32
    %333 = vector.broadcast %cst_81 : f32 to vector<2x64xf32>
    %334 = arith.subf %332, %333 : vector<2x64xf32>
    %335 = vector.extract_strided_slice %327 {offsets = [0, 192], sizes = [2, 64], strides = [1, 1]} : vector<2x256xf32> to vector<2x64xf32>
    %336 = arith.mulf %329, %291 : vector<2x64xf32>
    %337 = arith.mulf %328, %334 : vector<2x64xf32>
    %338 = arith.addf %336, %337 : vector<2x64xf32>
    %339 = math.tanh %338 : vector<2x64xf32>
    %340 = arith.mulf %335, %339 : vector<2x64xf32>
    %c6_i32 = arith.constant 6 : i32
    %341 = vector.broadcast %c6_i32 : i32 to vector<2x64xi32>
    %342 = arith.cmpi sgt, %4, %341 : vector<2x64xi32>
    %343 = arith.select %342, %340, %296 : vector<2x64xi1>, vector<2x64xf32>
    %344 = vector.extract_strided_slice %10 {offsets = [14, 0], sizes = [2, 256], strides = [1, 1]} : vector<16x256xf32> to vector<2x256xf32>
    %cst_82 = arith.constant dense<0.000000e+00> : vector<2x256xf32>
    %345 = tpu.matmul %317, %0, %cst_82 {dimension_numbers = #tpu.dot_dimension_numbers<[1], [0], [0], [1], [0, 0, 1, 1], [], []>} : vector<2x64xf32>, vector<64x256xf32>, vector<2x256xf32> -> vector<2x256xf32>
    %346 = arith.addf %344, %345 : vector<2x256xf32>
    %347 = arith.negf %346 : vector<2x256xf32>
    %348 = math.exp %347 : vector<2x256xf32>
    %cst_83 = arith.constant 1.000000e+00 : f32
    %349 = vector.broadcast %cst_83 : f32 to vector<2x256xf32>
    %350 = arith.addf %349, %348 : vector<2x256xf32>
    %351 = arith.divf %349, %350 : vector<2x256xf32>
    %352 = vector.extract_strided_slice %351 {offsets = [0, 0], sizes = [2, 64], strides = [1, 1]} : vector<2x256xf32> to vector<2x64xf32>
    %353 = vector.extract_strided_slice %351 {offsets = [0, 64], sizes = [2, 64], strides = [1, 1]} : vector<2x256xf32> to vector<2x64xf32>
    %354 = vector.extract_strided_slice %351 {offsets = [0, 128], sizes = [2, 64], strides = [1, 1]} : vector<2x256xf32> to vector<2x64xf32>
    %cst_84 = arith.constant 2.000000e+00 : f32
    %355 = vector.broadcast %cst_84 : f32 to vector<2x64xf32>
    %356 = arith.mulf %355, %354 : vector<2x64xf32>
    %cst_85 = arith.constant 1.000000e+00 : f32
    %357 = vector.broadcast %cst_85 : f32 to vector<2x64xf32>
    %358 = arith.subf %356, %357 : vector<2x64xf32>
    %359 = vector.extract_strided_slice %351 {offsets = [0, 192], sizes = [2, 64], strides = [1, 1]} : vector<2x256xf32> to vector<2x64xf32>
    %360 = arith.mulf %353, %315 : vector<2x64xf32>
    %361 = arith.mulf %352, %358 : vector<2x64xf32>
    %362 = arith.addf %360, %361 : vector<2x64xf32>
    %363 = math.tanh %362 : vector<2x64xf32>
    %364 = arith.mulf %359, %363 : vector<2x64xf32>
    %cst_86 = arith.constant dense<0.000000e+00> : vector<2x256xf32>
    %365 = tpu.matmul %364, %1, %cst_86 {dimension_numbers = #tpu.dot_dimension_numbers<[1], [0], [0], [1], [0, 0, 1, 1], [], []>} : vector<2x64xf32>, vector<64x256xf32>, vector<2x256xf32> -> vector<2x256xf32>
    %cst_87 = arith.constant dense<0.000000e+00> : vector<2x256xf32>
    %366 = tpu.matmul %343, %2, %cst_87 {dimension_numbers = #tpu.dot_dimension_numbers<[1], [0], [0], [1], [0, 0, 1, 1], [], []>} : vector<2x64xf32>, vector<64x256xf32>, vector<2x256xf32> -> vector<2x256xf32>
    %367 = arith.addf %365, %366 : vector<2x256xf32>
    %368 = vector.broadcast %3 : vector<1x256xf32> to vector<2x256xf32>
    %369 = arith.addf %367, %368 : vector<2x256xf32>
    %370 = arith.negf %369 : vector<2x256xf32>
    %371 = math.exp %370 : vector<2x256xf32>
    %cst_88 = arith.constant 1.000000e+00 : f32
    %372 = vector.broadcast %cst_88 : f32 to vector<2x256xf32>
    %373 = arith.addf %372, %371 : vector<2x256xf32>
    %374 = arith.divf %372, %373 : vector<2x256xf32>
    %375 = vector.extract_strided_slice %374 {offsets = [0, 0], sizes = [2, 64], strides = [1, 1]} : vector<2x256xf32> to vector<2x64xf32>
    %376 = vector.extract_strided_slice %374 {offsets = [0, 64], sizes = [2, 64], strides = [1, 1]} : vector<2x256xf32> to vector<2x64xf32>
    %377 = vector.extract_strided_slice %374 {offsets = [0, 128], sizes = [2, 64], strides = [1, 1]} : vector<2x256xf32> to vector<2x64xf32>
    %cst_89 = arith.constant 2.000000e+00 : f32
    %378 = vector.broadcast %cst_89 : f32 to vector<2x64xf32>
    %379 = arith.mulf %378, %377 : vector<2x64xf32>
    %cst_90 = arith.constant 1.000000e+00 : f32
    %380 = vector.broadcast %cst_90 : f32 to vector<2x64xf32>
    %381 = arith.subf %379, %380 : vector<2x64xf32>
    %382 = vector.extract_strided_slice %374 {offsets = [0, 192], sizes = [2, 64], strides = [1, 1]} : vector<2x256xf32> to vector<2x64xf32>
    %383 = arith.mulf %376, %338 : vector<2x64xf32>
    %384 = arith.mulf %375, %381 : vector<2x64xf32>
    %385 = arith.addf %383, %384 : vector<2x64xf32>
    %386 = math.tanh %385 : vector<2x64xf32>
    %387 = arith.mulf %382, %386 : vector<2x64xf32>
    %c7_i32 = arith.constant 7 : i32
    %388 = vector.broadcast %c7_i32 : i32 to vector<2x64xi32>
    %389 = arith.cmpi sgt, %4, %388 : vector<2x64xi32>
    %390 = arith.select %389, %387, %343 : vector<2x64xi1>, vector<2x64xf32>
    %c0_91 = arith.constant 0 : index
    %c0_92 = arith.constant 0 : index
    %391 = vector.load %arg8[%c0_91, %c0_92] : memref<64x32xf32, #tpu.memory_space<vmem>>, vector<64x32xf32>
    %cst_93 = arith.constant dense<0.000000e+00> : vector<2x32xf32>
    %392 = tpu.matmul %390, %391, %cst_93 {dimension_numbers = #tpu.dot_dimension_numbers<[1], [0], [0], [1], [0, 0, 1, 1], [], []>} : vector<2x64xf32>, vector<64x32xf32>, vector<2x32xf32> -> vector<2x32xf32>
    %c0_94 = arith.constant 0 : index
    %c0_95 = arith.constant 0 : index
    %393 = vector.load %arg9[%c0_94, %c0_95] : memref<1x32xf32, #tpu.memory_space<vmem>>, vector<1x32xf32>
    %394 = vector.broadcast %393 : vector<1x32xf32> to vector<2x32xf32>
    %395 = arith.addf %392, %394 : vector<2x32xf32>
    %c0_96 = arith.constant 0 : index
    %c0_97 = arith.constant 0 : index
    %396 = vector.load %arg10[%c0_96, %c0_97] : memref<2x32xf32, #tpu.memory_space<vmem>>, vector<2x32xf32>
    tpu.vector_store %arg10[%c0_96, %c0_97], %395 {strides = array<i32>} : memref<2x32xf32, #tpu.memory_space<vmem>>, vector<2x32xf32>,
    return
  }
}

</mosaic_0001>

<llo_original>
// kernel: custom_typenet_forward.1
$region0: #{custom_typenet_forward.1}
  #allocation0 [shape = 'u32[]', space=smem, size = 0x4, offset = 0x4, fixed_abs, tag = 'smem constant byte address 0x4 - core index']
  #allocation1 [shape = 'u32[144,128]{1,0:T(1,128)}', space=vmem, size = 0x12000, scoped, tag = 'internal scratch']
  %s0 = inlined_call_operand.vmem [shape: f32[16,16], index: 0, kind: input, shape index: {}]
  %s1 = inlined_call_operand.vmem [shape: s32[2,64], index: 1, kind: input, shape index: {}]
  %s2 = inlined_call_operand.vmem [shape: f32[16,256], index: 2, kind: input, shape index: {}]
  %s3 = inlined_call_operand.vmem [shape: f32[1,256], index: 3, kind: input, shape index: {}]
  %s4 = inlined_call_operand.vmem [shape: f32[64,256], index: 4, kind: input, shape index: {}]
  %s5 = inlined_call_operand.hbm [shape: f32[64,256], index: 5, kind: input, shape index: {}]
  %s6 = inlined_call_operand.hbm [shape: f32[64,256], index: 6, kind: input, shape index: {}]
  %s7 = inlined_call_operand.vmem [shape: f32[1,256], index: 7, kind: input, shape index: {}]
  %s8 = inlined_call_operand.vmem [shape: f32[64,32], index: 8, kind: input, shape index: {}]
  %s9 = inlined_call_operand.vmem [shape: f32[1,32], index: 9, kind: input, shape index: {}]
  %s10 = inlined_call_operand.vmem [shape: f32[2,32], index: 10, kind: output, shape index: {}]
  %s11 = sld [smem:[#allocation0]]
  $region58: #{custom_typenet_forward.1} parent=0
    _
  %s13 = ssub.s32 1, %s11
  %s14 = scalar_select 0, %s13, %s11
  $region1: #{custom_typenet_forward.1} parent=0
    #allocation2 [shape = 'u8[65536]{0}', space=vmem, size = 0x10000, scoped, tag = 'input window, operand 5, single buffered']
    #allocation3 [shape = 's32[1]{0}', space=sflag, size = 0x4, scoped, tag = 'scoped memory for custom_typenet_forward.1']
    #allocation4 [shape = 'u8[65536]{0}', space=vmem, size = 0x10000, scoped, tag = 'input window, operand 6, single buffered']
    #allocation5 [shape = 's32[1]{0}', space=sflag, size = 0x4, scoped, tag = 'scoped memory for custom_typenet_forward.1']
    %15 = vsyncpa [#allocation3], 0
    %16 = vsyncpa [#allocation5], 0
    // Predicated region
    $region2: #{custom_typenet_forward.1} parent=1 // pred_check
      _
    $region3: #{custom_typenet_forward.1} parent=1 // pred_check_branch
      %18 = sbr.rel (0) target = $region5
    $region4: #{custom_typenet_forward.1} parent=1 // pred_region
      _
    $region5: #{custom_typenet_forward.1} parent=1 // pred_fallthru
      _
    // Predicated region
    $region6: #{custom_typenet_forward.1} parent=1 // pred_check
      _
    $region7: #{custom_typenet_forward.1} parent=1 // pred_check_branch
      %20 = sbr.rel (0) target = $region9
    $region8: #{custom_typenet_forward.1} parent=1 // pred_region
      _
    $region9: #{custom_typenet_forward.1} parent=1 // pred_fallthru
      _
    // Predicated region
    $region10: #{custom_typenet_forward.1} parent=1 // pred_check
      _
    $region11: #{custom_typenet_forward.1} parent=1 // pred_check_branch
      %22 = sbr.rel (0) target = $region13
    $region12: #{custom_typenet_forward.1} parent=1 // pred_region
      _
    $region13: #{custom_typenet_forward.1} parent=1 // pred_fallthru
      _
    // Predicated region
    $region14: #{custom_typenet_forward.1} parent=1 // pred_check
      _
    $region15: #{custom_typenet_forward.1} parent=1 // pred_check_branch
      %24 = sbr.rel (0) target = $region17
    $region16: #{custom_typenet_forward.1} parent=1 // pred_region
      _
    $region17: #{custom_typenet_forward.1} parent=1 // pred_fallthru
      _
    // Predicated region
    $region18: #{custom_typenet_forward.1} parent=1 // pred_check
      _
    $region19: #{custom_typenet_forward.1} parent=1 // pred_check_branch
      %26 = sbr.rel (0) target = $region21
    $region20: #{custom_typenet_forward.1} parent=1 // pred_region
      _
    $region21: #{custom_typenet_forward.1} parent=1 // pred_fallthru
      _
    // Predicated region
    $region22: #{custom_typenet_forward.1} parent=1 // pred_check
      _
    $region23: #{custom_typenet_forward.1} parent=1 // pred_check_branch
      %28 = sbr.rel (0) target = $region25
    $region24: #{custom_typenet_forward.1} parent=1 // pred_region
      %s30 = ssub.s32 2048, 2048
      %31 = vsyncadd [#allocation3], %s30
      %s32 = sshll.u32 [#allocation2], 4
      %s33 = int_to_ptr.vmem [resolvable:$true] %s32
      %38 = dma.hbm_to_vmem [thread:$0]  %s5, 2048, %s33, [#allocation3], 256, 256, 16
    $region25: #{custom_typenet_forward.1} parent=1 // pred_fallthru
      _
    // Predicated region
    $region26: #{custom_typenet_forward.1} parent=1 // pred_check
      _
    $region27: #{custom_typenet_forward.1} parent=1 // pred_check_branch
      %40 = sbr.rel (0) target = $region29
    $region28: #{custom_typenet_forward.1} parent=1 // pred_region
      %s42 = ssub.s32 2048, 2048
      %43 = vsyncadd [#allocation5], %s42
      %s44 = sshll.u32 [#allocation4], 4
      %s45 = int_to_ptr.vmem [resolvable:$true] %s44
      %50 = dma.hbm_to_vmem [thread:$0]  %s6, 2048, %s45, [#allocation5], 256, 256, 16
    $region29: #{custom_typenet_forward.1} parent=1 // pred_fallthru
      _
    // Predicated region
    $region30: #{custom_typenet_forward.1} parent=1 // pred_check
      _
    $region31: #{custom_typenet_forward.1} parent=1 // pred_check_branch
      %52 = sbr.rel (0) target = $region33
    $region32: #{custom_typenet_forward.1} parent=1 // pred_region
      _
    $region33: #{custom_typenet_forward.1} parent=1 // pred_fallthru
      _
    // Predicated region
    $region34: #{custom_typenet_forward.1} parent=1 // pred_check
      _
    $region35: #{custom_typenet_forward.1} parent=1 // pred_check_branch
      %54 = sbr.rel (0) target = $region37
    $region36: #{custom_typenet_forward.1} parent=1 // pred_region
      _
    $region37: #{custom_typenet_forward.1} parent=1 // pred_fallthru
      _
    // Predicated region
    $region38: #{custom_typenet_forward.1} parent=1 // pred_check
      _
    $region39: #{custom_typenet_forward.1} parent=1 // pred_check_branch
      %56 = sbr.rel (0) target = $region41
    $region40: #{custom_typenet_forward.1} parent=1 // pred_region
      _
    $region41: #{custom_typenet_forward.1} parent=1 // pred_fallthru
      _
    // Predicated region
    $region42: #{custom_typenet_forward.1} parent=1 // pred_check
      _
    $region43: #{custom_typenet_forward.1} parent=1 // pred_check_branch
      %58 = sbr.rel (0) target = $region45
    $region44: #{custom_typenet_forward.1} parent=1 // pred_region
      %59 = dma.done [#allocation3], 2048
    $region45: #{custom_typenet_forward.1} parent=1 // pred_fallthru
      _
    // Predicated region
    $region46: #{custom_typenet_forward.1} parent=1 // pred_check
      _
    $region47: #{custom_typenet_forward.1} parent=1 // pred_check_branch
      %61 = sbr.rel (0) target = $region49
    $region48: #{custom_typenet_forward.1} parent=1 // pred_region
      %62 = dma.done [#allocation5], 2048
    $region49: #{custom_typenet_forward.1} parent=1 // pred_fallthru
      _
    %v63 = vld [vmem:[%s4] sm:$0xff]
    %v64 = vld [vmem:[%s4 + $0x8] sm:$0xff]
    %v65 = vld [vmem:[%s4 + $0x10] sm:$0xff]
    %v66 = vld [vmem:[%s4 + $0x18] sm:$0xff]
    %v67 = vld [vmem:[%s4 + $0x20] sm:$0xff]
    %v68 = vld [vmem:[%s4 + $0x28] sm:$0xff]
    %v69 = vld [vmem:[%s4 + $0x30] sm:$0xff]
    %v70 = vld [vmem:[%s4 + $0x38] sm:$0xff]
    %v71 = vld [vmem:[%s4 + $0x40] sm:$0xff]
    %v72 = vld [vmem:[%s4 + $0x48] sm:$0xff]
    %v73 = vld [vmem:[%s4 + $0x50] sm:$0xff]
    %v74 = vld [vmem:[%s4 + $0x58] sm:$0xff]
    %v75 = vld [vmem:[%s4 + $0x60] sm:$0xff]
    %v76 = vld [vmem:[%s4 + $0x68] sm:$0xff]
    %v77 = vld [vmem:[%s4 + $0x70] sm:$0xff]
    %v78 = vld [vmem:[%s4 + $0x78] sm:$0xff]
    %v79 = vld [vmem:[#allocation2] sm:$0xff]
    %v80 = vld [vmem:[#allocation2 + $0x8] sm:$0xff]
    %v81 = vld [vmem:[#allocation2 + $0x10] sm:$0xff]
    %v82 = vld [vmem:[#allocation2 + $0x18] sm:$0xff]
    %v83 = vld [vmem:[#allocation2 + $0x20] sm:$0xff]
    %v84 = vld [vmem:[#allocation2 + $0x28] sm:$0xff]
    %v85 = vld [vmem:[#allocation2 + $0x30] sm:$0xff]
    %v86 = vld [vmem:[#allocation2 + $0x38] sm:$0xff]
    %v87 = vld [vmem:[#allocation2 + $0x40] sm:$0xff]
    %v88 = vld [vmem:[#allocation2 + $0x48] sm:$0xff]
    %v89 = vld [vmem:[#allocation2 + $0x50] sm:$0xff]
    %v90 = vld [vmem:[#allocation2 + $0x58] sm:$0xff]
    %v91 = vld [vmem:[#allocation2 + $0x60] sm:$0xff]
    %v92 = vld [vmem:[#allocation2 + $0x68] sm:$0xff]
    %v93 = vld [vmem:[#allocation2 + $0x70] sm:$0xff]
    %v94 = vld [vmem:[#allocation2 + $0x78] sm:$0xff]
    %v95 = vld [vmem:[#allocation4] sm:$0xff]
    %v96 = vld [vmem:[#allocation4 + $0x8] sm:$0xff]
    %v97 = vld [vmem:[#allocation4 + $0x10] sm:$0xff]
    %v98 = vld [vmem:[#allocation4 + $0x18] sm:$0xff]
    %v99 = vld [vmem:[#allocation4 + $0x20] sm:$0xff]
    %v100 = vld [vmem:[#allocation4 + $0x28] sm:$0xff]
    %v101 = vld [vmem:[#allocation4 + $0x30] sm:$0xff]
    %v102 = vld [vmem:[#allocation4 + $0x38] sm:$0xff]
    %v103 = vld [vmem:[#allocation4 + $0x40] sm:$0xff]
    %v104 = vld [vmem:[#allocation4 + $0x48] sm:$0xff]
    %v105 = vld [vmem:[#allocation4 + $0x50] sm:$0xff]
    %v106 = vld [vmem:[#allocation4 + $0x58] sm:$0xff]
    %v107 = vld [vmem:[#allocation4 + $0x60] sm:$0xff]
    %v108 = vld [vmem:[#allocation4 + $0x68] sm:$0xff]
    %v109 = vld [vmem:[#allocation4 + $0x70] sm:$0xff]
    %v110 = vld [vmem:[#allocation4 + $0x78] sm:$0xff]
    %v111 = vld [vmem:[%s7] sm:$0x3]
    %v112 = vld [vmem:[%s1] sm:$0x3]
    %v113 = vld [vmem:[%s0] sm:$0xff]
    %v114 = vld [vmem:[%s0 + $0x8] sm:$0xff]
    %v115 = vld [vmem:[%s2] sm:$0xff]
    %v116 = vld [vmem:[%s2 + $0x8] sm:$0xff]
    %v117 = vld [vmem:[%s2 + $0x10] sm:$0xff]
    %v118 = vld [vmem:[%s2 + $0x18] sm:$0xff]
    %v119 = vld [vmem:[%s3] sm:$0x3]
    %v121 = vlaneseq
    %v122 = vshrl.u32 %v121, 7
    %v123 = vsub.s32 0, %v122
    %v124 = vrot.slane %v119, %v123
    %v125 = vlaneseq
    %v126 = vshrl.u32 %v125, 7
    %v127 = vsub.s32 1, %v126
    %v128 = vrot.slane %v119, %v127
    %vm131 = vcmask 130048
    %v133 = vsel %vm131, %v113, 0
    %v136 = vsel %vm131, %v114, 0
    %138 = vmatprep.subr.mxu0 0.0
    %139 = vmatpush1.msra.mxu0 0.0
    %140 = vmatprep.subr.mxu0 0.0
    %141 = vmatpush1.msra.mxu0 0.0
    %142 = vmatprep.subr.mxu0 0.0
    %143 = vmatpush1.msra.mxu0 0.0
    %144 = vmatprep.subr.mxu0 0.0
    %145 = vmatpush1.msra.mxu0 0.0
    %146 = vmatprep.subr.mxu0 0.0
    %147 = vmatpush1.msra.mxu0 0.0
    %148 = vmatprep.subr.mxu0 0.0
    %149 = vmatpush1.msra.mxu0 0.0
    %150 = vmatprep.subr.mxu0 0.0
    %151 = vmatpush1.msra.mxu0 0.0
    %152 = vmatprep.subr.mxu0 0.0
    %153 = vmatpush1.msra.mxu0 0.0
    %154 = vmatprep.subr.mxu0 0.0
    %155 = vmatpush1.msra.mxu0 0.0
    %156 = vmatprep.subr.mxu0 0.0
    %157 = vmatpush1.msra.mxu0 0.0
    %158 = vmatprep.subr.mxu0 0.0
    %159 = vmatpush1.msra.mxu0 0.0
    %160 = vmatprep.subr.mxu0 0.0
    %161 = vmatpush1.msra.mxu0 0.0
    %162 = vmatprep.subr.mxu0 0.0
    %163 = vmatpush1.msra.mxu0 0.0
    %164 = vmatprep.subr.mxu0 0.0
    %165 = vmatpush1.msra.mxu0 0.0
    %166 = vmatprep.subr.mxu0 %v118
    %167 = vmatpush1.msra.mxu0 %v117
    %168 = vmatprep.subr.mxu0 %v116
    %169 = vmatpush1.msra.mxu0 %v115
    %170 = vmatprep.subr.mxu0 0.0
    %171 = vmatpush2.msra.mxu0 0.0
    %172 = vmatprep.subr.mxu0 0.0
    %173 = vmatpush2.msra.mxu0 0.0
    %174 = vmatprep.subr.mxu0 0.0
    %175 = vmatpush2.msra.mxu0 0.0
    %176 = vmatprep.subr.mxu0 0.0
    %177 = vmatpush2.msra.mxu0 0.0
    %178 = vmatprep.subr.mxu0 0.0
    %179 = vmatpush2.msra.mxu0 0.0
    %180 = vmatprep.subr.mxu0 0.0
    %181 = vmatpush2.msra.mxu0 0.0
    %182 = vmatprep.subr.mxu0 0.0
    %183 = vmatpush2.msra.mxu0 0.0
    %184 = vmatprep.subr.mxu0 0.0
    %185 = vmatpush2.msra.mxu0 0.0
    %186 = vmatprep.subr.mxu0 0.0
    %187 = vmatpush2.msra.mxu0 0.0
    %188 = vmatprep.subr.mxu0 0.0
    %189 = vmatpush2.msra.mxu0 0.0
    %190 = vmatprep.subr.mxu0 0.0
    %191 = vmatpush2.msra.mxu0 0.0
    %192 = vmatprep.subr.mxu0 0.0
    %193 = vmatpush2.msra.mxu0 0.0
    %194 = vmatprep.subr.mxu0 0.0
    %195 = vmatpush2.msra.mxu0 0.0
    %196 = vmatprep.subr.mxu0 0.0
    %197 = vmatpush2.msra.mxu0 0.0
    %198 = vmatprep.subr.mxu0 0.0
    %199 = vmatpush2.msra.mxu0 0.0
    %200 = vmatprep.subr.mxu0 0.0
    %201 = vmatpush2.msra.mxu0 0.0
    %202 = vmatprep.mubr.f32.mxu0 0.0
    %203 = vmatmul.mubr.f32.gmra.mxu0 %v133
    %v204 = vpop.f32.mrf.mxu0
    %v205 = vadd.f32 %v124, %v204
    %v206 = vpop.f32.mrf.mxu0
    %v207 = vadd.f32 %v128, %v206
    %208 = vmatprep.mubr.f32.mxu0 0.0
    %209 = vmatmul.mubr.f32.gmra.mxu0 %v136
    %v210 = vpop.f32.mrf.mxu0
    %v211 = vadd.f32 %v124, %v210
    %v212 = vpop.f32.mrf.mxu0
    %v213 = vadd.f32 %v128, %v212
    %214 = vdwg.mxu0
    %vm215 = vcmask 523264
    %v217 = vsel %vm215, 0.0, 0
    %219 = vmatprep.subr.mxu0 0.0
    %220 = vmatpush1.msra.mxu0 0.0
    %221 = vmatprep.subr.mxu0 0.0
    %222 = vmatpush1.msra.mxu0 0.0
    %223 = vmatprep.subr.mxu0 0.0
    %224 = vmatpush1.msra.mxu0 0.0
    %225 = vmatprep.subr.mxu0 0.0
    %226 = vmatpush1.msra.mxu0 0.0
    %227 = vmatprep.subr.mxu0 0.0
    %228 = vmatpush1.msra.mxu0 0.0
    %229 = vmatprep.subr.mxu0 0.0
    %230 = vmatpush1.msra.mxu0 0.0
    %231 = vmatprep.subr.mxu0 0.0
    %232 = vmatpush1.msra.mxu0 0.0
    %233 = vmatprep.subr.mxu0 0.0
    %234 = vmatpush1.msra.mxu0 0.0
    %235 = vmatprep.subr.mxu0 %v78
    %236 = vmatpush1.msra.mxu0 %v77
    %237 = vmatprep.subr.mxu0 %v76
    %238 = vmatpush1.msra.mxu0 %v75
    %239 = vmatprep.subr.mxu0 %v74
    %240 = vmatpush1.msra.mxu0 %v73
    %241 = vmatprep.subr.mxu0 %v72
    %242 = vmatpush1.msra.mxu0 %v71
    %243 = vmatprep.subr.mxu0 %v70
    %244 = vmatpush1.msra.mxu0 %v69
    %245 = vmatprep.subr.mxu0 %v68
    %246 = vmatpush1.msra.mxu0 %v67
    %247 = vmatprep.subr.mxu0 %v66
    %248 = vmatpush1.msra.mxu0 %v65
    %249 = vmatprep.subr.mxu0 %v64
    %250 = vmatpush1.msra.mxu0 %v63
    %251 = vmatprep.subr.mxu0 0.0
    %252 = vmatpush2.msra.mxu0 0.0
    %253 = vmatprep.subr.mxu0 0.0
    %254 = vmatpush2.msra.mxu0 0.0
    %255 = vmatprep.subr.mxu0 0.0
    %256 = vmatpush2.msra.mxu0 0.0
    %257 = vmatprep.subr.mxu0 0.0
    %258 = vmatpush2.msra.mxu0 0.0
    %259 = vmatprep.subr.mxu0 0.0
    %260 = vmatpush2.msra.mxu0 0.0
    %261 = vmatprep.subr.mxu0 0.0
    %262 = vmatpush2.msra.mxu0 0.0
    %263 = vmatprep.subr.mxu0 0.0
    %264 = vmatpush2.msra.mxu0 0.0
    %265 = vmatprep.subr.mxu0 0.0
    %266 = vmatpush2.msra.mxu0 0.0
    %267 = vmatprep.subr.mxu0 0.0
    %268 = vmatpush2.msra.mxu0 0.0
    %269 = vmatprep.subr.mxu0 0.0
    %270 = vmatpush2.msra.mxu0 0.0
    %271 = vmatprep.subr.mxu0 0.0
    %272 = vmatpush2.msra.mxu0 0.0
    %273 = vmatprep.subr.mxu0 0.0
    %274 = vmatpush2.msra.mxu0 0.0
    %275 = vmatprep.subr.mxu0 0.0
    %276 = vmatpush2.msra.mxu0 0.0
    %277 = vmatprep.subr.mxu0 0.0
    %278 = vmatpush2.msra.mxu0 0.0
    %279 = vmatprep.subr.mxu0 0.0
    %280 = vmatpush2.msra.mxu0 0.0
    %281 = vmatprep.subr.mxu0 0.0
    %282 = vmatpush2.msra.mxu0 0.0
    %283 = vmatprep.mubr.f32.mxu0 0.0
    %284 = vmatmul.mubr.f32.gmra.mxu0 %v217
    %v285 = vpop.f32.mrf.mxu0
    %v286 = vadd.f32 0.0, %v285
    %v287 = vpop.f32.mrf.mxu0
    %v288 = vadd.f32 0.0, %v287
    %289 = vdwg.mxu0
    %v290 = vadd.f32 %v205, %v286
    %v291 = vadd.f32 %v207, %v288
    %v292 = vxor.u32 %v290, 2147483648
    %v293 = vxor.u32 %v291, 2147483648
    %v294 = vmul.f32 %v292, 1.442695
    %v295 = vpow.pop %v294
    %v296 = vmul.f32 %v293, 1.442695
    %v297 = vpow.pop %v296
    %v298 = vadd.f32 %v295, 1.0
    %v299 = vadd.f32 %v297, 1.0
    %v300 = vrcp.pop %v298
    %v301 = vmul.f32 1.0, %v300
    %v302 = vrcp.pop %v299
    %v303 = vmul.f32 1.0, %v302
    %v304 = vmul.f32 %v303, 2.0
    %v305 = vsub.f32 %v304, 1.0
    %v306 = vmul.f32 %v301, 0.0
    %v307 = vmul.f32 %v301, %v305
    %309 = vrot.lane.b32.xlu0 %v307, 64
    %v310 = vpop.permute.xlu0 %309
    %v312 = vadd.f32 %v306, %v310
    %v313 = vtanh.pop %v312
    %v314 = vmul.f32 %v303, %v313
    %315 = vmatprep.subr.mxu0 0.0
    %316 = vmatpush1.msra.mxu0 0.0
    %317 = vmatprep.subr.mxu0 0.0
    %318 = vmatpush1.msra.mxu0 0.0
    %319 = vmatprep.subr.mxu0 0.0
    %320 = vmatpush1.msra.mxu0 0.0
    %321 = vmatprep.subr.mxu0 0.0
    %322 = vmatpush1.msra.mxu0 0.0
    %323 = vmatprep.subr.mxu0 0.0
    %324 = vmatpush1.msra.mxu0 0.0
    %325 = vmatprep.subr.mxu0 0.0
    %326 = vmatpush1.msra.mxu0 0.0
    %327 = vmatprep.subr.mxu0 0.0
    %328 = vmatpush1.msra.mxu0 0.0
    %329 = vmatprep.subr.mxu0 0.0
    %330 = vmatpush1.msra.mxu0 0.0
    %331 = vmatprep.subr.mxu0 %v110
    %332 = vmatpush1.msra.mxu0 %v109
    %333 = vmatprep.subr.mxu0 %v108
    %334 = vmatpush1.msra.mxu0 %v107
    %335 = vmatprep.subr.mxu0 %v106
    %336 = vmatpush1.msra.mxu0 %v105
    %337 = vmatprep.subr.mxu0 %v104
    %338 = vmatpush1.msra.mxu0 %v103
    %339 = vmatprep.subr.mxu0 %v102
    %340 = vmatpush1.msra.mxu0 %v101
    %341 = vmatprep.subr.mxu0 %v100
    %342 = vmatpush1.msra.mxu0 %v99
    %343 = vmatprep.subr.mxu0 %v98
    %344 = vmatpush1.msra.mxu0 %v97
    %345 = vmatprep.subr.mxu0 %v96
    %346 = vmatpush1.msra.mxu0 %v95
    %347 = vmatprep.subr.mxu0 0.0
    %348 = vmatpush2.msra.mxu0 0.0
    %349 = vmatprep.subr.mxu0 0.0
    %350 = vmatpush2.msra.mxu0 0.0
    %351 = vmatprep.subr.mxu0 0.0
    %352 = vmatpush2.msra.mxu0 0.0
    %353 = vmatprep.subr.mxu0 0.0
    %354 = vmatpush2.msra.mxu0 0.0
    %355 = vmatprep.subr.mxu0 0.0
    %356 = vmatpush2.msra.mxu0 0.0
    %357 = vmatprep.subr.mxu0 0.0
    %358 = vmatpush2.msra.mxu0 0.0
    %359 = vmatprep.subr.mxu0 0.0
    %360 = vmatpush2.msra.mxu0 0.0
    %361 = vmatprep.subr.mxu0 0.0
    %362 = vmatpush2.msra.mxu0 0.0
    %363 = vmatprep.subr.mxu0 0.0
    %364 = vmatpush2.msra.mxu0 0.0
    %365 = vmatprep.subr.mxu0 0.0
    %366 = vmatpush2.msra.mxu0 0.0
    %367 = vmatprep.subr.mxu0 0.0
    %368 = vmatpush2.msra.mxu0 0.0
    %369 = vmatprep.subr.mxu0 0.0
    %370 = vmatpush2.msra.mxu0 0.0
    %371 = vmatprep.subr.mxu0 0.0
    %372 = vmatpush2.msra.mxu0 0.0
    %373 = vmatprep.subr.mxu0 0.0
    %374 = vmatpush2.msra.mxu0 0.0
    %375 = vmatprep.subr.mxu0 0.0
    %376 = vmatpush2.msra.mxu0 0.0
    %377 = vmatprep.subr.mxu0 0.0
    %378 = vmatpush2.msra.mxu0 0.0
    %379 = vmatprep.mubr.f32.mxu0 0.0
    %380 = vmatmul.mubr.f32.gmra.mxu0 %v217
    %v381 = vpop.f32.mrf.mxu0
    %v382 = vadd.f32 0.0, %v381
    %v383 = vpop.f32.mrf.mxu0
    %v384 = vadd.f32 0.0, %v383
    %385 = vdwg.mxu0
    %387 = vrot.lane.b32.xlu0 %v314, 64
    %v388 = vpop.permute.xlu0 %387
    %v389 = vsel %vm215, %v388, 0
    %391 = vmatprep.subr.mxu0 0.0
    %392 = vmatpush1.msra.mxu0 0.0
    %393 = vmatprep.subr.mxu0 0.0
    %394 = vmatpush1.msra.mxu0 0.0
    %395 = vmatprep.subr.mxu0 0.0
    %396 = vmatpush1.msra.mxu0 0.0
    %397 = vmatprep.subr.mxu0 0.0
    %398 = vmatpush1.msra.mxu0 0.0
    %399 = vmatprep.subr.mxu0 0.0
    %400 = vmatpush1.msra.mxu0 0.0
    %401 = vmatprep.subr.mxu0 0.0
    %402 = vmatpush1.msra.mxu0 0.0
    %403 = vmatprep.subr.mxu0 0.0
    %404 = vmatpush1.msra.mxu0 0.0
    %405 = vmatprep.subr.mxu0 0.0
    %406 = vmatpush1.msra.mxu0 0.0
    %407 = vmatprep.subr.mxu0 %v94
    %408 = vmatpush1.msra.mxu0 %v93
    %409 = vmatprep.subr.mxu0 %v92
    %410 = vmatpush1.msra.mxu0 %v91
    %411 = vmatprep.subr.mxu0 %v90
    %412 = vmatpush1.msra.mxu0 %v89
    %413 = vmatprep.subr.mxu0 %v88
    %414 = vmatpush1.msra.mxu0 %v87
    %415 = vmatprep.subr.mxu0 %v86
    %416 = vmatpush1.msra.mxu0 %v85
    %417 = vmatprep.subr.mxu0 %v84
    %418 = vmatpush1.msra.mxu0 %v83
    %419 = vmatprep.subr.mxu0 %v82
    %420 = vmatpush1.msra.mxu0 %v81
    %421 = vmatprep.subr.mxu0 %v80
    %422 = vmatpush1.msra.mxu0 %v79
    %423 = vmatprep.subr.mxu0 0.0
    %424 = vmatpush2.msra.mxu0 0.0
    %425 = vmatprep.subr.mxu0 0.0
    %426 = vmatpush2.msra.mxu0 0.0
    %427 = vmatprep.subr.mxu0 0.0
    %428 = vmatpush2.msra.mxu0 0.0
    %429 = vmatprep.subr.mxu0 0.0
    %430 = vmatpush2.msra.mxu0 0.0
    %431 = vmatprep.subr.mxu0 0.0
    %432 = vmatpush2.msra.mxu0 0.0
    %433 = vmatprep.subr.mxu0 0.0
    %434 = vmatpush2.msra.mxu0 0.0
    %435 = vmatprep.subr.mxu0 0.0
    %436 = vmatpush2.msra.mxu0 0.0
    %437 = vmatprep.subr.mxu0 0.0
    %438 = vmatpush2.msra.mxu0 0.0
    %439 = vmatprep.subr.mxu0 0.0
    %440 = vmatpush2.msra.mxu0 0.0
    %441 = vmatprep.subr.mxu0 0.0
    %442 = vmatpush2.msra.mxu0 0.0
    %443 = vmatprep.subr.mxu0 0.0
    %444 = vmatpush2.msra.mxu0 0.0
    %445 = vmatprep.subr.mxu0 0.0
    %446 = vmatpush2.msra.mxu0 0.0
    %447 = vmatprep.subr.mxu0 0.0
    %448 = vmatpush2.msra.mxu0 0.0
    %449 = vmatprep.subr.mxu0 0.0
    %450 = vmatpush2.msra.mxu0 0.0
    %451 = vmatprep.subr.mxu0 0.0
    %452 = vmatpush2.msra.mxu0 0.0
    %453 = vmatprep.subr.mxu0 0.0
    %454 = vmatpush2.msra.mxu0 0.0
    %455 = vmatprep.mubr.f32.mxu0 0.0
    %456 = vmatmul.mubr.f32.gmra.mxu0 %v389
    %v457 = vpop.f32.mrf.mxu0
    %v458 = vadd.f32 %v382, %v457
    %v459 = vpop.f32.mrf.mxu0
    %v460 = vadd.f32 %v384, %v459
    %461 = vdwg.mxu0
    %v463 = vlaneseq
    %v464 = vshrl.u32 %v463, 7
    %v465 = vsub.s32 0, %v464
    %v466 = vrot.slane %v111, %v465
    %v467 = vlaneseq
    %v468 = vshrl.u32 %v467, 7
    %v469 = vsub.s32 1, %v468
    %v470 = vrot.slane %v111, %v469
    %v473 = vadd.f32 %v458, %v466
    %v474 = vadd.f32 %v460, %v470
    %v475 = vxor.u32 %v473, 2147483648
    %v476 = vxor.u32 %v474, 2147483648
    %v477 = vmul.f32 %v475, 1.442695
    %v478 = vpow.pop %v477
    %v479 = vmul.f32 %v476, 1.442695
    %v480 = vpow.pop %v479
    %v481 = vadd.f32 %v478, 1.0
    %v482 = vadd.f32 %v480, 1.0
    %v483 = vrcp.pop %v481
    %v484 = vmul.f32 1.0, %v483
    %v485 = vrcp.pop %v482
    %v486 = vmul.f32 1.0, %v485
    %v487 = vmul.f32 %v486, 2.0
    %v488 = vsub.f32 %v487, 1.0
    %v489 = vmul.f32 %v484, 0.0
    %v490 = vmul.f32 %v484, %v488
    %492 = vrot.lane.b32.xlu0 %v490, 64
    %v493 = vpop.permute.xlu0 %492
    %v495 = vadd.f32 %v489, %v493
    %v496 = vtanh.pop %v495
    %v497 = vmul.f32 %v486, %v496
    %vm498 = vcmp.gt.s32.totalorder %v112, 0
    %500 = vrot.lane.b32.xlu0 %v497, 64
    %v501 = vpop.permute.xlu0 %500
    %v503 = vsel %vm498, %v501, 0.0
    %504 = vmatprep.subr.mxu0 0.0
    %505 = vmatpush1.msra.mxu0 0.0
    %506 = vmatprep.subr.mxu0 0.0
    %507 = vmatpush1.msra.mxu0 0.0
    %508 = vmatprep.subr.mxu0 0.0
    %509 = vmatpush1.msra.mxu0 0.0
    %510 = vmatprep.subr.mxu0 0.0
    %511 = vmatpush1.msra.mxu0 0.0
    %512 = vmatprep.subr.mxu0 0.0
    %513 = vmatpush1.msra.mxu0 0.0
    %514 = vmatprep.subr.mxu0 0.0
    %515 = vmatpush1.msra.mxu0 0.0
    %516 = vmatprep.subr.mxu0 0.0
    %517 = vmatpush1.msra.mxu0 0.0
    %518 = vmatprep.subr.mxu0 0.0
    %519 = vmatpush1.msra.mxu0 0.0
    %520 = vmatprep.subr.mxu0 %v78
    %521 = vmatpush1.msra.mxu0 %v77
    %522 = vmatprep.subr.mxu0 %v76
    %523 = vmatpush1.msra.mxu0 %v75
    %524 = vmatprep.subr.mxu0 %v74
    %525 = vmatpush1.msra.mxu0 %v73
    %526 = vmatprep.subr.mxu0 %v72
    %527 = vmatpush1.msra.mxu0 %v71
    %528 = vmatprep.subr.mxu0 %v70
    %529 = vmatpush1.msra.mxu0 %v69
    %530 = vmatprep.subr.mxu0 %v68
    %531 = vmatpush1.msra.mxu0 %v67
    %532 = vmatprep.subr.mxu0 %v66
    %533 = vmatpush1.msra.mxu0 %v65
    %534 = vmatprep.subr.mxu0 %v64
    %535 = vmatpush1.msra.mxu0 %v63
    %536 = vmatprep.subr.mxu0 0.0
    %537 = vmatpush2.msra.mxu0 0.0
    %538 = vmatprep.subr.mxu0 0.0
    %539 = vmatpush2.msra.mxu0 0.0
    %540 = vmatprep.subr.mxu0 0.0
    %541 = vmatpush2.msra.mxu0 0.0
    %542 = vmatprep.subr.mxu0 0.0
    %543 = vmatpush2.msra.mxu0 0.0
    %544 = vmatprep.subr.mxu0 0.0
    %545 = vmatpush2.msra.mxu0 0.0
    %546 = vmatprep.subr.mxu0 0.0
    %547 = vmatpush2.msra.mxu0 0.0
    %548 = vmatprep.subr.mxu0 0.0
    %549 = vmatpush2.msra.mxu0 0.0
    %550 = vmatprep.subr.mxu0 0.0
    %551 = vmatpush2.msra.mxu0 0.0
    %552 = vmatprep.subr.mxu0 0.0
    %553 = vmatpush2.msra.mxu0 0.0
    %554 = vmatprep.subr.mxu0 0.0
    %555 = vmatpush2.msra.mxu0 0.0
    %556 = vmatprep.subr.mxu0 0.0
    %557 = vmatpush2.msra.mxu0 0.0
    %558 = vmatprep.subr.mxu0 0.0
    %559 = vmatpush2.msra.mxu0 0.0
    %560 = vmatprep.subr.mxu0 0.0
    %561 = vmatpush2.msra.mxu0 0.0
    %562 = vmatprep.subr.mxu0 0.0
    %563 = vmatpush2.msra.mxu0 0.0
    %564 = vmatprep.subr.mxu0 0.0
    %565 = vmatpush2.msra.mxu0 0.0
    %566 = vmatprep.subr.mxu0 0.0
    %567 = vmatpush2.msra.mxu0 0.0
    %568 = vmatprep.mubr.f32.mxu0 0.0
    %569 = vmatmul.mubr.f32.gmra.mxu0 %v389
    %v570 = vpop.f32.mrf.mxu0
    %v571 = vadd.f32 0.0, %v570
    %v572 = vpop.f32.mrf.mxu0
    %v573 = vadd.f32 0.0, %v572
    %574 = vdwg.mxu0
    %v577 = vrot.slane %v571, 6
    %v578 = vrot.slane %v573, 6
    %v581 = vadd.f32 %v205, %v577
    %v582 = vadd.f32 %v207, %v578
    %v583 = vxor.u32 %v581, 2147483648
    %v584 = vxor.u32 %v582, 2147483648
    %v585 = vmul.f32 %v583, 1.442695
    %v586 = vpow.pop %v585
    %v587 = vmul.f32 %v584, 1.442695
    %v588 = vpow.pop %v587
    %v589 = vadd.f32 %v586, 1.0
    %v590 = vadd.f32 %v588, 1.0
    %v591 = vrcp.pop %v589
    %v592 = vmul.f32 1.0, %v591
    %v593 = vrcp.pop %v590
    %v594 = vmul.f32 1.0, %v593
    %v595 = vmul.f32 %v594, 2.0
    %v596 = vsub.f32 %v595, 1.0
    %v598 = vrot.slane %v312, 6
    %v600 = vmul.f32 %v592, %v598
    %v601 = vmul.f32 %v592, %v596
    %603 = vrot.lane.b32.xlu0 %v601, 64
    %v604 = vpop.permute.xlu0 %603
    %v606 = vadd.f32 %v600, %v604
    %v607 = vtanh.pop %v606
    %v608 = vmul.f32 %v594, %v607
    %v610 = vsel %vm215, %v503, 0
    %612 = vmatprep.subr.mxu0 0.0
    %613 = vmatpush1.msra.mxu0 0.0
    %614 = vmatprep.subr.mxu0 0.0
    %615 = vmatpush1.msra.mxu0 0.0
    %616 = vmatprep.subr.mxu0 0.0
    %617 = vmatpush1.msra.mxu0 0.0
    %618 = vmatprep.subr.mxu0 0.0
    %619 = vmatpush1.msra.mxu0 0.0
    %620 = vmatprep.subr.mxu0 0.0
    %621 = vmatpush1.msra.mxu0 0.0
    %622 = vmatprep.subr.mxu0 0.0
    %623 = vmatpush1.msra.mxu0 0.0
    %624 = vmatprep.subr.mxu0 0.0
    %625 = vmatpush1.msra.mxu0 0.0
    %626 = vmatprep.subr.mxu0 0.0
    %627 = vmatpush1.msra.mxu0 0.0
    %628 = vmatprep.subr.mxu0 %v110
    %629 = vmatpush1.msra.mxu0 %v109
    %630 = vmatprep.subr.mxu0 %v108
    %631 = vmatpush1.msra.mxu0 %v107
    %632 = vmatprep.subr.mxu0 %v106
    %633 = vmatpush1.msra.mxu0 %v105
    %634 = vmatprep.subr.mxu0 %v104
    %635 = vmatpush1.msra.mxu0 %v103
    %636 = vmatprep.subr.mxu0 %v102
    %637 = vmatpush1.msra.mxu0 %v101
    %638 = vmatprep.subr.mxu0 %v100
    %639 = vmatpush1.msra.mxu0 %v99
    %640 = vmatprep.subr.mxu0 %v98
    %641 = vmatpush1.msra.mxu0 %v97
    %642 = vmatprep.subr.mxu0 %v96
    %643 = vmatpush1.msra.mxu0 %v95
    %644 = vmatprep.subr.mxu0 0.0
    %645 = vmatpush2.msra.mxu0 0.0
    %646 = vmatprep.subr.mxu0 0.0
    %647 = vmatpush2.msra.mxu0 0.0
    %648 = vmatprep.subr.mxu0 0.0
    %649 = vmatpush2.msra.mxu0 0.0
    %650 = vmatprep.subr.mxu0 0.0
    %651 = vmatpush2.msra.mxu0 0.0
    %652 = vmatprep.subr.mxu0 0.0
    %653 = vmatpush2.msra.mxu0 0.0
    %654 = vmatprep.subr.mxu0 0.0
    %655 = vmatpush2.msra.mxu0 0.0
    %656 = vmatprep.subr.mxu0 0.0
    %657 = vmatpush2.msra.mxu0 0.0
    %658 = vmatprep.subr.mxu0 0.0
    %659 = vmatpush2.msra.mxu0 0.0
    %660 = vmatprep.subr.mxu0 0.0
    %661 = vmatpush2.msra.mxu0 0.0
    %662 = vmatprep.subr.mxu0 0.0
    %663 = vmatpush2.msra.mxu0 0.0
    %664 = vmatprep.subr.mxu0 0.0
    %665 = vmatpush2.msra.mxu0 0.0
    %666 = vmatprep.subr.mxu0 0.0
    %667 = vmatpush2.msra.mxu0 0.0
    %668 = vmatprep.subr.mxu0 0.0
    %669 = vmatpush2.msra.mxu0 0.0
    %670 = vmatprep.subr.mxu0 0.0
    %671 = vmatpush2.msra.mxu0 0.0
    %672 = vmatprep.subr.mxu0 0.0
    %673 = vmatpush2.msra.mxu0 0.0
    %674 = vmatprep.subr.mxu0 0.0
    %675 = vmatpush2.msra.mxu0 0.0
    %676 = vmatprep.mubr.f32.mxu0 0.0
    %677 = vmatmul.mubr.f32.gmra.mxu0 %v610
    %v678 = vpop.f32.mrf.mxu0
    %v679 = vadd.f32 0.0, %v678
    %v680 = vpop.f32.mrf.mxu0
    %v681 = vadd.f32 0.0, %v680
    %682 = vdwg.mxu0
    %v684 = vrot.slane %v608, 2
    %685 = vrot.lane.b32.xlu0 %v684, 64
    %v686 = vpop.permute.xlu0 %685
    %v687 = vsel %vm215, %v686, 0
    %689 = vmatprep.subr.mxu0 0.0
    %690 = vmatpush1.msra.mxu0 0.0
    %691 = vmatprep.subr.mxu0 0.0
    %692 = vmatpush1.msra.mxu0 0.0
    %693 = vmatprep.subr.mxu0 0.0
    %694 = vmatpush1.msra.mxu0 0.0
    %695 = vmatprep.subr.mxu0 0.0
    %696 = vmatpush1.msra.mxu0 0.0
    %697 = vmatprep.subr.mxu0 0.0
    %698 = vmatpush1.msra.mxu0 0.0
    %699 = vmatprep.subr.mxu0 0.0
    %700 = vmatpush1.msra.mxu0 0.0
    %701 = vmatprep.subr.mxu0 0.0
    %702 = vmatpush1.msra.mxu0 0.0
    %703 = vmatprep.subr.mxu0 0.0
    %704 = vmatpush1.msra.mxu0 0.0
    %705 = vmatprep.subr.mxu0 %v94
    %706 = vmatpush1.msra.mxu0 %v93
    %707 = vmatprep.subr.mxu0 %v92
    %708 = vmatpush1.msra.mxu0 %v91
    %709 = vmatprep.subr.mxu0 %v90
    %710 = vmatpush1.msra.mxu0 %v89
    %711 = vmatprep.subr.mxu0 %v88
    %712 = vmatpush1.msra.mxu0 %v87
    %713 = vmatprep.subr.mxu0 %v86
    %714 = vmatpush1.msra.mxu0 %v85
    %715 = vmatprep.subr.mxu0 %v84
    %716 = vmatpush1.msra.mxu0 %v83
    %717 = vmatprep.subr.mxu0 %v82
    %718 = vmatpush1.msra.mxu0 %v81
    %719 = vmatprep.subr.mxu0 %v80
    %720 = vmatpush1.msra.mxu0 %v79
    %721 = vmatprep.subr.mxu0 0.0
    %722 = vmatpush2.msra.mxu0 0.0
    %723 = vmatprep.subr.mxu0 0.0
    %724 = vmatpush2.msra.mxu0 0.0
    %725 = vmatprep.subr.mxu0 0.0
    %726 = vmatpush2.msra.mxu0 0.0
    %727 = vmatprep.subr.mxu0 0.0
    %728 = vmatpush2.msra.mxu0 0.0
    %729 = vmatprep.subr.mxu0 0.0
    %730 = vmatpush2.msra.mxu0 0.0
    %731 = vmatprep.subr.mxu0 0.0
    %732 = vmatpush2.msra.mxu0 0.0
    %733 = vmatprep.subr.mxu0 0.0
    %734 = vmatpush2.msra.mxu0 0.0
    %735 = vmatprep.subr.mxu0 0.0
    %736 = vmatpush2.msra.mxu0 0.0
    %737 = vmatprep.subr.mxu0 0.0
    %738 = vmatpush2.msra.mxu0 0.0
    %739 = vmatprep.subr.mxu0 0.0
    %740 = vmatpush2.msra.mxu0 0.0
    %741 = vmatprep.subr.mxu0 0.0
    %742 = vmatpush2.msra.mxu0 0.0
    %743 = vmatprep.subr.mxu0 0.0
    %744 = vmatpush2.msra.mxu0 0.0
    %745 = vmatprep.subr.mxu0 0.0
    %746 = vmatpush2.msra.mxu0 0.0
    %747 = vmatprep.subr.mxu0 0.0
    %748 = vmatpush2.msra.mxu0 0.0
    %749 = vmatprep.subr.mxu0 0.0
    %750 = vmatpush2.msra.mxu0 0.0
    %751 = vmatprep.subr.mxu0 0.0
    %752 = vmatpush2.msra.mxu0 0.0
    %753 = vmatprep.mubr.f32.mxu0 0.0
    %754 = vmatmul.mubr.f32.gmra.mxu0 %v687
    %v755 = vpop.f32.mrf.mxu0
    %v756 = vadd.f32 %v679, %v755
    %v757 = vpop.f32.mrf.mxu0
    %v758 = vadd.f32 %v681, %v757
    %759 = vdwg.mxu0
    %v760 = vadd.f32 %v756, %v466
    %v761 = vadd.f32 %v758, %v470
    %v762 = vxor.u32 %v760, 2147483648
    %v763 = vxor.u32 %v761, 2147483648
    %v764 = vmul.f32 %v762, 1.442695
    %v765 = vpow.pop %v764
    %v766 = vmul.f32 %v763, 1.442695
    %v767 = vpow.pop %v766
    %v768 = vadd.f32 %v765, 1.0
    %v769 = vadd.f32 %v767, 1.0
    %v770 = vrcp.pop %v768
    %v771 = vmul.f32 1.0, %v770
    %v772 = vrcp.pop %v769
    %v773 = vmul.f32 1.0, %v772
    %v774 = vmul.f32 %v773, 2.0
    %v775 = vsub.f32 %v774, 1.0
    %v776 = vmul.f32 %v771, %v495
    %v777 = vmul.f32 %v771, %v775
    %779 = vrot.lane.b32.xlu0 %v777, 64
    %v780 = vpop.permute.xlu0 %779
    %v782 = vadd.f32 %v776, %v780
    %v783 = vtanh.pop %v782
    %v784 = vmul.f32 %v773, %v783
    %vm785 = vcmp.gt.s32.totalorder %v112, 1
    %787 = vrot.lane.b32.xlu0 %v784, 64
    %v788 = vpop.permute.xlu0 %787
    %v790 = vsel %vm785, %v788, %v503
    %791 = vmatprep.subr.mxu0 0.0
    %792 = vmatpush1.msra.mxu0 0.0
    %793 = vmatprep.subr.mxu0 0.0
    %794 = vmatpush1.msra.mxu0 0.0
    %795 = vmatprep.subr.mxu0 0.0
    %796 = vmatpush1.msra.mxu0 0.0
    %797 = vmatprep.subr.mxu0 0.0
    %798 = vmatpush1.msra.mxu0 0.0
    %799 = vmatprep.subr.mxu0 0.0
    %800 = vmatpush1.msra.mxu0 0.0
    %801 = vmatprep.subr.mxu0 0.0
    %802 = vmatpush1.msra.mxu0 0.0
    %803 = vmatprep.subr.mxu0 0.0
    %804 = vmatpush1.msra.mxu0 0.0
    %805 = vmatprep.subr.mxu0 0.0
    %806 = vmatpush1.msra.mxu0 0.0
    %807 = vmatprep.subr.mxu0 %v78
    %808 = vmatpush1.msra.mxu0 %v77
    %809 = vmatprep.subr.mxu0 %v76
    %810 = vmatpush1.msra.mxu0 %v75
    %811 = vmatprep.subr.mxu0 %v74
    %812 = vmatpush1.msra.mxu0 %v73
    %813 = vmatprep.subr.mxu0 %v72
    %814 = vmatpush1.msra.mxu0 %v71
    %815 = vmatprep.subr.mxu0 %v70
    %816 = vmatpush1.msra.mxu0 %v69
    %817 = vmatprep.subr.mxu0 %v68
    %818 = vmatpush1.msra.mxu0 %v67
    %819 = vmatprep.subr.mxu0 %v66
    %820 = vmatpush1.msra.mxu0 %v65
    %821 = vmatprep.subr.mxu0 %v64
    %822 = vmatpush1.msra.mxu0 %v63
    %823 = vmatprep.subr.mxu0 0.0
    %824 = vmatpush2.msra.mxu0 0.0
    %825 = vmatprep.subr.mxu0 0.0
    %826 = vmatpush2.msra.mxu0 0.0
    %827 = vmatprep.subr.mxu0 0.0
    %828 = vmatpush2.msra.mxu0 0.0
    %829 = vmatprep.subr.mxu0 0.0
    %830 = vmatpush2.msra.mxu0 0.0
    %831 = vmatprep.subr.mxu0 0.0
    %832 = vmatpush2.msra.mxu0 0.0
    %833 = vmatprep.subr.mxu0 0.0
    %834 = vmatpush2.msra.mxu0 0.0
    %835 = vmatprep.subr.mxu0 0.0
    %836 = vmatpush2.msra.mxu0 0.0
    %837 = vmatprep.subr.mxu0 0.0
    %838 = vmatpush2.msra.mxu0 0.0
    %839 = vmatprep.subr.mxu0 0.0
    %840 = vmatpush2.msra.mxu0 0.0
    %841 = vmatprep.subr.mxu0 0.0
    %842 = vmatpush2.msra.mxu0 0.0
    %843 = vmatprep.subr.mxu0 0.0
    %844 = vmatpush2.msra.mxu0 0.0
    %845 = vmatprep.subr.mxu0 0.0
    %846 = vmatpush2.msra.mxu0 0.0
    %847 = vmatprep.subr.mxu0 0.0
    %848 = vmatpush2.msra.mxu0 0.0
    %849 = vmatprep.subr.mxu0 0.0
    %850 = vmatpush2.msra.mxu0 0.0
    %851 = vmatprep.subr.mxu0 0.0
    %852 = vmatpush2.msra.mxu0 0.0
    %853 = vmatprep.subr.mxu0 0.0
    %854 = vmatpush2.msra.mxu0 0.0
    %855 = vmatprep.mubr.f32.mxu0 0.0
    %856 = vmatmul.mubr.f32.gmra.mxu0 %v687
    %v857 = vpop.f32.mrf.mxu0
    %v858 = vadd.f32 0.0, %v857
    %v859 = vpop.f32.mrf.mxu0
    %v860 = vadd.f32 0.0, %v859
    %861 = vdwg.mxu0
    %v864 = vrot.slane %v858, 4
    %v865 = vrot.slane %v860, 4
    %v868 = vadd.f32 %v205, %v864
    %v869 = vadd.f32 %v207, %v865
    %v870 = vxor.u32 %v868, 2147483648
    %v871 = vxor.u32 %v869, 2147483648
    %v872 = vmul.f32 %v870, 1.442695
    %v873 = vpow.pop %v872
    %v874 = vmul.f32 %v871, 1.442695
    %v875 = vpow.pop %v874
    %v876 = vadd.f32 %v873, 1.0
    %v877 = vadd.f32 %v875, 1.0
    %v878 = vrcp.pop %v876
    %v879 = vmul.f32 1.0, %v878
    %v880 = vrcp.pop %v877
    %v881 = vmul.f32 1.0, %v880
    %v882 = vmul.f32 %v881, 2.0
    %v883 = vsub.f32 %v882, 1.0
    %v885 = vrot.slane %v606, 6
    %v887 = vmul.f32 %v879, %v885
    %v888 = vmul.f32 %v879, %v883
    %890 = vrot.lane.b32.xlu0 %v888, 64
    %v891 = vpop.permute.xlu0 %890
    %v893 = vadd.f32 %v887, %v891
    %v894 = vtanh.pop %v893
    %v895 = vmul.f32 %v881, %v894
    %v897 = vsel %vm215, %v790, 0
    %899 = vmatprep.subr.mxu0 0.0
    %900 = vmatpush1.msra.mxu0 0.0
    %901 = vmatprep.subr.mxu0 0.0
    %902 = vmatpush1.msra.mxu0 0.0
    %903 = vmatprep.subr.mxu0 0.0
    %904 = vmatpush1.msra.mxu0 0.0
    %905 = vmatprep.subr.mxu0 0.0
    %906 = vmatpush1.msra.mxu0 0.0
    %907 = vmatprep.subr.mxu0 0.0
    %908 = vmatpush1.msra.mxu0 0.0
    %909 = vmatprep.subr.mxu0 0.0
    %910 = vmatpush1.msra.mxu0 0.0
    %911 = vmatprep.subr.mxu0 0.0
    %912 = vmatpush1.msra.mxu0 0.0
    %913 = vmatprep.subr.mxu0 0.0
    %914 = vmatpush1.msra.mxu0 0.0
    %915 = vmatprep.subr.mxu0 %v110
    %916 = vmatpush1.msra.mxu0 %v109
    %917 = vmatprep.subr.mxu0 %v108
    %918 = vmatpush1.msra.mxu0 %v107
    %919 = vmatprep.subr.mxu0 %v106
    %920 = vmatpush1.msra.mxu0 %v105
    %921 = vmatprep.subr.mxu0 %v104
    %922 = vmatpush1.msra.mxu0 %v103
    %923 = vmatprep.subr.mxu0 %v102
    %924 = vmatpush1.msra.mxu0 %v101
    %925 = vmatprep.subr.mxu0 %v100
    %926 = vmatpush1.msra.mxu0 %v99
    %927 = vmatprep.subr.mxu0 %v98
    %928 = vmatpush1.msra.mxu0 %v97
    %929 = vmatprep.subr.mxu0 %v96
    %930 = vmatpush1.msra.mxu0 %v95
    %931 = vmatprep.subr.mxu0 0.0
    %932 = vmatpush2.msra.mxu0 0.0
    %933 = vmatprep.subr.mxu0 0.0
    %934 = vmatpush2.msra.mxu0 0.0
    %935 = vmatprep.subr.mxu0 0.0
    %936 = vmatpush2.msra.mxu0 0.0
    %937 = vmatprep.subr.mxu0 0.0
    %938 = vmatpush2.msra.mxu0 0.0
    %939 = vmatprep.subr.mxu0 0.0
    %940 = vmatpush2.msra.mxu0 0.0
    %941 = vmatprep.subr.mxu0 0.0
    %942 = vmatpush2.msra.mxu0 0.0
    %943 = vmatprep.subr.mxu0 0.0
    %944 = vmatpush2.msra.mxu0 0.0
    %945 = vmatprep.subr.mxu0 0.0
    %946 = vmatpush2.msra.mxu0 0.0
    %947 = vmatprep.subr.mxu0 0.0
    %948 = vmatpush2.msra.mxu0 0.0
    %949 = vmatprep.subr.mxu0 0.0
    %950 = vmatpush2.msra.mxu0 0.0
    %951 = vmatprep.subr.mxu0 0.0
    %952 = vmatpush2.msra.mxu0 0.0
    %953 = vmatprep.subr.mxu0 0.0
    %954 = vmatpush2.msra.mxu0 0.0
    %955 = vmatprep.subr.mxu0 0.0
    %956 = vmatpush2.msra.mxu0 0.0
    %957 = vmatprep.subr.mxu0 0.0
    %958 = vmatpush2.msra.mxu0 0.0
    %959 = vmatprep.subr.mxu0 0.0
    %960 = vmatpush2.msra.mxu0 0.0
    %961 = vmatprep.subr.mxu0 0.0
    %962 = vmatpush2.msra.mxu0 0.0
    %963 = vmatprep.mubr.f32.mxu0 0.0
    %964 = vmatmul.mubr.f32.gmra.mxu0 %v897
    %v965 = vpop.f32.mrf.mxu0
    %v966 = vadd.f32 0.0, %v965
    %v967 = vpop.f32.mrf.mxu0
    %v968 = vadd.f32 0.0, %v967
    %969 = vdwg.mxu0
    %v971 = vrot.slane %v895, 4
    %972 = vrot.lane.b32.xlu0 %v971, 64
    %v973 = vpop.permute.xlu0 %972
    %v974 = vsel %vm215, %v973, 0
    %976 = vmatprep.subr.mxu0 0.0
    %977 = vmatpush1.msra.mxu0 0.0
    %978 = vmatprep.subr.mxu0 0.0
    %979 = vmatpush1.msra.mxu0 0.0
    %980 = vmatprep.subr.mxu0 0.0
    %981 = vmatpush1.msra.mxu0 0.0
    %982 = vmatprep.subr.mxu0 0.0
    %983 = vmatpush1.msra.mxu0 0.0
    %984 = vmatprep.subr.mxu0 0.0
    %985 = vmatpush1.msra.mxu0 0.0
    %986 = vmatprep.subr.mxu0 0.0
    %987 = vmatpush1.msra.mxu0 0.0
    %988 = vmatprep.subr.mxu0 0.0
    %989 = vmatpush1.msra.mxu0 0.0
    %990 = vmatprep.subr.mxu0 0.0
    %991 = vmatpush1.msra.mxu0 0.0
    %992 = vmatprep.subr.mxu0 %v94
    %993 = vmatpush1.msra.mxu0 %v93
    %994 = vmatprep.subr.mxu0 %v92
    %995 = vmatpush1.msra.mxu0 %v91
    %996 = vmatprep.subr.mxu0 %v90
    %997 = vmatpush1.msra.mxu0 %v89
    %998 = vmatprep.subr.mxu0 %v88
    %999 = vmatpush1.msra.mxu0 %v87
    %1000 = vmatprep.subr.mxu0 %v86
    %1001 = vmatpush1.msra.mxu0 %v85
    %1002 = vmatprep.subr.mxu0 %v84
    %1003 = vmatpush1.msra.mxu0 %v83
    %1004 = vmatprep.subr.mxu0 %v82
    %1005 = vmatpush1.msra.mxu0 %v81
    %1006 = vmatprep.subr.mxu0 %v80
    %1007 = vmatpush1.msra.mxu0 %v79
    %1008 = vmatprep.subr.mxu0 0.0
    %1009 = vmatpush2.msra.mxu0 0.0
    %1010 = vmatprep.subr.mxu0 0.0
    %1011 = vmatpush2.msra.mxu0 0.0
    %1012 = vmatprep.subr.mxu0 0.0
    %1013 = vmatpush2.msra.mxu0 0.0
    %1014 = vmatprep.subr.mxu0 0.0
    %1015 = vmatpush2.msra.mxu0 0.0
    %1016 = vmatprep.subr.mxu0 0.0
    %1017 = vmatpush2.msra.mxu0 0.0
    %1018 = vmatprep.subr.mxu0 0.0
    %1019 = vmatpush2.msra.mxu0 0.0
    %1020 = vmatprep.subr.mxu0 0.0
    %1021 = vmatpush2.msra.mxu0 0.0
    %1022 = vmatprep.subr.mxu0 0.0
    %1023 = vmatpush2.msra.mxu0 0.0
    %1024 = vmatprep.subr.mxu0 0.0
    %1025 = vmatpush2.msra.mxu0 0.0
    %1026 = vmatprep.subr.mxu0 0.0
    %1027 = vmatpush2.msra.mxu0 0.0
    %1028 = vmatprep.subr.mxu0 0.0
    %1029 = vmatpush2.msra.mxu0 0.0
    %1030 = vmatprep.subr.mxu0 0.0
    %1031 = vmatpush2.msra.mxu0 0.0
    %1032 = vmatprep.subr.mxu0 0.0
    %1033 = vmatpush2.msra.mxu0 0.0
    %1034 = vmatprep.subr.mxu0 0.0
    %1035 = vmatpush2.msra.mxu0 0.0
    %1036 = vmatprep.subr.mxu0 0.0
    %1037 = vmatpush2.msra.mxu0 0.0
    %1038 = vmatprep.subr.mxu0 0.0
    %1039 = vmatpush2.msra.mxu0 0.0
    %1040 = vmatprep.mubr.f32.mxu0 0.0
    %1041 = vmatmul.mubr.f32.gmra.mxu0 %v974
    %v1042 = vpop.f32.mrf.mxu0
    %v1043 = vadd.f32 %v966, %v1042
    %v1044 = vpop.f32.mrf.mxu0
    %v1045 = vadd.f32 %v968, %v1044
    %1046 = vdwg.mxu0
    %v1047 = vadd.f32 %v1043, %v466
    %v1048 = vadd.f32 %v1045, %v470
    %v1049 = vxor.u32 %v1047, 2147483648
    %v1050 = vxor.u32 %v1048, 2147483648
    %v1051 = vmul.f32 %v1049, 1.442695
    %v1052 = vpow.pop %v1051
    %v1053 = vmul.f32 %v1050, 1.442695
    %v1054 = vpow.pop %v1053
    %v1055 = vadd.f32 %v1052, 1.0
    %v1056 = vadd.f32 %v1054, 1.0
    %v1057 = vrcp.pop %v1055
    %v1058 = vmul.f32 1.0, %v1057
    %v1059 = vrcp.pop %v1056
    %v1060 = vmul.f32 1.0, %v1059
    %v1061 = vmul.f32 %v1060, 2.0
    %v1062 = vsub.f32 %v1061, 1.0
    %v1063 = vmul.f32 %v1058, %v782
    %v1064 = vmul.f32 %v1058, %v1062
    %1066 = vrot.lane.b32.xlu0 %v1064, 64
    %v1067 = vpop.permute.xlu0 %1066
    %v1069 = vadd.f32 %v1063, %v1067
    %v1070 = vtanh.pop %v1069
    %v1071 = vmul.f32 %v1060, %v1070
    %vm1072 = vcmp.gt.s32.totalorder %v112, 2
    %1074 = vrot.lane.b32.xlu0 %v1071, 64
    %v1075 = vpop.permute.xlu0 %1074
    %v1077 = vsel %vm1072, %v1075, %v790
    %1078 = vmatprep.subr.mxu0 0.0
    %1079 = vmatpush1.msra.mxu0 0.0
    %1080 = vmatprep.subr.mxu0 0.0
    %1081 = vmatpush1.msra.mxu0 0.0
    %1082 = vmatprep.subr.mxu0 0.0
    %1083 = vmatpush1.msra.mxu0 0.0
    %1084 = vmatprep.subr.mxu0 0.0
    %1085 = vmatpush1.msra.mxu0 0.0
    %1086 = vmatprep.subr.mxu0 0.0
    %1087 = vmatpush1.msra.mxu0 0.0
    %1088 = vmatprep.subr.mxu0 0.0
    %1089 = vmatpush1.msra.mxu0 0.0
    %1090 = vmatprep.subr.mxu0 0.0
    %1091 = vmatpush1.msra.mxu0 0.0
    %1092 = vmatprep.subr.mxu0 0.0
    %1093 = vmatpush1.msra.mxu0 0.0
    %1094 = vmatprep.subr.mxu0 %v78
    %1095 = vmatpush1.msra.mxu0 %v77
    %1096 = vmatprep.subr.mxu0 %v76
    %1097 = vmatpush1.msra.mxu0 %v75
    %1098 = vmatprep.subr.mxu0 %v74
    %1099 = vmatpush1.msra.mxu0 %v73
    %1100 = vmatprep.subr.mxu0 %v72
    %1101 = vmatpush1.msra.mxu0 %v71
    %1102 = vmatprep.subr.mxu0 %v70
    %1103 = vmatpush1.msra.mxu0 %v69
    %1104 = vmatprep.subr.mxu0 %v68
    %1105 = vmatpush1.msra.mxu0 %v67
    %1106 = vmatprep.subr.mxu0 %v66
    %1107 = vmatpush1.msra.mxu0 %v65
    %1108 = vmatprep.subr.mxu0 %v64
    %1109 = vmatpush1.msra.mxu0 %v63
    %1110 = vmatprep.subr.mxu0 0.0
    %1111 = vmatpush2.msra.mxu0 0.0
    %1112 = vmatprep.subr.mxu0 0.0
    %1113 = vmatpush2.msra.mxu0 0.0
    %1114 = vmatprep.subr.mxu0 0.0
    %1115 = vmatpush2.msra.mxu0 0.0
    %1116 = vmatprep.subr.mxu0 0.0
    %1117 = vmatpush2.msra.mxu0 0.0
    %1118 = vmatprep.subr.mxu0 0.0
    %1119 = vmatpush2.msra.mxu0 0.0
    %1120 = vmatprep.subr.mxu0 0.0
    %1121 = vmatpush2.msra.mxu0 0.0
    %1122 = vmatprep.subr.mxu0 0.0
    %1123 = vmatpush2.msra.mxu0 0.0
    %1124 = vmatprep.subr.mxu0 0.0
    %1125 = vmatpush2.msra.mxu0 0.0
    %1126 = vmatprep.subr.mxu0 0.0
    %1127 = vmatpush2.msra.mxu0 0.0
    %1128 = vmatprep.subr.mxu0 0.0
    %1129 = vmatpush2.msra.mxu0 0.0
    %1130 = vmatprep.subr.mxu0 0.0
    %1131 = vmatpush2.msra.mxu0 0.0
    %1132 = vmatprep.subr.mxu0 0.0
    %1133 = vmatpush2.msra.mxu0 0.0
    %1134 = vmatprep.subr.mxu0 0.0
    %1135 = vmatpush2.msra.mxu0 0.0
    %1136 = vmatprep.subr.mxu0 0.0
    %1137 = vmatpush2.msra.mxu0 0.0
    %1138 = vmatprep.subr.mxu0 0.0
    %1139 = vmatpush2.msra.mxu0 0.0
    %1140 = vmatprep.subr.mxu0 0.0
    %1141 = vmatpush2.msra.mxu0 0.0
    %1142 = vmatprep.mubr.f32.mxu0 0.0
    %1143 = vmatmul.mubr.f32.gmra.mxu0 %v974
    %v1144 = vpop.f32.mrf.mxu0
    %v1145 = vadd.f32 0.0, %v1144
    %v1146 = vpop.f32.mrf.mxu0
    %v1147 = vadd.f32 0.0, %v1146
    %1148 = vdwg.mxu0
    %v1151 = vrot.slane %v1145, 2
    %v1152 = vrot.slane %v1147, 2
    %v1155 = vadd.f32 %v205, %v1151
    %v1156 = vadd.f32 %v207, %v1152
    %v1157 = vxor.u32 %v1155, 2147483648
    %v1158 = vxor.u32 %v1156, 2147483648
    %v1159 = vmul.f32 %v1157, 1.442695
    %v1160 = vpow.pop %v1159
    %v1161 = vmul.f32 %v1158, 1.442695
    %v1162 = vpow.pop %v1161
    %v1163 = vadd.f32 %v1160, 1.0
    %v1164 = vadd.f32 %v1162, 1.0
    %v1165 = vrcp.pop %v1163
    %v1166 = vmul.f32 1.0, %v1165
    %v1167 = vrcp.pop %v1164
    %v1168 = vmul.f32 1.0, %v1167
    %v1169 = vmul.f32 %v1168, 2.0
    %v1170 = vsub.f32 %v1169, 1.0
    %v1172 = vrot.slane %v893, 6
    %v1174 = vmul.f32 %v1166, %v1172
    %v1175 = vmul.f32 %v1166, %v1170
    %1177 = vrot.lane.b32.xlu0 %v1175, 64
    %v1178 = vpop.permute.xlu0 %1177
    %v1180 = vadd.f32 %v1174, %v1178
    %v1181 = vtanh.pop %v1180
    %v1182 = vmul.f32 %v1168, %v1181
    %v1184 = vsel %vm215, %v1077, 0
    %1186 = vmatprep.subr.mxu0 0.0
    %1187 = vmatpush1.msra.mxu0 0.0
    %1188 = vmatprep.subr.mxu0 0.0
    %1189 = vmatpush1.msra.mxu0 0.0
    %1190 = vmatprep.subr.mxu0 0.0
    %1191 = vmatpush1.msra.mxu0 0.0
    %1192 = vmatprep.subr.mxu0 0.0
    %1193 = vmatpush1.msra.mxu0 0.0
    %1194 = vmatprep.subr.mxu0 0.0
    %1195 = vmatpush1.msra.mxu0 0.0
    %1196 = vmatprep.subr.mxu0 0.0
    %1197 = vmatpush1.msra.mxu0 0.0
    %1198 = vmatprep.subr.mxu0 0.0
    %1199 = vmatpush1.msra.mxu0 0.0
    %1200 = vmatprep.subr.mxu0 0.0
    %1201 = vmatpush1.msra.mxu0 0.0
    %1202 = vmatprep.subr.mxu0 %v110
    %1203 = vmatpush1.msra.mxu0 %v109
    %1204 = vmatprep.subr.mxu0 %v108
    %1205 = vmatpush1.msra.mxu0 %v107
    %1206 = vmatprep.subr.mxu0 %v106
    %1207 = vmatpush1.msra.mxu0 %v105
    %1208 = vmatprep.subr.mxu0 %v104
    %1209 = vmatpush1.msra.mxu0 %v103
    %1210 = vmatprep.subr.mxu0 %v102
    %1211 = vmatpush1.msra.mxu0 %v101
    %1212 = vmatprep.subr.mxu0 %v100
    %1213 = vmatpush1.msra.mxu0 %v99
    %1214 = vmatprep.subr.mxu0 %v98
    %1215 = vmatpush1.msra.mxu0 %v97
    %1216 = vmatprep.subr.mxu0 %v96
    %1217 = vmatpush1.msra.mxu0 %v95
    %1218 = vmatprep.subr.mxu0 0.0
    %1219 = vmatpush2.msra.mxu0 0.0
    %1220 = vmatprep.subr.mxu0 0.0
    %1221 = vmatpush2.msra.mxu0 0.0
    %1222 = vmatprep.subr.mxu0 0.0
    %1223 = vmatpush2.msra.mxu0 0.0
    %1224 = vmatprep.subr.mxu0 0.0
    %1225 = vmatpush2.msra.mxu0 0.0
    %1226 = vmatprep.subr.mxu0 0.0
    %1227 = vmatpush2.msra.mxu0 0.0
    %1228 = vmatprep.subr.mxu0 0.0
    %1229 = vmatpush2.msra.mxu0 0.0
    %1230 = vmatprep.subr.mxu0 0.0
    %1231 = vmatpush2.msra.mxu0 0.0
    %1232 = vmatprep.subr.mxu0 0.0
    %1233 = vmatpush2.msra.mxu0 0.0
    %1234 = vmatprep.subr.mxu0 0.0
    %1235 = vmatpush2.msra.mxu0 0.0
    %1236 = vmatprep.subr.mxu0 0.0
    %1237 = vmatpush2.msra.mxu0 0.0
    %1238 = vmatprep.subr.mxu0 0.0
    %1239 = vmatpush2.msra.mxu0 0.0
    %1240 = vmatprep.subr.mxu0 0.0
    %1241 = vmatpush2.msra.mxu0 0.0
    %1242 = vmatprep.subr.mxu0 0.0
    %1243 = vmatpush2.msra.mxu0 0.0
    %1244 = vmatprep.subr.mxu0 0.0
    %1245 = vmatpush2.msra.mxu0 0.0
    %1246 = vmatprep.subr.mxu0 0.0
    %1247 = vmatpush2.msra.mxu0 0.0
    %1248 = vmatprep.subr.mxu0 0.0
    %1249 = vmatpush2.msra.mxu0 0.0
    %1250 = vmatprep.mubr.f32.mxu0 0.0
    %1251 = vmatmul.mubr.f32.gmra.mxu0 %v1184
    %v1252 = vpop.f32.mrf.mxu0
    %v1253 = vadd.f32 0.0, %v1252
    %v1254 = vpop.f32.mrf.mxu0
    %v1255 = vadd.f32 0.0, %v1254
    %1256 = vdwg.mxu0
    %v1258 = vrot.slane %v1182, 6
    %1259 = vrot.lane.b32.xlu0 %v1258, 64
    %v1260 = vpop.permute.xlu0 %1259
    %v1261 = vsel %vm215, %v1260, 0
    %1263 = vmatprep.subr.mxu0 0.0
    %1264 = vmatpush1.msra.mxu0 0.0
    %1265 = vmatprep.subr.mxu0 0.0
    %1266 = vmatpush1.msra.mxu0 0.0
    %1267 = vmatprep.subr.mxu0 0.0
    %1268 = vmatpush1.msra.mxu0 0.0
    %1269 = vmatprep.subr.mxu0 0.0
    %1270 = vmatpush1.msra.mxu0 0.0
    %1271 = vmatprep.subr.mxu0 0.0
    %1272 = vmatpush1.msra.mxu0 0.0
    %1273 = vmatprep.subr.mxu0 0.0
    %1274 = vmatpush1.msra.mxu0 0.0
    %1275 = vmatprep.subr.mxu0 0.0
    %1276 = vmatpush1.msra.mxu0 0.0
    %1277 = vmatprep.subr.mxu0 0.0
    %1278 = vmatpush1.msra.mxu0 0.0
    %1279 = vmatprep.subr.mxu0 %v94
    %1280 = vmatpush1.msra.mxu0 %v93
    %1281 = vmatprep.subr.mxu0 %v92
    %1282 = vmatpush1.msra.mxu0 %v91
    %1283 = vmatprep.subr.mxu0 %v90
    %1284 = vmatpush1.msra.mxu0 %v89
    %1285 = vmatprep.subr.mxu0 %v88
    %1286 = vmatpush1.msra.mxu0 %v87
    %1287 = vmatprep.subr.mxu0 %v86
    %1288 = vmatpush1.msra.mxu0 %v85
    %1289 = vmatprep.subr.mxu0 %v84
    %1290 = vmatpush1.msra.mxu0 %v83
    %1291 = vmatprep.subr.mxu0 %v82
    %1292 = vmatpush1.msra.mxu0 %v81
    %1293 = vmatprep.subr.mxu0 %v80
    %1294 = vmatpush1.msra.mxu0 %v79
    %1295 = vmatprep.subr.mxu0 0.0
    %1296 = vmatpush2.msra.mxu0 0.0
    %1297 = vmatprep.subr.mxu0 0.0
    %1298 = vmatpush2.msra.mxu0 0.0
    %1299 = vmatprep.subr.mxu0 0.0
    %1300 = vmatpush2.msra.mxu0 0.0
    %1301 = vmatprep.subr.mxu0 0.0
    %1302 = vmatpush2.msra.mxu0 0.0
    %1303 = vmatprep.subr.mxu0 0.0
    %1304 = vmatpush2.msra.mxu0 0.0
    %1305 = vmatprep.subr.mxu0 0.0
    %1306 = vmatpush2.msra.mxu0 0.0
    %1307 = vmatprep.subr.mxu0 0.0
    %1308 = vmatpush2.msra.mxu0 0.0
    %1309 = vmatprep.subr.mxu0 0.0
    %1310 = vmatpush2.msra.mxu0 0.0
    %1311 = vmatprep.subr.mxu0 0.0
    %1312 = vmatpush2.msra.mxu0 0.0
    %1313 = vmatprep.subr.mxu0 0.0
    %1314 = vmatpush2.msra.mxu0 0.0
    %1315 = vmatprep.subr.mxu0 0.0
    %1316 = vmatpush2.msra.mxu0 0.0
    %1317 = vmatprep.subr.mxu0 0.0
    %1318 = vmatpush2.msra.mxu0 0.0
    %1319 = vmatprep.subr.mxu0 0.0
    %1320 = vmatpush2.msra.mxu0 0.0
    %1321 = vmatprep.subr.mxu0 0.0
    %1322 = vmatpush2.msra.mxu0 0.0
    %1323 = vmatprep.subr.mxu0 0.0
    %1324 = vmatpush2.msra.mxu0 0.0
    %1325 = vmatprep.subr.mxu0 0.0
    %1326 = vmatpush2.msra.mxu0 0.0
    %1327 = vmatprep.mubr.f32.mxu0 0.0
    %1328 = vmatmul.mubr.f32.gmra.mxu0 %v1261
    %v1329 = vpop.f32.mrf.mxu0
    %v1330 = vadd.f32 %v1253, %v1329
    %v1331 = vpop.f32.mrf.mxu0
    %v1332 = vadd.f32 %v1255, %v1331
    %1333 = vdwg.mxu0
    %v1334 = vadd.f32 %v1330, %v466
    %v1335 = vadd.f32 %v1332, %v470
    %v1336 = vxor.u32 %v1334, 2147483648
    %v1337 = vxor.u32 %v1335, 2147483648
    %v1338 = vmul.f32 %v1336, 1.442695
    %v1339 = vpow.pop %v1338
    %v1340 = vmul.f32 %v1337, 1.442695
    %v1341 = vpow.pop %v1340
    %v1342 = vadd.f32 %v1339, 1.0
    %v1343 = vadd.f32 %v1341, 1.0
    %v1344 = vrcp.pop %v1342
    %v1345 = vmul.f32 1.0, %v1344
    %v1346 = vrcp.pop %v1343
    %v1347 = vmul.f32 1.0, %v1346
    %v1348 = vmul.f32 %v1347, 2.0
    %v1349 = vsub.f32 %v1348, 1.0
    %v1350 = vmul.f32 %v1345, %v1069
    %v1351 = vmul.f32 %v1345, %v1349
    %1353 = vrot.lane.b32.xlu0 %v1351, 64
    %v1354 = vpop.permute.xlu0 %1353
    %v1356 = vadd.f32 %v1350, %v1354
    %v1357 = vtanh.pop %v1356
    %v1358 = vmul.f32 %v1347, %v1357
    %vm1359 = vcmp.gt.s32.totalorder %v112, 3
    %1361 = vrot.lane.b32.xlu0 %v1358, 64
    %v1362 = vpop.permute.xlu0 %1361
    %v1364 = vsel %vm1359, %v1362, %v1077
    %1365 = vmatprep.subr.mxu0 0.0
    %1366 = vmatpush1.msra.mxu0 0.0
    %1367 = vmatprep.subr.mxu0 0.0
    %1368 = vmatpush1.msra.mxu0 0.0
    %1369 = vmatprep.subr.mxu0 0.0
    %1370 = vmatpush1.msra.mxu0 0.0
    %1371 = vmatprep.subr.mxu0 0.0
    %1372 = vmatpush1.msra.mxu0 0.0
    %1373 = vmatprep.subr.mxu0 0.0
    %1374 = vmatpush1.msra.mxu0 0.0
    %1375 = vmatprep.subr.mxu0 0.0
    %1376 = vmatpush1.msra.mxu0 0.0
    %1377 = vmatprep.subr.mxu0 0.0
    %1378 = vmatpush1.msra.mxu0 0.0
    %1379 = vmatprep.subr.mxu0 0.0
    %1380 = vmatpush1.msra.mxu0 0.0
    %1381 = vmatprep.subr.mxu0 %v78
    %1382 = vmatpush1.msra.mxu0 %v77
    %1383 = vmatprep.subr.mxu0 %v76
    %1384 = vmatpush1.msra.mxu0 %v75
    %1385 = vmatprep.subr.mxu0 %v74
    %1386 = vmatpush1.msra.mxu0 %v73
    %1387 = vmatprep.subr.mxu0 %v72
    %1388 = vmatpush1.msra.mxu0 %v71
    %1389 = vmatprep.subr.mxu0 %v70
    %1390 = vmatpush1.msra.mxu0 %v69
    %1391 = vmatprep.subr.mxu0 %v68
    %1392 = vmatpush1.msra.mxu0 %v67
    %1393 = vmatprep.subr.mxu0 %v66
    %1394 = vmatpush1.msra.mxu0 %v65
    %1395 = vmatprep.subr.mxu0 %v64
    %1396 = vmatpush1.msra.mxu0 %v63
    %1397 = vmatprep.subr.mxu0 0.0
    %1398 = vmatpush2.msra.mxu0 0.0
    %1399 = vmatprep.subr.mxu0 0.0
    %1400 = vmatpush2.msra.mxu0 0.0
    %1401 = vmatprep.subr.mxu0 0.0
    %1402 = vmatpush2.msra.mxu0 0.0
    %1403 = vmatprep.subr.mxu0 0.0
    %1404 = vmatpush2.msra.mxu0 0.0
    %1405 = vmatprep.subr.mxu0 0.0
    %1406 = vmatpush2.msra.mxu0 0.0
    %1407 = vmatprep.subr.mxu0 0.0
    %1408 = vmatpush2.msra.mxu0 0.0
    %1409 = vmatprep.subr.mxu0 0.0
    %1410 = vmatpush2.msra.mxu0 0.0
    %1411 = vmatprep.subr.mxu0 0.0
    %1412 = vmatpush2.msra.mxu0 0.0
    %1413 = vmatprep.subr.mxu0 0.0
    %1414 = vmatpush2.msra.mxu0 0.0
    %1415 = vmatprep.subr.mxu0 0.0
    %1416 = vmatpush2.msra.mxu0 0.0
    %1417 = vmatprep.subr.mxu0 0.0
    %1418 = vmatpush2.msra.mxu0 0.0
    %1419 = vmatprep.subr.mxu0 0.0
    %1420 = vmatpush2.msra.mxu0 0.0
    %1421 = vmatprep.subr.mxu0 0.0
    %1422 = vmatpush2.msra.mxu0 0.0
    %1423 = vmatprep.subr.mxu0 0.0
    %1424 = vmatpush2.msra.mxu0 0.0
    %1425 = vmatprep.subr.mxu0 0.0
    %1426 = vmatpush2.msra.mxu0 0.0
    %1427 = vmatprep.subr.mxu0 0.0
    %1428 = vmatpush2.msra.mxu0 0.0
    %1429 = vmatprep.mubr.f32.mxu0 0.0
    %1430 = vmatmul.mubr.f32.gmra.mxu0 %v1261
    %v1431 = vpop.f32.mrf.mxu0
    %v1432 = vadd.f32 0.0, %v1431
    %v1433 = vpop.f32.mrf.mxu0
    %v1434 = vadd.f32 0.0, %v1433
    %1435 = vdwg.mxu0
    %v1436 = vadd.f32 %v211, %v1432
    %v1437 = vadd.f32 %v213, %v1434
    %v1438 = vxor.u32 %v1436, 2147483648
    %v1439 = vxor.u32 %v1437, 2147483648
    %v1440 = vmul.f32 %v1438, 1.442695
    %v1441 = vpow.pop %v1440
    %v1442 = vmul.f32 %v1439, 1.442695
    %v1443 = vpow.pop %v1442
    %v1444 = vadd.f32 %v1441, 1.0
    %v1445 = vadd.f32 %v1443, 1.0
    %v1446 = vrcp.pop %v1444
    %v1447 = vmul.f32 1.0, %v1446
    %v1448 = vrcp.pop %v1445
    %v1449 = vmul.f32 1.0, %v1448
    %v1450 = vmul.f32 %v1449, 2.0
    %v1451 = vsub.f32 %v1450, 1.0
    %v1453 = vrot.slane %v1180, 6
    %v1455 = vmul.f32 %v1447, %v1453
    %v1456 = vmul.f32 %v1447, %v1451
    %1458 = vrot.lane.b32.xlu0 %v1456, 64
    %v1459 = vpop.permute.xlu0 %1458
    %v1461 = vadd.f32 %v1455, %v1459
    %v1462 = vtanh.pop %v1461
    %v1463 = vmul.f32 %v1449, %v1462
    %v1465 = vsel %vm215, %v1364, 0
    %1467 = vmatprep.subr.mxu0 0.0
    %1468 = vmatpush1.msra.mxu0 0.0
    %1469 = vmatprep.subr.mxu0 0.0
    %1470 = vmatpush1.msra.mxu0 0.0
    %1471 = vmatprep.subr.mxu0 0.0
    %1472 = vmatpush1.msra.mxu0 0.0
    %1473 = vmatprep.subr.mxu0 0.0
    %1474 = vmatpush1.msra.mxu0 0.0
    %1475 = vmatprep.subr.mxu0 0.0
    %1476 = vmatpush1.msra.mxu0 0.0
    %1477 = vmatprep.subr.mxu0 0.0
    %1478 = vmatpush1.msra.mxu0 0.0
    %1479 = vmatprep.subr.mxu0 0.0
    %1480 = vmatpush1.msra.mxu0 0.0
    %1481 = vmatprep.subr.mxu0 0.0
    %1482 = vmatpush1.msra.mxu0 0.0
    %1483 = vmatprep.subr.mxu0 %v110
    %1484 = vmatpush1.msra.mxu0 %v109
    %1485 = vmatprep.subr.mxu0 %v108
    %1486 = vmatpush1.msra.mxu0 %v107
    %1487 = vmatprep.subr.mxu0 %v106
    %1488 = vmatpush1.msra.mxu0 %v105
    %1489 = vmatprep.subr.mxu0 %v104
    %1490 = vmatpush1.msra.mxu0 %v103
    %1491 = vmatprep.subr.mxu0 %v102
    %1492 = vmatpush1.msra.mxu0 %v101
    %1493 = vmatprep.subr.mxu0 %v100
    %1494 = vmatpush1.msra.mxu0 %v99
    %1495 = vmatprep.subr.mxu0 %v98
    %1496 = vmatpush1.msra.mxu0 %v97
    %1497 = vmatprep.subr.mxu0 %v96
    %1498 = vmatpush1.msra.mxu0 %v95
    %1499 = vmatprep.subr.mxu0 0.0
    %1500 = vmatpush2.msra.mxu0 0.0
    %1501 = vmatprep.subr.mxu0 0.0
    %1502 = vmatpush2.msra.mxu0 0.0
    %1503 = vmatprep.subr.mxu0 0.0
    %1504 = vmatpush2.msra.mxu0 0.0
    %1505 = vmatprep.subr.mxu0 0.0
    %1506 = vmatpush2.msra.mxu0 0.0
    %1507 = vmatprep.subr.mxu0 0.0
    %1508 = vmatpush2.msra.mxu0 0.0
    %1509 = vmatprep.subr.mxu0 0.0
    %1510 = vmatpush2.msra.mxu0 0.0
    %1511 = vmatprep.subr.mxu0 0.0
    %1512 = vmatpush2.msra.mxu0 0.0
    %1513 = vmatprep.subr.mxu0 0.0
    %1514 = vmatpush2.msra.mxu0 0.0
    %1515 = vmatprep.subr.mxu0 0.0
    %1516 = vmatpush2.msra.mxu0 0.0
    %1517 = vmatprep.subr.mxu0 0.0
    %1518 = vmatpush2.msra.mxu0 0.0
    %1519 = vmatprep.subr.mxu0 0.0
    %1520 = vmatpush2.msra.mxu0 0.0
    %1521 = vmatprep.subr.mxu0 0.0
    %1522 = vmatpush2.msra.mxu0 0.0
    %1523 = vmatprep.subr.mxu0 0.0
    %1524 = vmatpush2.msra.mxu0 0.0
    %1525 = vmatprep.subr.mxu0 0.0
    %1526 = vmatpush2.msra.mxu0 0.0
    %1527 = vmatprep.subr.mxu0 0.0
    %1528 = vmatpush2.msra.mxu0 0.0
    %1529 = vmatprep.subr.mxu0 0.0
    %1530 = vmatpush2.msra.mxu0 0.0
    %1531 = vmatprep.mubr.f32.mxu0 0.0
    %1532 = vmatmul.mubr.f32.gmra.mxu0 %v1465
    %v1533 = vpop.f32.mrf.mxu0
    %v1534 = vadd.f32 0.0, %v1533
    %v1535 = vpop.f32.mrf.mxu0
    %v1536 = vadd.f32 0.0, %v1535
    %1537 = vdwg.mxu0
    %1539 = vrot.lane.b32.xlu0 %v1463, 64
    %v1540 = vpop.permute.xlu0 %1539
    %v1541 = vsel %vm215, %v1540, 0
    %1543 = vmatprep.subr.mxu0 0.0
    %1544 = vmatpush1.msra.mxu0 0.0
    %1545 = vmatprep.subr.mxu0 0.0
    %1546 = vmatpush1.msra.mxu0 0.0
    %1547 = vmatprep.subr.mxu0 0.0
    %1548 = vmatpush1.msra.mxu0 0.0
    %1549 = vmatprep.subr.mxu0 0.0
    %1550 = vmatpush1.msra.mxu0 0.0
    %1551 = vmatprep.subr.mxu0 0.0
    %1552 = vmatpush1.msra.mxu0 0.0
    %1553 = vmatprep.subr.mxu0 0.0
    %1554 = vmatpush1.msra.mxu0 0.0
    %1555 = vmatprep.subr.mxu0 0.0
    %1556 = vmatpush1.msra.mxu0 0.0
    %1557 = vmatprep.subr.mxu0 0.0
    %1558 = vmatpush1.msra.mxu0 0.0
    %1559 = vmatprep.subr.mxu0 %v94
    %1560 = vmatpush1.msra.mxu0 %v93
    %1561 = vmatprep.subr.mxu0 %v92
    %1562 = vmatpush1.msra.mxu0 %v91
    %1563 = vmatprep.subr.mxu0 %v90
    %1564 = vmatpush1.msra.mxu0 %v89
    %1565 = vmatprep.subr.mxu0 %v88
    %1566 = vmatpush1.msra.mxu0 %v87
    %1567 = vmatprep.subr.mxu0 %v86
    %1568 = vmatpush1.msra.mxu0 %v85
    %1569 = vmatprep.subr.mxu0 %v84
    %1570 = vmatpush1.msra.mxu0 %v83
    %1571 = vmatprep.subr.mxu0 %v82
    %1572 = vmatpush1.msra.mxu0 %v81
    %1573 = vmatprep.subr.mxu0 %v80
    %1574 = vmatpush1.msra.mxu0 %v79
    %1575 = vmatprep.subr.mxu0 0.0
    %1576 = vmatpush2.msra.mxu0 0.0
    %1577 = vmatprep.subr.mxu0 0.0
    %1578 = vmatpush2.msra.mxu0 0.0
    %1579 = vmatprep.subr.mxu0 0.0
    %1580 = vmatpush2.msra.mxu0 0.0
    %1581 = vmatprep.subr.mxu0 0.0
    %1582 = vmatpush2.msra.mxu0 0.0
    %1583 = vmatprep.subr.mxu0 0.0
    %1584 = vmatpush2.msra.mxu0 0.0
    %1585 = vmatprep.subr.mxu0 0.0
    %1586 = vmatpush2.msra.mxu0 0.0
    %1587 = vmatprep.subr.mxu0 0.0
    %1588 = vmatpush2.msra.mxu0 0.0
    %1589 = vmatprep.subr.mxu0 0.0
    %1590 = vmatpush2.msra.mxu0 0.0
    %1591 = vmatprep.subr.mxu0 0.0
    %1592 = vmatpush2.msra.mxu0 0.0
    %1593 = vmatprep.subr.mxu0 0.0
    %1594 = vmatpush2.msra.mxu0 0.0
    %1595 = vmatprep.subr.mxu0 0.0
    %1596 = vmatpush2.msra.mxu0 0.0
    %1597 = vmatprep.subr.mxu0 0.0
    %1598 = vmatpush2.msra.mxu0 0.0
    %1599 = vmatprep.subr.mxu0 0.0
    %1600 = vmatpush2.msra.mxu0 0.0
    %1601 = vmatprep.subr.mxu0 0.0
    %1602 = vmatpush2.msra.mxu0 0.0
    %1603 = vmatprep.subr.mxu0 0.0
    %1604 = vmatpush2.msra.mxu0 0.0
    %1605 = vmatprep.subr.mxu0 0.0
    %1606 = vmatpush2.msra.mxu0 0.0
    %1607 = vmatprep.mubr.f32.mxu0 0.0
    %1608 = vmatmul.mubr.f32.gmra.mxu0 %v1541
    %v1609 = vpop.f32.mrf.mxu0
    %v1610 = vadd.f32 %v1534, %v1609
    %v1611 = vpop.f32.mrf.mxu0
    %v1612 = vadd.f32 %v1536, %v1611
    %1613 = vdwg.mxu0
    %v1614 = vadd.f32 %v1610, %v466
    %v1615 = vadd.f32 %v1612, %v470
    %v1616 = vxor.u32 %v1614, 2147483648
    %v1617 = vxor.u32 %v1615, 2147483648
    %v1618 = vmul.f32 %v1616, 1.442695
    %v1619 = vpow.pop %v1618
    %v1620 = vmul.f32 %v1617, 1.442695
    %v1621 = vpow.pop %v1620
    %v1622 = vadd.f32 %v1619, 1.0
    %v1623 = vadd.f32 %v1621, 1.0
    %v1624 = vrcp.pop %v1622
    %v1625 = vmul.f32 1.0, %v1624
    %v1626 = vrcp.pop %v1623
    %v1627 = vmul.f32 1.0, %v1626
    %v1628 = vmul.f32 %v1627, 2.0
    %v1629 = vsub.f32 %v1628, 1.0
    %v1630 = vmul.f32 %v1625, %v1356
    %v1631 = vmul.f32 %v1625, %v1629
    %1633 = vrot.lane.b32.xlu0 %v1631, 64
    %v1634 = vpop.permute.xlu0 %1633
    %v1636 = vadd.f32 %v1630, %v1634
    %v1637 = vtanh.pop %v1636
    %v1638 = vmul.f32 %v1627, %v1637
    %vm1639 = vcmp.gt.s32.totalorder %v112, 4
    %1641 = vrot.lane.b32.xlu0 %v1638, 64
    %v1642 = vpop.permute.xlu0 %1641
    %v1644 = vsel %vm1639, %v1642, %v1364
    %1645 = vmatprep.subr.mxu0 0.0
    %1646 = vmatpush1.msra.mxu0 0.0
    %1647 = vmatprep.subr.mxu0 0.0
    %1648 = vmatpush1.msra.mxu0 0.0
    %1649 = vmatprep.subr.mxu0 0.0
    %1650 = vmatpush1.msra.mxu0 0.0
    %1651 = vmatprep.subr.mxu0 0.0
    %1652 = vmatpush1.msra.mxu0 0.0
    %1653 = vmatprep.subr.mxu0 0.0
    %1654 = vmatpush1.msra.mxu0 0.0
    %1655 = vmatprep.subr.mxu0 0.0
    %1656 = vmatpush1.msra.mxu0 0.0
    %1657 = vmatprep.subr.mxu0 0.0
    %1658 = vmatpush1.msra.mxu0 0.0
    %1659 = vmatprep.subr.mxu0 0.0
    %1660 = vmatpush1.msra.mxu0 0.0
    %1661 = vmatprep.subr.mxu0 %v78
    %1662 = vmatpush1.msra.mxu0 %v77
    %1663 = vmatprep.subr.mxu0 %v76
    %1664 = vmatpush1.msra.mxu0 %v75
    %1665 = vmatprep.subr.mxu0 %v74
    %1666 = vmatpush1.msra.mxu0 %v73
    %1667 = vmatprep.subr.mxu0 %v72
    %1668 = vmatpush1.msra.mxu0 %v71
    %1669 = vmatprep.subr.mxu0 %v70
    %1670 = vmatpush1.msra.mxu0 %v69
    %1671 = vmatprep.subr.mxu0 %v68
    %1672 = vmatpush1.msra.mxu0 %v67
    %1673 = vmatprep.subr.mxu0 %v66
    %1674 = vmatpush1.msra.mxu0 %v65
    %1675 = vmatprep.subr.mxu0 %v64
    %1676 = vmatpush1.msra.mxu0 %v63
    %1677 = vmatprep.subr.mxu0 0.0
    %1678 = vmatpush2.msra.mxu0 0.0
    %1679 = vmatprep.subr.mxu0 0.0
    %1680 = vmatpush2.msra.mxu0 0.0
    %1681 = vmatprep.subr.mxu0 0.0
    %1682 = vmatpush2.msra.mxu0 0.0
    %1683 = vmatprep.subr.mxu0 0.0
    %1684 = vmatpush2.msra.mxu0 0.0
    %1685 = vmatprep.subr.mxu0 0.0
    %1686 = vmatpush2.msra.mxu0 0.0
    %1687 = vmatprep.subr.mxu0 0.0
    %1688 = vmatpush2.msra.mxu0 0.0
    %1689 = vmatprep.subr.mxu0 0.0
    %1690 = vmatpush2.msra.mxu0 0.0
    %1691 = vmatprep.subr.mxu0 0.0
    %1692 = vmatpush2.msra.mxu0 0.0
    %1693 = vmatprep.subr.mxu0 0.0
    %1694 = vmatpush2.msra.mxu0 0.0
    %1695 = vmatprep.subr.mxu0 0.0
    %1696 = vmatpush2.msra.mxu0 0.0
    %1697 = vmatprep.subr.mxu0 0.0
    %1698 = vmatpush2.msra.mxu0 0.0
    %1699 = vmatprep.subr.mxu0 0.0
    %1700 = vmatpush2.msra.mxu0 0.0
    %1701 = vmatprep.subr.mxu0 0.0
    %1702 = vmatpush2.msra.mxu0 0.0
    %1703 = vmatprep.subr.mxu0 0.0
    %1704 = vmatpush2.msra.mxu0 0.0
    %1705 = vmatprep.subr.mxu0 0.0
    %1706 = vmatpush2.msra.mxu0 0.0
    %1707 = vmatprep.subr.mxu0 0.0
    %1708 = vmatpush2.msra.mxu0 0.0
    %1709 = vmatprep.mubr.f32.mxu0 0.0
    %1710 = vmatmul.mubr.f32.gmra.mxu0 %v1541
    %v1711 = vpop.f32.mrf.mxu0
    %v1712 = vadd.f32 0.0, %v1711
    %v1713 = vpop.f32.mrf.mxu0
    %v1714 = vadd.f32 0.0, %v1713
    %1715 = vdwg.mxu0
    %v1718 = vrot.slane %v1712, 6
    %v1719 = vrot.slane %v1714, 6
    %v1722 = vadd.f32 %v211, %v1718
    %v1723 = vadd.f32 %v213, %v1719
    %v1724 = vxor.u32 %v1722, 2147483648
    %v1725 = vxor.u32 %v1723, 2147483648
    %v1726 = vmul.f32 %v1724, 1.442695
    %v1727 = vpow.pop %v1726
    %v1728 = vmul.f32 %v1725, 1.442695
    %v1729 = vpow.pop %v1728
    %v1730 = vadd.f32 %v1727, 1.0
    %v1731 = vadd.f32 %v1729, 1.0
    %v1732 = vrcp.pop %v1730
    %v1733 = vmul.f32 1.0, %v1732
    %v1734 = vrcp.pop %v1731
    %v1735 = vmul.f32 1.0, %v1734
    %v1736 = vmul.f32 %v1735, 2.0
    %v1737 = vsub.f32 %v1736, 1.0
    %v1739 = vrot.slane %v1461, 6
    %v1741 = vmul.f32 %v1733, %v1739
    %v1742 = vmul.f32 %v1733, %v1737
    %1744 = vrot.lane.b32.xlu0 %v1742, 64
    %v1745 = vpop.permute.xlu0 %1744
    %v1747 = vadd.f32 %v1741, %v1745
    %v1748 = vtanh.pop %v1747
    %v1749 = vmul.f32 %v1735, %v1748
    %v1751 = vsel %vm215, %v1644, 0
    %1753 = vmatprep.subr.mxu0 0.0
    %1754 = vmatpush1.msra.mxu0 0.0
    %1755 = vmatprep.subr.mxu0 0.0
    %1756 = vmatpush1.msra.mxu0 0.0
    %1757 = vmatprep.subr.mxu0 0.0
    %1758 = vmatpush1.msra.mxu0 0.0
    %1759 = vmatprep.subr.mxu0 0.0
    %1760 = vmatpush1.msra.mxu0 0.0
    %1761 = vmatprep.subr.mxu0 0.0
    %1762 = vmatpush1.msra.mxu0 0.0
    %1763 = vmatprep.subr.mxu0 0.0
    %1764 = vmatpush1.msra.mxu0 0.0
    %1765 = vmatprep.subr.mxu0 0.0
    %1766 = vmatpush1.msra.mxu0 0.0
    %1767 = vmatprep.subr.mxu0 0.0
    %1768 = vmatpush1.msra.mxu0 0.0
    %1769 = vmatprep.subr.mxu0 %v110
    %1770 = vmatpush1.msra.mxu0 %v109
    %1771 = vmatprep.subr.mxu0 %v108
    %1772 = vmatpush1.msra.mxu0 %v107
    %1773 = vmatprep.subr.mxu0 %v106
    %1774 = vmatpush1.msra.mxu0 %v105
    %1775 = vmatprep.subr.mxu0 %v104
    %1776 = vmatpush1.msra.mxu0 %v103
    %1777 = vmatprep.subr.mxu0 %v102
    %1778 = vmatpush1.msra.mxu0 %v101
    %1779 = vmatprep.subr.mxu0 %v100
    %1780 = vmatpush1.msra.mxu0 %v99
    %1781 = vmatprep.subr.mxu0 %v98
    %1782 = vmatpush1.msra.mxu0 %v97
    %1783 = vmatprep.subr.mxu0 %v96
    %1784 = vmatpush1.msra.mxu0 %v95
    %1785 = vmatprep.subr.mxu0 0.0
    %1786 = vmatpush2.msra.mxu0 0.0
    %1787 = vmatprep.subr.mxu0 0.0
    %1788 = vmatpush2.msra.mxu0 0.0
    %1789 = vmatprep.subr.mxu0 0.0
    %1790 = vmatpush2.msra.mxu0 0.0
    %1791 = vmatprep.subr.mxu0 0.0
    %1792 = vmatpush2.msra.mxu0 0.0
    %1793 = vmatprep.subr.mxu0 0.0
    %1794 = vmatpush2.msra.mxu0 0.0
    %1795 = vmatprep.subr.mxu0 0.0
    %1796 = vmatpush2.msra.mxu0 0.0
    %1797 = vmatprep.subr.mxu0 0.0
    %1798 = vmatpush2.msra.mxu0 0.0
    %1799 = vmatprep.subr.mxu0 0.0
    %1800 = vmatpush2.msra.mxu0 0.0
    %1801 = vmatprep.subr.mxu0 0.0
    %1802 = vmatpush2.msra.mxu0 0.0
    %1803 = vmatprep.subr.mxu0 0.0
    %1804 = vmatpush2.msra.mxu0 0.0
    %1805 = vmatprep.subr.mxu0 0.0
    %1806 = vmatpush2.msra.mxu0 0.0
    %1807 = vmatprep.subr.mxu0 0.0
    %1808 = vmatpush2.msra.mxu0 0.0
    %1809 = vmatprep.subr.mxu0 0.0
    %1810 = vmatpush2.msra.mxu0 0.0
    %1811 = vmatprep.subr.mxu0 0.0
    %1812 = vmatpush2.msra.mxu0 0.0
    %1813 = vmatprep.subr.mxu0 0.0
    %1814 = vmatpush2.msra.mxu0 0.0
    %1815 = vmatprep.subr.mxu0 0.0
    %1816 = vmatpush2.msra.mxu0 0.0
    %1817 = vmatprep.mubr.f32.mxu0 0.0
    %1818 = vmatmul.mubr.f32.gmra.mxu0 %v1751
    %v1819 = vpop.f32.mrf.mxu0
    %v1820 = vadd.f32 0.0, %v1819
    %v1821 = vpop.f32.mrf.mxu0
    %v1822 = vadd.f32 0.0, %v1821
    %1823 = vdwg.mxu0
    %v1825 = vrot.slane %v1749, 2
    %1826 = vrot.lane.b32.xlu0 %v1825, 64
    %v1827 = vpop.permute.xlu0 %1826
    %v1828 = vsel %vm215, %v1827, 0
    %1830 = vmatprep.subr.mxu0 0.0
    %1831 = vmatpush1.msra.mxu0 0.0
    %1832 = vmatprep.subr.mxu0 0.0
    %1833 = vmatpush1.msra.mxu0 0.0
    %1834 = vmatprep.subr.mxu0 0.0
    %1835 = vmatpush1.msra.mxu0 0.0
    %1836 = vmatprep.subr.mxu0 0.0
    %1837 = vmatpush1.msra.mxu0 0.0
    %1838 = vmatprep.subr.mxu0 0.0
    %1839 = vmatpush1.msra.mxu0 0.0
    %1840 = vmatprep.subr.mxu0 0.0
    %1841 = vmatpush1.msra.mxu0 0.0
    %1842 = vmatprep.subr.mxu0 0.0
    %1843 = vmatpush1.msra.mxu0 0.0
    %1844 = vmatprep.subr.mxu0 0.0
    %1845 = vmatpush1.msra.mxu0 0.0
    %1846 = vmatprep.subr.mxu0 %v94
    %1847 = vmatpush1.msra.mxu0 %v93
    %1848 = vmatprep.subr.mxu0 %v92
    %1849 = vmatpush1.msra.mxu0 %v91
    %1850 = vmatprep.subr.mxu0 %v90
    %1851 = vmatpush1.msra.mxu0 %v89
    %1852 = vmatprep.subr.mxu0 %v88
    %1853 = vmatpush1.msra.mxu0 %v87
    %1854 = vmatprep.subr.mxu0 %v86
    %1855 = vmatpush1.msra.mxu0 %v85
    %1856 = vmatprep.subr.mxu0 %v84
    %1857 = vmatpush1.msra.mxu0 %v83
    %1858 = vmatprep.subr.mxu0 %v82
    %1859 = vmatpush1.msra.mxu0 %v81
    %1860 = vmatprep.subr.mxu0 %v80
    %1861 = vmatpush1.msra.mxu0 %v79
    %1862 = vmatprep.subr.mxu0 0.0
    %1863 = vmatpush2.msra.mxu0 0.0
    %1864 = vmatprep.subr.mxu0 0.0
    %1865 = vmatpush2.msra.mxu0 0.0
    %1866 = vmatprep.subr.mxu0 0.0
    %1867 = vmatpush2.msra.mxu0 0.0
    %1868 = vmatprep.subr.mxu0 0.0
    %1869 = vmatpush2.msra.mxu0 0.0
    %1870 = vmatprep.subr.mxu0 0.0
    %1871 = vmatpush2.msra.mxu0 0.0
    %1872 = vmatprep.subr.mxu0 0.0
    %1873 = vmatpush2.msra.mxu0 0.0
    %1874 = vmatprep.subr.mxu0 0.0
    %1875 = vmatpush2.msra.mxu0 0.0
    %1876 = vmatprep.subr.mxu0 0.0
    %1877 = vmatpush2.msra.mxu0 0.0
    %1878 = vmatprep.subr.mxu0 0.0
    %1879 = vmatpush2.msra.mxu0 0.0
    %1880 = vmatprep.subr.mxu0 0.0
    %1881 = vmatpush2.msra.mxu0 0.0
    %1882 = vmatprep.subr.mxu0 0.0
    %1883 = vmatpush2.msra.mxu0 0.0
    %1884 = vmatprep.subr.mxu0 0.0
    %1885 = vmatpush2.msra.mxu0 0.0
    %1886 = vmatprep.subr.mxu0 0.0
    %1887 = vmatpush2.msra.mxu0 0.0
    %1888 = vmatprep.subr.mxu0 0.0
    %1889 = vmatpush2.msra.mxu0 0.0
    %1890 = vmatprep.subr.mxu0 0.0
    %1891 = vmatpush2.msra.mxu0 0.0
    %1892 = vmatprep.subr.mxu0 0.0
    %1893 = vmatpush2.msra.mxu0 0.0
    %1894 = vmatprep.mubr.f32.mxu0 0.0
    %1895 = vmatmul.mubr.f32.gmra.mxu0 %v1828
    %v1896 = vpop.f32.mrf.mxu0
    %v1897 = vadd.f32 %v1820, %v1896
    %v1898 = vpop.f32.mrf.mxu0
    %v1899 = vadd.f32 %v1822, %v1898
    %1900 = vdwg.mxu0
    %v1901 = vadd.f32 %v1897, %v466
    %v1902 = vadd.f32 %v1899, %v470
    %v1903 = vxor.u32 %v1901, 2147483648
    %v1904 = vxor.u32 %v1902, 2147483648
    %v1905 = vmul.f32 %v1903, 1.442695
    %v1906 = vpow.pop %v1905
    %v1907 = vmul.f32 %v1904, 1.442695
    %v1908 = vpow.pop %v1907
    %v1909 = vadd.f32 %v1906, 1.0
    %v1910 = vadd.f32 %v1908, 1.0
    %v1911 = vrcp.pop %v1909
    %v1912 = vmul.f32 1.0, %v1911
    %v1913 = vrcp.pop %v1910
    %v1914 = vmul.f32 1.0, %v1913
    %v1915 = vmul.f32 %v1914, 2.0
    %v1916 = vsub.f32 %v1915, 1.0
    %v1917 = vmul.f32 %v1912, %v1636
    %v1918 = vmul.f32 %v1912, %v1916
    %1920 = vrot.lane.b32.xlu0 %v1918, 64
    %v1921 = vpop.permute.xlu0 %1920
    %v1923 = vadd.f32 %v1917, %v1921
    %v1924 = vtanh.pop %v1923
    %v1925 = vmul.f32 %v1914, %v1924
    %vm1926 = vcmp.gt.s32.totalorder %v112, 5
    %1928 = vrot.lane.b32.xlu0 %v1925, 64
    %v1929 = vpop.permute.xlu0 %1928
    %v1931 = vsel %vm1926, %v1929, %v1644
    %1932 = vmatprep.subr.mxu0 0.0
    %1933 = vmatpush1.msra.mxu0 0.0
    %1934 = vmatprep.subr.mxu0 0.0
    %1935 = vmatpush1.msra.mxu0 0.0
    %1936 = vmatprep.subr.mxu0 0.0
    %1937 = vmatpush1.msra.mxu0 0.0
    %1938 = vmatprep.subr.mxu0 0.0
    %1939 = vmatpush1.msra.mxu0 0.0
    %1940 = vmatprep.subr.mxu0 0.0
    %1941 = vmatpush1.msra.mxu0 0.0
    %1942 = vmatprep.subr.mxu0 0.0
    %1943 = vmatpush1.msra.mxu0 0.0
    %1944 = vmatprep.subr.mxu0 0.0
    %1945 = vmatpush1.msra.mxu0 0.0
    %1946 = vmatprep.subr.mxu0 0.0
    %1947 = vmatpush1.msra.mxu0 0.0
    %1948 = vmatprep.subr.mxu0 %v78
    %1949 = vmatpush1.msra.mxu0 %v77
    %1950 = vmatprep.subr.mxu0 %v76
    %1951 = vmatpush1.msra.mxu0 %v75
    %1952 = vmatprep.subr.mxu0 %v74
    %1953 = vmatpush1.msra.mxu0 %v73
    %1954 = vmatprep.subr.mxu0 %v72
    %1955 = vmatpush1.msra.mxu0 %v71
    %1956 = vmatprep.subr.mxu0 %v70
    %1957 = vmatpush1.msra.mxu0 %v69
    %1958 = vmatprep.subr.mxu0 %v68
    %1959 = vmatpush1.msra.mxu0 %v67
    %1960 = vmatprep.subr.mxu0 %v66
    %1961 = vmatpush1.msra.mxu0 %v65
    %1962 = vmatprep.subr.mxu0 %v64
    %1963 = vmatpush1.msra.mxu0 %v63
    %1964 = vmatprep.subr.mxu0 0.0
    %1965 = vmatpush2.msra.mxu0 0.0
    %1966 = vmatprep.subr.mxu0 0.0
    %1967 = vmatpush2.msra.mxu0 0.0
    %1968 = vmatprep.subr.mxu0 0.0
    %1969 = vmatpush2.msra.mxu0 0.0
    %1970 = vmatprep.subr.mxu0 0.0
    %1971 = vmatpush2.msra.mxu0 0.0
    %1972 = vmatprep.subr.mxu0 0.0
    %1973 = vmatpush2.msra.mxu0 0.0
    %1974 = vmatprep.subr.mxu0 0.0
    %1975 = vmatpush2.msra.mxu0 0.0
    %1976 = vmatprep.subr.mxu0 0.0
    %1977 = vmatpush2.msra.mxu0 0.0
    %1978 = vmatprep.subr.mxu0 0.0
    %1979 = vmatpush2.msra.mxu0 0.0
    %1980 = vmatprep.subr.mxu0 0.0
    %1981 = vmatpush2.msra.mxu0 0.0
    %1982 = vmatprep.subr.mxu0 0.0
    %1983 = vmatpush2.msra.mxu0 0.0
    %1984 = vmatprep.subr.mxu0 0.0
    %1985 = vmatpush2.msra.mxu0 0.0
    %1986 = vmatprep.subr.mxu0 0.0
    %1987 = vmatpush2.msra.mxu0 0.0
    %1988 = vmatprep.subr.mxu0 0.0
    %1989 = vmatpush2.msra.mxu0 0.0
    %1990 = vmatprep.subr.mxu0 0.0
    %1991 = vmatpush2.msra.mxu0 0.0
    %1992 = vmatprep.subr.mxu0 0.0
    %1993 = vmatpush2.msra.mxu0 0.0
    %1994 = vmatprep.subr.mxu0 0.0
    %1995 = vmatpush2.msra.mxu0 0.0
    %1996 = vmatprep.mubr.f32.mxu0 0.0
    %1997 = vmatmul.mubr.f32.gmra.mxu0 %v1828
    %v1998 = vpop.f32.mrf.mxu0
    %v1999 = vadd.f32 0.0, %v1998
    %v2000 = vpop.f32.mrf.mxu0
    %v2001 = vadd.f32 0.0, %v2000
    %2002 = vdwg.mxu0
    %v2005 = vrot.slane %v1999, 4
    %v2006 = vrot.slane %v2001, 4
    %v2009 = vadd.f32 %v211, %v2005
    %v2010 = vadd.f32 %v213, %v2006
    %v2011 = vxor.u32 %v2009, 2147483648
    %v2012 = vxor.u32 %v2010, 2147483648
    %v2013 = vmul.f32 %v2011, 1.442695
    %v2014 = vpow.pop %v2013
    %v2015 = vmul.f32 %v2012, 1.442695
    %v2016 = vpow.pop %v2015
    %v2017 = vadd.f32 %v2014, 1.0
    %v2018 = vadd.f32 %v2016, 1.0
    %v2019 = vrcp.pop %v2017
    %v2020 = vmul.f32 1.0, %v2019
    %v2021 = vrcp.pop %v2018
    %v2022 = vmul.f32 1.0, %v2021
    %v2023 = vmul.f32 %v2022, 2.0
    %v2024 = vsub.f32 %v2023, 1.0
    %v2026 = vrot.slane %v1747, 6
    %v2028 = vmul.f32 %v2020, %v2026
    %v2029 = vmul.f32 %v2020, %v2024
    %2031 = vrot.lane.b32.xlu0 %v2029, 64
    %v2032 = vpop.permute.xlu0 %2031
    %v2034 = vadd.f32 %v2028, %v2032
    %v2035 = vtanh.pop %v2034
    %v2036 = vmul.f32 %v2022, %v2035
    %v2038 = vsel %vm215, %v1931, 0
    %2040 = vmatprep.subr.mxu0 0.0
    %2041 = vmatpush1.msra.mxu0 0.0
    %2042 = vmatprep.subr.mxu0 0.0
    %2043 = vmatpush1.msra.mxu0 0.0
    %2044 = vmatprep.subr.mxu0 0.0
    %2045 = vmatpush1.msra.mxu0 0.0
    %2046 = vmatprep.subr.mxu0 0.0
    %2047 = vmatpush1.msra.mxu0 0.0
    %2048 = vmatprep.subr.mxu0 0.0
    %2049 = vmatpush1.msra.mxu0 0.0
    %2050 = vmatprep.subr.mxu0 0.0
    %2051 = vmatpush1.msra.mxu0 0.0
    %2052 = vmatprep.subr.mxu0 0.0
    %2053 = vmatpush1.msra.mxu0 0.0
    %2054 = vmatprep.subr.mxu0 0.0
    %2055 = vmatpush1.msra.mxu0 0.0
    %2056 = vmatprep.subr.mxu0 %v110
    %2057 = vmatpush1.msra.mxu0 %v109
    %2058 = vmatprep.subr.mxu0 %v108
    %2059 = vmatpush1.msra.mxu0 %v107
    %2060 = vmatprep.subr.mxu0 %v106
    %2061 = vmatpush1.msra.mxu0 %v105
    %2062 = vmatprep.subr.mxu0 %v104
    %2063 = vmatpush1.msra.mxu0 %v103
    %2064 = vmatprep.subr.mxu0 %v102
    %2065 = vmatpush1.msra.mxu0 %v101
    %2066 = vmatprep.subr.mxu0 %v100
    %2067 = vmatpush1.msra.mxu0 %v99
    %2068 = vmatprep.subr.mxu0 %v98
    %2069 = vmatpush1.msra.mxu0 %v97
    %2070 = vmatprep.subr.mxu0 %v96
    %2071 = vmatpush1.msra.mxu0 %v95
    %2072 = vmatprep.subr.mxu0 0.0
    %2073 = vmatpush2.msra.mxu0 0.0
    %2074 = vmatprep.subr.mxu0 0.0
    %2075 = vmatpush2.msra.mxu0 0.0
    %2076 = vmatprep.subr.mxu0 0.0
    %2077 = vmatpush2.msra.mxu0 0.0
    %2078 = vmatprep.subr.mxu0 0.0
    %2079 = vmatpush2.msra.mxu0 0.0
    %2080 = vmatprep.subr.mxu0 0.0
    %2081 = vmatpush2.msra.mxu0 0.0
    %2082 = vmatprep.subr.mxu0 0.0
    %2083 = vmatpush2.msra.mxu0 0.0
    %2084 = vmatprep.subr.mxu0 0.0
    %2085 = vmatpush2.msra.mxu0 0.0
    %2086 = vmatprep.subr.mxu0 0.0
    %2087 = vmatpush2.msra.mxu0 0.0
    %2088 = vmatprep.subr.mxu0 0.0
    %2089 = vmatpush2.msra.mxu0 0.0
    %2090 = vmatprep.subr.mxu0 0.0
    %2091 = vmatpush2.msra.mxu0 0.0
    %2092 = vmatprep.subr.mxu0 0.0
    %2093 = vmatpush2.msra.mxu0 0.0
    %2094 = vmatprep.subr.mxu0 0.0
    %2095 = vmatpush2.msra.mxu0 0.0
    %2096 = vmatprep.subr.mxu0 0.0
    %2097 = vmatpush2.msra.mxu0 0.0
    %2098 = vmatprep.subr.mxu0 0.0
    %2099 = vmatpush2.msra.mxu0 0.0
    %2100 = vmatprep.subr.mxu0 0.0
    %2101 = vmatpush2.msra.mxu0 0.0
    %2102 = vmatprep.subr.mxu0 0.0
    %2103 = vmatpush2.msra.mxu0 0.0
    %2104 = vmatprep.mubr.f32.mxu0 0.0
    %2105 = vmatmul.mubr.f32.gmra.mxu0 %v2038
    %v2106 = vpop.f32.mrf.mxu0
    %v2107 = vadd.f32 0.0, %v2106
    %v2108 = vpop.f32.mrf.mxu0
    %v2109 = vadd.f32 0.0, %v2108
    %2110 = vdwg.mxu0
    %v2112 = vrot.slane %v2036, 4
    %2113 = vrot.lane.b32.xlu0 %v2112, 64
    %v2114 = vpop.permute.xlu0 %2113
    %v2115 = vsel %vm215, %v2114, 0
    %2117 = vmatprep.subr.mxu0 0.0
    %2118 = vmatpush1.msra.mxu0 0.0
    %2119 = vmatprep.subr.mxu0 0.0
    %2120 = vmatpush1.msra.mxu0 0.0
    %2121 = vmatprep.subr.mxu0 0.0
    %2122 = vmatpush1.msra.mxu0 0.0
    %2123 = vmatprep.subr.mxu0 0.0
    %2124 = vmatpush1.msra.mxu0 0.0
    %2125 = vmatprep.subr.mxu0 0.0
    %2126 = vmatpush1.msra.mxu0 0.0
    %2127 = vmatprep.subr.mxu0 0.0
    %2128 = vmatpush1.msra.mxu0 0.0
    %2129 = vmatprep.subr.mxu0 0.0
    %2130 = vmatpush1.msra.mxu0 0.0
    %2131 = vmatprep.subr.mxu0 0.0
    %2132 = vmatpush1.msra.mxu0 0.0
    %2133 = vmatprep.subr.mxu0 %v94
    %2134 = vmatpush1.msra.mxu0 %v93
    %2135 = vmatprep.subr.mxu0 %v92
    %2136 = vmatpush1.msra.mxu0 %v91
    %2137 = vmatprep.subr.mxu0 %v90
    %2138 = vmatpush1.msra.mxu0 %v89
    %2139 = vmatprep.subr.mxu0 %v88
    %2140 = vmatpush1.msra.mxu0 %v87
    %2141 = vmatprep.subr.mxu0 %v86
    %2142 = vmatpush1.msra.mxu0 %v85
    %2143 = vmatprep.subr.mxu0 %v84
    %2144 = vmatpush1.msra.mxu0 %v83
    %2145 = vmatprep.subr.mxu0 %v82
    %2146 = vmatpush1.msra.mxu0 %v81
    %2147 = vmatprep.subr.mxu0 %v80
    %2148 = vmatpush1.msra.mxu0 %v79
    %2149 = vmatprep.subr.mxu0 0.0
    %2150 = vmatpush2.msra.mxu0 0.0
    %2151 = vmatprep.subr.mxu0 0.0
    %2152 = vmatpush2.msra.mxu0 0.0
    %2153 = vmatprep.subr.mxu0 0.0
    %2154 = vmatpush2.msra.mxu0 0.0
    %2155 = vmatprep.subr.mxu0 0.0
    %2156 = vmatpush2.msra.mxu0 0.0
    %2157 = vmatprep.subr.mxu0 0.0
    %2158 = vmatpush2.msra.mxu0 0.0
    %2159 = vmatprep.subr.mxu0 0.0
    %2160 = vmatpush2.msra.mxu0 0.0
    %2161 = vmatprep.subr.mxu0 0.0
    %2162 = vmatpush2.msra.mxu0 0.0
    %2163 = vmatprep.subr.mxu0 0.0
    %2164 = vmatpush2.msra.mxu0 0.0
    %2165 = vmatprep.subr.mxu0 0.0
    %2166 = vmatpush2.msra.mxu0 0.0
    %2167 = vmatprep.subr.mxu0 0.0
    %2168 = vmatpush2.msra.mxu0 0.0
    %2169 = vmatprep.subr.mxu0 0.0
    %2170 = vmatpush2.msra.mxu0 0.0
    %2171 = vmatprep.subr.mxu0 0.0
    %2172 = vmatpush2.msra.mxu0 0.0
    %2173 = vmatprep.subr.mxu0 0.0
    %2174 = vmatpush2.msra.mxu0 0.0
    %2175 = vmatprep.subr.mxu0 0.0
    %2176 = vmatpush2.msra.mxu0 0.0
    %2177 = vmatprep.subr.mxu0 0.0
    %2178 = vmatpush2.msra.mxu0 0.0
    %2179 = vmatprep.subr.mxu0 0.0
    %2180 = vmatpush2.msra.mxu0 0.0
    %2181 = vmatprep.mubr.f32.mxu0 0.0
    %2182 = vmatmul.mubr.f32.gmra.mxu0 %v2115
    %v2183 = vpop.f32.mrf.mxu0
    %v2184 = vadd.f32 %v2107, %v2183
    %v2185 = vpop.f32.mrf.mxu0
    %v2186 = vadd.f32 %v2109, %v2185
    %2187 = vdwg.mxu0
    %v2188 = vadd.f32 %v2184, %v466
    %v2189 = vadd.f32 %v2186, %v470
    %v2190 = vxor.u32 %v2188, 2147483648
    %v2191 = vxor.u32 %v2189, 2147483648
    %v2192 = vmul.f32 %v2190, 1.442695
    %v2193 = vpow.pop %v2192
    %v2194 = vmul.f32 %v2191, 1.442695
    %v2195 = vpow.pop %v2194
    %v2196 = vadd.f32 %v2193, 1.0
    %v2197 = vadd.f32 %v2195, 1.0
    %v2198 = vrcp.pop %v2196
    %v2199 = vmul.f32 1.0, %v2198
    %v2200 = vrcp.pop %v2197
    %v2201 = vmul.f32 1.0, %v2200
    %v2202 = vmul.f32 %v2201, 2.0
    %v2203 = vsub.f32 %v2202, 1.0
    %v2204 = vmul.f32 %v2199, %v1923
    %v2205 = vmul.f32 %v2199, %v2203
    %2207 = vrot.lane.b32.xlu0 %v2205, 64
    %v2208 = vpop.permute.xlu0 %2207
    %v2210 = vadd.f32 %v2204, %v2208
    %v2211 = vtanh.pop %v2210
    %v2212 = vmul.f32 %v2201, %v2211
    %vm2213 = vcmp.gt.s32.totalorder %v112, 6
    %2215 = vrot.lane.b32.xlu0 %v2212, 64
    %v2216 = vpop.permute.xlu0 %2215
    %v2218 = vsel %vm2213, %v2216, %v1931
    %2219 = vmatprep.subr.mxu0 0.0
    %2220 = vmatpush1.msra.mxu0 0.0
    %2221 = vmatprep.subr.mxu0 0.0
    %2222 = vmatpush1.msra.mxu0 0.0
    %2223 = vmatprep.subr.mxu0 0.0
    %2224 = vmatpush1.msra.mxu0 0.0
    %2225 = vmatprep.subr.mxu0 0.0
    %2226 = vmatpush1.msra.mxu0 0.0
    %2227 = vmatprep.subr.mxu0 0.0
    %2228 = vmatpush1.msra.mxu0 0.0
    %2229 = vmatprep.subr.mxu0 0.0
    %2230 = vmatpush1.msra.mxu0 0.0
    %2231 = vmatprep.subr.mxu0 0.0
    %2232 = vmatpush1.msra.mxu0 0.0
    %2233 = vmatprep.subr.mxu0 0.0
    %2234 = vmatpush1.msra.mxu0 0.0
    %2235 = vmatprep.subr.mxu0 %v78
    %2236 = vmatpush1.msra.mxu0 %v77
    %2237 = vmatprep.subr.mxu0 %v76
    %2238 = vmatpush1.msra.mxu0 %v75
    %2239 = vmatprep.subr.mxu0 %v74
    %2240 = vmatpush1.msra.mxu0 %v73
    %2241 = vmatprep.subr.mxu0 %v72
    %2242 = vmatpush1.msra.mxu0 %v71
    %2243 = vmatprep.subr.mxu0 %v70
    %2244 = vmatpush1.msra.mxu0 %v69
    %2245 = vmatprep.subr.mxu0 %v68
    %2246 = vmatpush1.msra.mxu0 %v67
    %2247 = vmatprep.subr.mxu0 %v66
    %2248 = vmatpush1.msra.mxu0 %v65
    %2249 = vmatprep.subr.mxu0 %v64
    %2250 = vmatpush1.msra.mxu0 %v63
    %2251 = vmatprep.subr.mxu0 0.0
    %2252 = vmatpush2.msra.mxu0 0.0
    %2253 = vmatprep.subr.mxu0 0.0
    %2254 = vmatpush2.msra.mxu0 0.0
    %2255 = vmatprep.subr.mxu0 0.0
    %2256 = vmatpush2.msra.mxu0 0.0
    %2257 = vmatprep.subr.mxu0 0.0
    %2258 = vmatpush2.msra.mxu0 0.0
    %2259 = vmatprep.subr.mxu0 0.0
    %2260 = vmatpush2.msra.mxu0 0.0
    %2261 = vmatprep.subr.mxu0 0.0
    %2262 = vmatpush2.msra.mxu0 0.0
    %2263 = vmatprep.subr.mxu0 0.0
    %2264 = vmatpush2.msra.mxu0 0.0
    %2265 = vmatprep.subr.mxu0 0.0
    %2266 = vmatpush2.msra.mxu0 0.0
    %2267 = vmatprep.subr.mxu0 0.0
    %2268 = vmatpush2.msra.mxu0 0.0
    %2269 = vmatprep.subr.mxu0 0.0
    %2270 = vmatpush2.msra.mxu0 0.0
    %2271 = vmatprep.subr.mxu0 0.0
    %2272 = vmatpush2.msra.mxu0 0.0
    %2273 = vmatprep.subr.mxu0 0.0
    %2274 = vmatpush2.msra.mxu0 0.0
    %2275 = vmatprep.subr.mxu0 0.0
    %2276 = vmatpush2.msra.mxu0 0.0
    %2277 = vmatprep.subr.mxu0 0.0
    %2278 = vmatpush2.msra.mxu0 0.0
    %2279 = vmatprep.subr.mxu0 0.0
    %2280 = vmatpush2.msra.mxu0 0.0
    %2281 = vmatprep.subr.mxu0 0.0
    %2282 = vmatpush2.msra.mxu0 0.0
    %2283 = vmatprep.mubr.f32.mxu0 0.0
    %2284 = vmatmul.mubr.f32.gmra.mxu0 %v2115
    %v2285 = vpop.f32.mrf.mxu0
    %v2286 = vadd.f32 0.0, %v2285
    %v2287 = vpop.f32.mrf.mxu0
    %v2288 = vadd.f32 0.0, %v2287
    %2289 = vdwg.mxu0
    %v2292 = vrot.slane %v2286, 2
    %v2293 = vrot.slane %v2288, 2
    %v2296 = vadd.f32 %v211, %v2292
    %v2297 = vadd.f32 %v213, %v2293
    %v2298 = vxor.u32 %v2296, 2147483648
    %v2299 = vxor.u32 %v2297, 2147483648
    %v2300 = vmul.f32 %v2298, 1.442695
    %v2301 = vpow.pop %v2300
    %v2302 = vmul.f32 %v2299, 1.442695
    %v2303 = vpow.pop %v2302
    %v2304 = vadd.f32 %v2301, 1.0
    %v2305 = vadd.f32 %v2303, 1.0
    %v2306 = vrcp.pop %v2304
    %v2307 = vmul.f32 1.0, %v2306
    %v2308 = vrcp.pop %v2305
    %v2309 = vmul.f32 1.0, %v2308
    %v2310 = vmul.f32 %v2309, 2.0
    %v2311 = vsub.f32 %v2310, 1.0
    %v2313 = vrot.slane %v2034, 6
    %v2315 = vmul.f32 %v2307, %v2313
    %v2316 = vmul.f32 %v2307, %v2311
    %2318 = vrot.lane.b32.xlu0 %v2316, 64
    %v2319 = vpop.permute.xlu0 %2318
    %v2321 = vadd.f32 %v2315, %v2319
    %v2322 = vtanh.pop %v2321
    %v2323 = vmul.f32 %v2309, %v2322
    %v2325 = vsel %vm215, %v2218, 0
    %2327 = vmatprep.subr.mxu0 0.0
    %2328 = vmatpush1.msra.mxu0 0.0
    %2329 = vmatprep.subr.mxu0 0.0
    %2330 = vmatpush1.msra.mxu0 0.0
    %2331 = vmatprep.subr.mxu0 0.0
    %2332 = vmatpush1.msra.mxu0 0.0
    %2333 = vmatprep.subr.mxu0 0.0
    %2334 = vmatpush1.msra.mxu0 0.0
    %2335 = vmatprep.subr.mxu0 0.0
    %2336 = vmatpush1.msra.mxu0 0.0
    %2337 = vmatprep.subr.mxu0 0.0
    %2338 = vmatpush1.msra.mxu0 0.0
    %2339 = vmatprep.subr.mxu0 0.0
    %2340 = vmatpush1.msra.mxu0 0.0
    %2341 = vmatprep.subr.mxu0 0.0
    %2342 = vmatpush1.msra.mxu0 0.0
    %2343 = vmatprep.subr.mxu0 %v110
    %2344 = vmatpush1.msra.mxu0 %v109
    %2345 = vmatprep.subr.mxu0 %v108
    %2346 = vmatpush1.msra.mxu0 %v107
    %2347 = vmatprep.subr.mxu0 %v106
    %2348 = vmatpush1.msra.mxu0 %v105
    %2349 = vmatprep.subr.mxu0 %v104
    %2350 = vmatpush1.msra.mxu0 %v103
    %2351 = vmatprep.subr.mxu0 %v102
    %2352 = vmatpush1.msra.mxu0 %v101
    %2353 = vmatprep.subr.mxu0 %v100
    %2354 = vmatpush1.msra.mxu0 %v99
    %2355 = vmatprep.subr.mxu0 %v98
    %2356 = vmatpush1.msra.mxu0 %v97
    %2357 = vmatprep.subr.mxu0 %v96
    %2358 = vmatpush1.msra.mxu0 %v95
    %2359 = vmatprep.subr.mxu0 0.0
    %2360 = vmatpush2.msra.mxu0 0.0
    %2361 = vmatprep.subr.mxu0 0.0
    %2362 = vmatpush2.msra.mxu0 0.0
    %2363 = vmatprep.subr.mxu0 0.0
    %2364 = vmatpush2.msra.mxu0 0.0
    %2365 = vmatprep.subr.mxu0 0.0
    %2366 = vmatpush2.msra.mxu0 0.0
    %2367 = vmatprep.subr.mxu0 0.0
    %2368 = vmatpush2.msra.mxu0 0.0
    %2369 = vmatprep.subr.mxu0 0.0
    %2370 = vmatpush2.msra.mxu0 0.0
    %2371 = vmatprep.subr.mxu0 0.0
    %2372 = vmatpush2.msra.mxu0 0.0
    %2373 = vmatprep.subr.mxu0 0.0
    %2374 = vmatpush2.msra.mxu0 0.0
    %2375 = vmatprep.subr.mxu0 0.0
    %2376 = vmatpush2.msra.mxu0 0.0
    %2377 = vmatprep.subr.mxu0 0.0
    %2378 = vmatpush2.msra.mxu0 0.0
    %2379 = vmatprep.subr.mxu0 0.0
    %2380 = vmatpush2.msra.mxu0 0.0
    %2381 = vmatprep.subr.mxu0 0.0
    %2382 = vmatpush2.msra.mxu0 0.0
    %2383 = vmatprep.subr.mxu0 0.0
    %2384 = vmatpush2.msra.mxu0 0.0
    %2385 = vmatprep.subr.mxu0 0.0
    %2386 = vmatpush2.msra.mxu0 0.0
    %2387 = vmatprep.subr.mxu0 0.0
    %2388 = vmatpush2.msra.mxu0 0.0
    %2389 = vmatprep.subr.mxu0 0.0
    %2390 = vmatpush2.msra.mxu0 0.0
    %2391 = vmatprep.mubr.f32.mxu0 0.0
    %2392 = vmatmul.mubr.f32.gmra.mxu0 %v2325
    %v2393 = vpop.f32.mrf.mxu0
    %v2394 = vadd.f32 0.0, %v2393
    %v2395 = vpop.f32.mrf.mxu0
    %v2396 = vadd.f32 0.0, %v2395
    %2397 = vdwg.mxu0
    %v2399 = vrot.slane %v2323, 6
    %2400 = vrot.lane.b32.xlu0 %v2399, 64
    %v2401 = vpop.permute.xlu0 %2400
    %v2402 = vsel %vm215, %v2401, 0
    %2404 = vmatprep.subr.mxu0 0.0
    %2405 = vmatpush1.msra.mxu0 0.0
    %2406 = vmatprep.subr.mxu0 0.0
    %2407 = vmatpush1.msra.mxu0 0.0
    %2408 = vmatprep.subr.mxu0 0.0
    %2409 = vmatpush1.msra.mxu0 0.0
    %2410 = vmatprep.subr.mxu0 0.0
    %2411 = vmatpush1.msra.mxu0 0.0
    %2412 = vmatprep.subr.mxu0 0.0
    %2413 = vmatpush1.msra.mxu0 0.0
    %2414 = vmatprep.subr.mxu0 0.0
    %2415 = vmatpush1.msra.mxu0 0.0
    %2416 = vmatprep.subr.mxu0 0.0
    %2417 = vmatpush1.msra.mxu0 0.0
    %2418 = vmatprep.subr.mxu0 0.0
    %2419 = vmatpush1.msra.mxu0 0.0
    %2420 = vmatprep.subr.mxu0 %v94
    %2421 = vmatpush1.msra.mxu0 %v93
    %2422 = vmatprep.subr.mxu0 %v92
    %2423 = vmatpush1.msra.mxu0 %v91
    %2424 = vmatprep.subr.mxu0 %v90
    %2425 = vmatpush1.msra.mxu0 %v89
    %2426 = vmatprep.subr.mxu0 %v88
    %2427 = vmatpush1.msra.mxu0 %v87
    %2428 = vmatprep.subr.mxu0 %v86
    %2429 = vmatpush1.msra.mxu0 %v85
    %2430 = vmatprep.subr.mxu0 %v84
    %2431 = vmatpush1.msra.mxu0 %v83
    %2432 = vmatprep.subr.mxu0 %v82
    %2433 = vmatpush1.msra.mxu0 %v81
    %2434 = vmatprep.subr.mxu0 %v80
    %2435 = vmatpush1.msra.mxu0 %v79
    %2436 = vmatprep.subr.mxu0 0.0
    %2437 = vmatpush2.msra.mxu0 0.0
    %2438 = vmatprep.subr.mxu0 0.0
    %2439 = vmatpush2.msra.mxu0 0.0
    %2440 = vmatprep.subr.mxu0 0.0
    %2441 = vmatpush2.msra.mxu0 0.0
    %2442 = vmatprep.subr.mxu0 0.0
    %2443 = vmatpush2.msra.mxu0 0.0
    %2444 = vmatprep.subr.mxu0 0.0
    %2445 = vmatpush2.msra.mxu0 0.0
    %2446 = vmatprep.subr.mxu0 0.0
    %2447 = vmatpush2.msra.mxu0 0.0
    %2448 = vmatprep.subr.mxu0 0.0
    %2449 = vmatpush2.msra.mxu0 0.0
    %2450 = vmatprep.subr.mxu0 0.0
    %2451 = vmatpush2.msra.mxu0 0.0
    %2452 = vmatprep.subr.mxu0 0.0
    %2453 = vmatpush2.msra.mxu0 0.0
    %2454 = vmatprep.subr.mxu0 0.0
    %2455 = vmatpush2.msra.mxu0 0.0
    %2456 = vmatprep.subr.mxu0 0.0
    %2457 = vmatpush2.msra.mxu0 0.0
    %2458 = vmatprep.subr.mxu0 0.0
    %2459 = vmatpush2.msra.mxu0 0.0
    %2460 = vmatprep.subr.mxu0 0.0
    %2461 = vmatpush2.msra.mxu0 0.0
    %2462 = vmatprep.subr.mxu0 0.0
    %2463 = vmatpush2.msra.mxu0 0.0
    %2464 = vmatprep.subr.mxu0 0.0
    %2465 = vmatpush2.msra.mxu0 0.0
    %2466 = vmatprep.subr.mxu0 0.0
    %2467 = vmatpush2.msra.mxu0 0.0
    %2468 = vmatprep.mubr.f32.mxu0 0.0
    %2469 = vmatmul.mubr.f32.gmra.mxu0 %v2402
    %v2470 = vpop.f32.mrf.mxu0
    %v2471 = vadd.f32 %v2394, %v2470
    %v2472 = vpop.f32.mrf.mxu0
    %v2473 = vadd.f32 %v2396, %v2472
    %2474 = vdwg.mxu0
    %v2475 = vadd.f32 %v2471, %v466
    %v2476 = vadd.f32 %v2473, %v470
    %v2477 = vxor.u32 %v2475, 2147483648
    %v2478 = vxor.u32 %v2476, 2147483648
    %v2479 = vmul.f32 %v2477, 1.442695
    %v2480 = vpow.pop %v2479
    %v2481 = vmul.f32 %v2478, 1.442695
    %v2482 = vpow.pop %v2481
    %v2483 = vadd.f32 %v2480, 1.0
    %v2484 = vadd.f32 %v2482, 1.0
    %v2485 = vrcp.pop %v2483
    %v2486 = vmul.f32 1.0, %v2485
    %v2487 = vrcp.pop %v2484
    %v2488 = vmul.f32 1.0, %v2487
    %v2489 = vmul.f32 %v2488, 2.0
    %v2490 = vsub.f32 %v2489, 1.0
    %v2491 = vmul.f32 %v2486, %v2210
    %v2492 = vmul.f32 %v2486, %v2490
    %2494 = vrot.lane.b32.xlu0 %v2492, 64
    %v2495 = vpop.permute.xlu0 %2494
    %v2497 = vadd.f32 %v2491, %v2495
    %v2498 = vtanh.pop %v2497
    %v2499 = vmul.f32 %v2488, %v2498
    %vm2500 = vcmp.gt.s32.totalorder %v112, 7
    %2502 = vrot.lane.b32.xlu0 %v2499, 64
    %v2503 = vpop.permute.xlu0 %2502
    %v2505 = vsel %vm2500, %v2503, %v2218
    %v2506 = vld [vmem:[%s8] sm:$0xff]
    %v2507 = vld [vmem:[%s8 + $0x8] sm:$0xff]
    %v2508 = vld [vmem:[%s8 + $0x10] sm:$0xff]
    %v2509 = vld [vmem:[%s8 + $0x18] sm:$0xff]
    %v2510 = vld [vmem:[%s8 + $0x20] sm:$0xff]
    %v2511 = vld [vmem:[%s8 + $0x28] sm:$0xff]
    %v2512 = vld [vmem:[%s8 + $0x30] sm:$0xff]
    %v2513 = vld [vmem:[%s8 + $0x38] sm:$0xff]
    %v2514 = vld [vmem:[%s9] sm:$0x1]
    %v2516 = vlaneseq
    %v2517 = vshrl.u32 %v2516, 7
    %v2518 = vsub.s32 0, %v2517
    %v2519 = vrot.slane %v2514, %v2518
    %v2522 = vsel %vm215, %v2505, 0
    %2524 = vmatprep.subr.mxu0 0.0
    %2525 = vmatpush1.msra.mxu0 0.0
    %2526 = vmatprep.subr.mxu0 0.0
    %2527 = vmatpush1.msra.mxu0 0.0
    %2528 = vmatprep.subr.mxu0 0.0
    %2529 = vmatpush1.msra.mxu0 0.0
    %2530 = vmatprep.subr.mxu0 0.0
    %2531 = vmatpush1.msra.mxu0 0.0
    %2532 = vmatprep.subr.mxu0 0.0
    %2533 = vmatpush1.msra.mxu0 0.0
    %2534 = vmatprep.subr.mxu0 0.0
    %2535 = vmatpush1.msra.mxu0 0.0
    %2536 = vmatprep.subr.mxu0 0.0
    %2537 = vmatpush1.msra.mxu0 0.0
    %2538 = vmatprep.subr.mxu0 0.0
    %2539 = vmatpush1.msra.mxu0 0.0
    %2540 = vmatprep.subr.mxu0 0.0
    %2541 = vmatpush1.msra.mxu0 %v2513
    %2542 = vmatprep.subr.mxu0 0.0
    %2543 = vmatpush1.msra.mxu0 %v2512
    %2544 = vmatprep.subr.mxu0 0.0
    %2545 = vmatpush1.msra.mxu0 %v2511
    %2546 = vmatprep.subr.mxu0 0.0
    %2547 = vmatpush1.msra.mxu0 %v2510
    %2548 = vmatprep.subr.mxu0 0.0
    %2549 = vmatpush1.msra.mxu0 %v2509
    %2550 = vmatprep.subr.mxu0 0.0
    %2551 = vmatpush1.msra.mxu0 %v2508
    %2552 = vmatprep.subr.mxu0 0.0
    %2553 = vmatpush1.msra.mxu0 %v2507
    %2554 = vmatprep.subr.mxu0 0.0
    %2555 = vmatpush1.msra.mxu0 %v2506
    %2556 = vmatprep.subr.mxu0 0.0
    %2557 = vmatpush2.msra.mxu0 0.0
    %2558 = vmatprep.subr.mxu0 0.0
    %2559 = vmatpush2.msra.mxu0 0.0
    %2560 = vmatprep.subr.mxu0 0.0
    %2561 = vmatpush2.msra.mxu0 0.0
    %2562 = vmatprep.subr.mxu0 0.0
    %2563 = vmatpush2.msra.mxu0 0.0
    %2564 = vmatprep.subr.mxu0 0.0
    %2565 = vmatpush2.msra.mxu0 0.0
    %2566 = vmatprep.subr.mxu0 0.0
    %2567 = vmatpush2.msra.mxu0 0.0
    %2568 = vmatprep.subr.mxu0 0.0
    %2569 = vmatpush2.msra.mxu0 0.0
    %2570 = vmatprep.subr.mxu0 0.0
    %2571 = vmatpush2.msra.mxu0 0.0
    %2572 = vmatprep.subr.mxu0 0.0
    %2573 = vmatpush2.msra.mxu0 0.0
    %2574 = vmatprep.subr.mxu0 0.0
    %2575 = vmatpush2.msra.mxu0 0.0
    %2576 = vmatprep.subr.mxu0 0.0
    %2577 = vmatpush2.msra.mxu0 0.0
    %2578 = vmatprep.subr.mxu0 0.0
    %2579 = vmatpush2.msra.mxu0 0.0
    %2580 = vmatprep.subr.mxu0 0.0
    %2581 = vmatpush2.msra.mxu0 0.0
    %2582 = vmatprep.subr.mxu0 0.0
    %2583 = vmatpush2.msra.mxu0 0.0
    %2584 = vmatprep.subr.mxu0 0.0
    %2585 = vmatpush2.msra.mxu0 0.0
    %2586 = vmatprep.subr.mxu0 0.0
    %2587 = vmatpush2.msra.mxu0 0.0
    %2588 = vmatprep.mubr.f32.mxu0 0.0
    %2589 = vmatmul.mubr.f32.gmra.mxu0 %v2522
    %v2590 = vpop.f32.mrf.mxu0
    %v2591 = vadd.f32 %v2519, %v2590
    %v2592 = vpop.f32.mrf.mxu0
    %2593 = vdwg.mxu0
    %vm2594 = vcmask 254976
    %2595 = vst.msk [vmem:[%s10] sm:$0x3] %vm2594, %v2591
    // Predicated region
    $region50: #{custom_typenet_forward.1} parent=1 // pred_check
      _
    $region51: #{custom_typenet_forward.1} parent=1 // pred_check_branch
      %2597 = sbr.rel (0) target = $region53
    $region52: #{custom_typenet_forward.1} parent=1 // pred_region
      _
    $region53: #{custom_typenet_forward.1} parent=1 // pred_fallthru
      _
    // Predicated region
    $region54: #{custom_typenet_forward.1} parent=1 // pred_check
      _
    $region55: #{custom_typenet_forward.1} parent=1 // pred_check_branch
      %2599 = sbr.rel (0) target = $region57
    $region56: #{custom_typenet_forward.1} parent=1 // pred_region
      _
    $region57: #{custom_typenet_forward.1} parent=1 // pred_fallthru
      _
    %2600 = vsyncpa [#allocation3], 1
    %2601 = vsyncpa [#allocation5], 1

</llo_original>
